<compile_context>
chip_gen: v7x
topology: tpu7x:2x2x1
jax: 0.10.0
libtpu: 0.0.40
codegen_flags: <defaults>
</compile_context>

<pallas_src>
import functools

import numpy as np
import jax
import jax.numpy as jnp
from jax.experimental import pallas as pl
from jax.experimental.pallas import tpu as pltpu


def _conv3x3_circular_kernel(x_ref, w_ref, o_ref, *, cin, cout, hh, ww):
    """One sample.

    x_ref: (Cin, H+2, W+2) VMEM (circularly padded input),
    w_ref: (9*Cout*Cin,)   SMEM (flattened 3x3 weight),
    o_ref: (Cout, H, W)    VMEM.
    out[co, h, w] = sum_{dy,dx,ci} w[co,ci,dy,dx] * xpad[ci, h+dy, w+dx]
    """
    accs = [None] * cout
    for dy in range(3):
        for dx in range(3):
            tap_base = (dy * 3 + dx) * cout * cin
            for ci in range(cin):
                # static-offset slice of the VMEM block -> (H, W) tap, built
                # in-kernel (no HBM im2col).
                tap = x_ref[ci, dy:dy + hh, dx:dx + ww]
                for co in range(cout):
                    wv = w_ref[tap_base + co * cin + ci]   # scalar from SMEM
                    term = wv * tap
                    accs[co] = term if accs[co] is None else accs[co] + term
    for co in range(cout):
        o_ref[co] = accs[co].astype(o_ref.dtype)


def conv3x3_circular(f, w):
    """Conv2d(k=3, stride=1, padding=1, padding_mode='circular', bias=False).

    f: (N, Cin, H, W) f32;  w: (Cout, Cin, 3, 3) f32 (PyTorch layout)."""
    N, Cin, H, W = f.shape
    Cout = w.shape[0]
    # Circular padding in plain JAX: tiny (1.06x) vs. the 9x inflation of a
    # materialized tap stack.
    fp = jnp.pad(f, ((0, 0), (0, 0), (1, 1), (1, 1)), mode='wrap')
    # Flatten weight so index ((dy*3+dx)*Cout + co)*Cin + ci reads w[co,ci,dy,dx].
    wf = jnp.transpose(w, (2, 3, 0, 1)).reshape(-1).astype(jnp.float32)

    kernel = functools.partial(_conv3x3_circular_kernel,
                               cin=Cin, cout=Cout, hh=H, ww=W)
    return pl.pallas_call(
        kernel,
        out_shape=jax.ShapeDtypeStruct((N, Cout, H, W), jnp.float32),
        grid=(N,),
        in_specs=[
            # one padded sample per grid step, batch dim squeezed
            pl.BlockSpec((None, Cin, H + 2, W + 2), lambda n: (n, 0, 0, 0)),
            # whole (tiny) weight vector resident in SMEM for scalar reads
            pl.BlockSpec(memory_space=pltpu.MemorySpace.SMEM),
        ],
        out_specs=pl.BlockSpec((None, Cout, H, W), lambda n: (n, 0, 0, 0)),
        compiler_params=pltpu.CompilerParams(
            dimension_semantics=("parallel",)),   # one sample per TC on v7x
    )(fp, wf)


def mgite_init_forward(f, s_weight):
    """MgIte_init.forward: u = S(f); return (u, f)."""
    u = conv3x3_circular(f, s_weight)
    return u, f


def _conv3x3_circular_ref(f, w):
    """Pure-JAX reference (roll-based circular conv) for correctness check."""
    acc = jnp.zeros((f.shape[0], w.shape[0], f.shape[2], f.shape[3]),
                    jnp.float32)
    for dy in range(3):
        for dx in range(3):
            sh = jnp.roll(f, shift=(1 - dy, 1 - dx), axis=(2, 3))
            acc = acc + jnp.einsum('oc,nchw->nohw', w[:, :, dy, dx], sh)
    return acc


if __name__ == "__main__":
    # MgNO-style smoother S: Conv2d(4, 4, 3, padding=1, circular, bias=False)
    # on the 64x64 grid that MgNO hardcodes; batch=2 keeps grid=(2,) parallel.
    N, Cin, Cout, H, W = 2, 4, 4, 64, 64

    root = jax.random.PRNGKey(0)
    k_f, k_w = jax.random.split(root)
    f = jax.random.normal(k_f, (N, Cin, H, W), jnp.float32)
    bound = 1.0 / np.sqrt(Cin * 3 * 3)        # PyTorch Conv2d default init bound
    s_w = jax.random.uniform(k_w, (Cout, Cin, 3, 3), jnp.float32, -bound, bound)

    fwd = jax.jit(lambda x: mgite_init_forward(x, s_w))
    u, f_out = fwd(f)
    jax.block_until_ready(u)
    jax.block_until_ready(f_out)

    assert u.shape == (N, Cout, H, W), u.shape
    assert f_out.shape == f.shape, f_out.shape
    assert bool(jnp.all(jnp.isfinite(u)))

    ref = _conv3x3_circular_ref(f, s_w)
    max_err = float(jnp.max(jnp.abs(u - ref)))
    assert max_err < 1e-4, max_err
    assert float(jnp.max(jnp.abs(f_out - f))) == 0.0
    print("KERNEL_OK")
</pallas_src>

<mosaic_0001>
module attributes {stable_mosaic.version = 11 : i64} {
  func.func @_conv3x3_circular_kernel(%arg0: i32, %arg1: memref<1x4x66x66xf32, #tpu.memory_space<vmem>>, %arg2: memref<144xf32, #tpu.memory_space<smem>>, %arg3: memref<1x4x64x64xf32, #tpu.memory_space<vmem>>) attributes {dimension_semantics = [#tpu.dimension_semantics<parallel>], iteration_bounds = array<i64: 2>, scalar_prefetch = 0 : i64, scratch_operands = 0 : i64, tpu.core_type = #tpu.core_type<tc>, window_params = [{transform_indices = @transform_0, window_bounds = array<i64: 1, 4, 66, 66>}, {transform_indices = @transform_1, window_bounds = array<i64: 144>}, {transform_indices = @transform_2, window_bounds = array<i64: 1, 4, 64, 64>}]} {
    %c0 = arith.constant 0 : index
    %c0_0 = arith.constant 0 : index
    %c0_1 = arith.constant 0 : index
    %c0_2 = arith.constant 0 : index
    %0 = vector.load %arg1[%c0, %c0_0, %c0_1, %c0_2] : memref<1x4x66x66xf32, #tpu.memory_space<vmem>>, vector<1x1x64x64xf32>
    %1 = vector.shape_cast %0 : vector<1x1x64x64xf32> to vector<64x64xf32>
    %c0_3 = arith.constant 0 : index
    %2 = memref.load %arg2[%c0_3] : memref<144xf32, #tpu.memory_space<smem>>
    %3 = vector.broadcast %2 : f32 to vector<64x64xf32>
    %4 = arith.mulf %3, %1 : vector<64x64xf32>
    %c4 = arith.constant 4 : index
    %5 = memref.load %arg2[%c4] : memref<144xf32, #tpu.memory_space<smem>>
    %6 = vector.broadcast %5 : f32 to vector<64x64xf32>
    %7 = arith.mulf %6, %1 : vector<64x64xf32>
    %c8 = arith.constant 8 : index
    %8 = memref.load %arg2[%c8] : memref<144xf32, #tpu.memory_space<smem>>
    %9 = vector.broadcast %8 : f32 to vector<64x64xf32>
    %10 = arith.mulf %9, %1 : vector<64x64xf32>
    %c12 = arith.constant 12 : index
    %11 = memref.load %arg2[%c12] : memref<144xf32, #tpu.memory_space<smem>>
    %12 = vector.broadcast %11 : f32 to vector<64x64xf32>
    %13 = arith.mulf %12, %1 : vector<64x64xf32>
    %c0_4 = arith.constant 0 : index
    %c1 = arith.constant 1 : index
    %c0_5 = arith.constant 0 : index
    %c0_6 = arith.constant 0 : index
    %14 = vector.load %arg1[%c0_4, %c1, %c0_5, %c0_6] : memref<1x4x66x66xf32, #tpu.memory_space<vmem>>, vector<1x1x64x64xf32>
    %15 = vector.shape_cast %14 : vector<1x1x64x64xf32> to vector<64x64xf32>
    %c1_7 = arith.constant 1 : index
    %16 = memref.load %arg2[%c1_7] : memref<144xf32, #tpu.memory_space<smem>>
    %17 = vector.broadcast %16 : f32 to vector<64x64xf32>
    %18 = arith.mulf %17, %15 : vector<64x64xf32>
    %19 = arith.addf %4, %18 : vector<64x64xf32>
    %c5 = arith.constant 5 : index
    %20 = memref.load %arg2[%c5] : memref<144xf32, #tpu.memory_space<smem>>
    %21 = vector.broadcast %20 : f32 to vector<64x64xf32>
    %22 = arith.mulf %21, %15 : vector<64x64xf32>
    %23 = arith.addf %7, %22 : vector<64x64xf32>
    %c9 = arith.constant 9 : index
    %24 = memref.load %arg2[%c9] : memref<144xf32, #tpu.memory_space<smem>>
    %25 = vector.broadcast %24 : f32 to vector<64x64xf32>
    %26 = arith.mulf %25, %15 : vector<64x64xf32>
    %27 = arith.addf %10, %26 : vector<64x64xf32>
    %c13 = arith.constant 13 : index
    %28 = memref.load %arg2[%c13] : memref<144xf32, #tpu.memory_space<smem>>
    %29 = vector.broadcast %28 : f32 to vector<64x64xf32>
    %30 = arith.mulf %29, %15 : vector<64x64xf32>
    %31 = arith.addf %13, %30 : vector<64x64xf32>
    %c0_8 = arith.constant 0 : index
    %c2 = arith.constant 2 : index
    %c0_9 = arith.constant 0 : index
    %c0_10 = arith.constant 0 : index
    %32 = vector.load %arg1[%c0_8, %c2, %c0_9, %c0_10] : memref<1x4x66x66xf32, #tpu.memory_space<vmem>>, vector<1x1x64x64xf32>
    %33 = vector.shape_cast %32 : vector<1x1x64x64xf32> to vector<64x64xf32>
    %c2_11 = arith.constant 2 : index
    %34 = memref.load %arg2[%c2_11] : memref<144xf32, #tpu.memory_space<smem>>
    %35 = vector.broadcast %34 : f32 to vector<64x64xf32>
    %36 = arith.mulf %35, %33 : vector<64x64xf32>
    %37 = arith.addf %19, %36 : vector<64x64xf32>
    %c6 = arith.constant 6 : index
    %38 = memref.load %arg2[%c6] : memref<144xf32, #tpu.memory_space<smem>>
    %39 = vector.broadcast %38 : f32 to vector<64x64xf32>
    %40 = arith.mulf %39, %33 : vector<64x64xf32>
    %41 = arith.addf %23, %40 : vector<64x64xf32>
    %c10 = arith.constant 10 : index
    %42 = memref.load %arg2[%c10] : memref<144xf32, #tpu.memory_space<smem>>
    %43 = vector.broadcast %42 : f32 to vector<64x64xf32>
    %44 = arith.mulf %43, %33 : vector<64x64xf32>
    %45 = arith.addf %27, %44 : vector<64x64xf32>
    %c14 = arith.constant 14 : index
    %46 = memref.load %arg2[%c14] : memref<144xf32, #tpu.memory_space<smem>>
    %47 = vector.broadcast %46 : f32 to vector<64x64xf32>
    %48 = arith.mulf %47, %33 : vector<64x64xf32>
    %49 = arith.addf %31, %48 : vector<64x64xf32>
    %c0_12 = arith.constant 0 : index
    %c3 = arith.constant 3 : index
    %c0_13 = arith.constant 0 : index
    %c0_14 = arith.constant 0 : index
    %50 = vector.load %arg1[%c0_12, %c3, %c0_13, %c0_14] : memref<1x4x66x66xf32, #tpu.memory_space<vmem>>, vector<1x1x64x64xf32>
    %51 = vector.shape_cast %50 : vector<1x1x64x64xf32> to vector<64x64xf32>
    %c3_15 = arith.constant 3 : index
    %52 = memref.load %arg2[%c3_15] : memref<144xf32, #tpu.memory_space<smem>>
    %53 = vector.broadcast %52 : f32 to vector<64x64xf32>
    %54 = arith.mulf %53, %51 : vector<64x64xf32>
    %55 = arith.addf %37, %54 : vector<64x64xf32>
    %c7 = arith.constant 7 : index
    %56 = memref.load %arg2[%c7] : memref<144xf32, #tpu.memory_space<smem>>
    %57 = vector.broadcast %56 : f32 to vector<64x64xf32>
    %58 = arith.mulf %57, %51 : vector<64x64xf32>
    %59 = arith.addf %41, %58 : vector<64x64xf32>
    %c11 = arith.constant 11 : index
    %60 = memref.load %arg2[%c11] : memref<144xf32, #tpu.memory_space<smem>>
    %61 = vector.broadcast %60 : f32 to vector<64x64xf32>
    %62 = arith.mulf %61, %51 : vector<64x64xf32>
    %63 = arith.addf %45, %62 : vector<64x64xf32>
    %c15 = arith.constant 15 : index
    %64 = memref.load %arg2[%c15] : memref<144xf32, #tpu.memory_space<smem>>
    %65 = vector.broadcast %64 : f32 to vector<64x64xf32>
    %66 = arith.mulf %65, %51 : vector<64x64xf32>
    %67 = arith.addf %49, %66 : vector<64x64xf32>
    %c0_16 = arith.constant 0 : index
    %c0_17 = arith.constant 0 : index
    %c0_18 = arith.constant 0 : index
    %c1_19 = arith.constant 1 : index
    %68 = vector.load %arg1[%c0_16, %c0_17, %c0_18, %c1_19] : memref<1x4x66x66xf32, #tpu.memory_space<vmem>>, vector<1x1x64x64xf32>
    %69 = vector.shape_cast %68 : vector<1x1x64x64xf32> to vector<64x64xf32>
    %c16 = arith.constant 16 : index
    %70 = memref.load %arg2[%c16] : memref<144xf32, #tpu.memory_space<smem>>
    %71 = vector.broadcast %70 : f32 to vector<64x64xf32>
    %72 = arith.mulf %71, %69 : vector<64x64xf32>
    %73 = arith.addf %55, %72 : vector<64x64xf32>
    %c20 = arith.constant 20 : index
    %74 = memref.load %arg2[%c20] : memref<144xf32, #tpu.memory_space<smem>>
    %75 = vector.broadcast %74 : f32 to vector<64x64xf32>
    %76 = arith.mulf %75, %69 : vector<64x64xf32>
    %77 = arith.addf %59, %76 : vector<64x64xf32>
    %c24 = arith.constant 24 : index
    %78 = memref.load %arg2[%c24] : memref<144xf32, #tpu.memory_space<smem>>
    %79 = vector.broadcast %78 : f32 to vector<64x64xf32>
    %80 = arith.mulf %79, %69 : vector<64x64xf32>
    %81 = arith.addf %63, %80 : vector<64x64xf32>
    %c28 = arith.constant 28 : index
    %82 = memref.load %arg2[%c28] : memref<144xf32, #tpu.memory_space<smem>>
    %83 = vector.broadcast %82 : f32 to vector<64x64xf32>
    %84 = arith.mulf %83, %69 : vector<64x64xf32>
    %85 = arith.addf %67, %84 : vector<64x64xf32>
    %c0_20 = arith.constant 0 : index
    %c1_21 = arith.constant 1 : index
    %c0_22 = arith.constant 0 : index
    %c1_23 = arith.constant 1 : index
    %86 = vector.load %arg1[%c0_20, %c1_21, %c0_22, %c1_23] : memref<1x4x66x66xf32, #tpu.memory_space<vmem>>, vector<1x1x64x64xf32>
    %87 = vector.shape_cast %86 : vector<1x1x64x64xf32> to vector<64x64xf32>
    %c17 = arith.constant 17 : index
    %88 = memref.load %arg2[%c17] : memref<144xf32, #tpu.memory_space<smem>>
    %89 = vector.broadcast %88 : f32 to vector<64x64xf32>
    %90 = arith.mulf %89, %87 : vector<64x64xf32>
    %91 = arith.addf %73, %90 : vector<64x64xf32>
    %c21 = arith.constant 21 : index
    %92 = memref.load %arg2[%c21] : memref<144xf32, #tpu.memory_space<smem>>
    %93 = vector.broadcast %92 : f32 to vector<64x64xf32>
    %94 = arith.mulf %93, %87 : vector<64x64xf32>
    %95 = arith.addf %77, %94 : vector<64x64xf32>
    %c25 = arith.constant 25 : index
    %96 = memref.load %arg2[%c25] : memref<144xf32, #tpu.memory_space<smem>>
    %97 = vector.broadcast %96 : f32 to vector<64x64xf32>
    %98 = arith.mulf %97, %87 : vector<64x64xf32>
    %99 = arith.addf %81, %98 : vector<64x64xf32>
    %c29 = arith.constant 29 : index
    %100 = memref.load %arg2[%c29] : memref<144xf32, #tpu.memory_space<smem>>
    %101 = vector.broadcast %100 : f32 to vector<64x64xf32>
    %102 = arith.mulf %101, %87 : vector<64x64xf32>
    %103 = arith.addf %85, %102 : vector<64x64xf32>
    %c0_24 = arith.constant 0 : index
    %c2_25 = arith.constant 2 : index
    %c0_26 = arith.constant 0 : index
    %c1_27 = arith.constant 1 : index
    %104 = vector.load %arg1[%c0_24, %c2_25, %c0_26, %c1_27] : memref<1x4x66x66xf32, #tpu.memory_space<vmem>>, vector<1x1x64x64xf32>
    %105 = vector.shape_cast %104 : vector<1x1x64x64xf32> to vector<64x64xf32>
    %c18 = arith.constant 18 : index
    %106 = memref.load %arg2[%c18] : memref<144xf32, #tpu.memory_space<smem>>
    %107 = vector.broadcast %106 : f32 to vector<64x64xf32>
    %108 = arith.mulf %107, %105 : vector<64x64xf32>
    %109 = arith.addf %91, %108 : vector<64x64xf32>
    %c22 = arith.constant 22 : index
    %110 = memref.load %arg2[%c22] : memref<144xf32, #tpu.memory_space<smem>>
    %111 = vector.broadcast %110 : f32 to vector<64x64xf32>
    %112 = arith.mulf %111, %105 : vector<64x64xf32>
    %113 = arith.addf %95, %112 : vector<64x64xf32>
    %c26 = arith.constant 26 : index
    %114 = memref.load %arg2[%c26] : memref<144xf32, #tpu.memory_space<smem>>
    %115 = vector.broadcast %114 : f32 to vector<64x64xf32>
    %116 = arith.mulf %115, %105 : vector<64x64xf32>
    %117 = arith.addf %99, %116 : vector<64x64xf32>
    %c30 = arith.constant 30 : index
    %118 = memref.load %arg2[%c30] : memref<144xf32, #tpu.memory_space<smem>>
    %119 = vector.broadcast %118 : f32 to vector<64x64xf32>
    %120 = arith.mulf %119, %105 : vector<64x64xf32>
    %121 = arith.addf %103, %120 : vector<64x64xf32>
    %c0_28 = arith.constant 0 : index
    %c3_29 = arith.constant 3 : index
    %c0_30 = arith.constant 0 : index
    %c1_31 = arith.constant 1 : index
    %122 = vector.load %arg1[%c0_28, %c3_29, %c0_30, %c1_31] : memref<1x4x66x66xf32, #tpu.memory_space<vmem>>, vector<1x1x64x64xf32>
    %123 = vector.shape_cast %122 : vector<1x1x64x64xf32> to vector<64x64xf32>
    %c19 = arith.constant 19 : index
    %124 = memref.load %arg2[%c19] : memref<144xf32, #tpu.memory_space<smem>>
    %125 = vector.broadcast %124 : f32 to vector<64x64xf32>
    %126 = arith.mulf %125, %123 : vector<64x64xf32>
    %127 = arith.addf %109, %126 : vector<64x64xf32>
    %c23 = arith.constant 23 : index
    %128 = memref.load %arg2[%c23] : memref<144xf32, #tpu.memory_space<smem>>
    %129 = vector.broadcast %128 : f32 to vector<64x64xf32>
    %130 = arith.mulf %129, %123 : vector<64x64xf32>
    %131 = arith.addf %113, %130 : vector<64x64xf32>
    %c27 = arith.constant 27 : index
    %132 = memref.load %arg2[%c27] : memref<144xf32, #tpu.memory_space<smem>>
    %133 = vector.broadcast %132 : f32 to vector<64x64xf32>
    %134 = arith.mulf %133, %123 : vector<64x64xf32>
    %135 = arith.addf %117, %134 : vector<64x64xf32>
    %c31 = arith.constant 31 : index
    %136 = memref.load %arg2[%c31] : memref<144xf32, #tpu.memory_space<smem>>
    %137 = vector.broadcast %136 : f32 to vector<64x64xf32>
    %138 = arith.mulf %137, %123 : vector<64x64xf32>
    %139 = arith.addf %121, %138 : vector<64x64xf32>
    %c0_32 = arith.constant 0 : index
    %c0_33 = arith.constant 0 : index
    %c0_34 = arith.constant 0 : index
    %c2_35 = arith.constant 2 : index
    %140 = vector.load %arg1[%c0_32, %c0_33, %c0_34, %c2_35] : memref<1x4x66x66xf32, #tpu.memory_space<vmem>>, vector<1x1x64x64xf32>
    %141 = vector.shape_cast %140 : vector<1x1x64x64xf32> to vector<64x64xf32>
    %c32 = arith.constant 32 : index
    %142 = memref.load %arg2[%c32] : memref<144xf32, #tpu.memory_space<smem>>
    %143 = vector.broadcast %142 : f32 to vector<64x64xf32>
    %144 = arith.mulf %143, %141 : vector<64x64xf32>
    %145 = arith.addf %127, %144 : vector<64x64xf32>
    %c36 = arith.constant 36 : index
    %146 = memref.load %arg2[%c36] : memref<144xf32, #tpu.memory_space<smem>>
    %147 = vector.broadcast %146 : f32 to vector<64x64xf32>
    %148 = arith.mulf %147, %141 : vector<64x64xf32>
    %149 = arith.addf %131, %148 : vector<64x64xf32>
    %c40 = arith.constant 40 : index
    %150 = memref.load %arg2[%c40] : memref<144xf32, #tpu.memory_space<smem>>
    %151 = vector.broadcast %150 : f32 to vector<64x64xf32>
    %152 = arith.mulf %151, %141 : vector<64x64xf32>
    %153 = arith.addf %135, %152 : vector<64x64xf32>
    %c44 = arith.constant 44 : index
    %154 = memref.load %arg2[%c44] : memref<144xf32, #tpu.memory_space<smem>>
    %155 = vector.broadcast %154 : f32 to vector<64x64xf32>
    %156 = arith.mulf %155, %141 : vector<64x64xf32>
    %157 = arith.addf %139, %156 : vector<64x64xf32>
    %c0_36 = arith.constant 0 : index
    %c1_37 = arith.constant 1 : index
    %c0_38 = arith.constant 0 : index
    %c2_39 = arith.constant 2 : index
    %158 = vector.load %arg1[%c0_36, %c1_37, %c0_38, %c2_39] : memref<1x4x66x66xf32, #tpu.memory_space<vmem>>, vector<1x1x64x64xf32>
    %159 = vector.shape_cast %158 : vector<1x1x64x64xf32> to vector<64x64xf32>
    %c33 = arith.constant 33 : index
    %160 = memref.load %arg2[%c33] : memref<144xf32, #tpu.memory_space<smem>>
    %161 = vector.broadcast %160 : f32 to vector<64x64xf32>
    %162 = arith.mulf %161, %159 : vector<64x64xf32>
    %163 = arith.addf %145, %162 : vector<64x64xf32>
    %c37 = arith.constant 37 : index
    %164 = memref.load %arg2[%c37] : memref<144xf32, #tpu.memory_space<smem>>
    %165 = vector.broadcast %164 : f32 to vector<64x64xf32>
    %166 = arith.mulf %165, %159 : vector<64x64xf32>
    %167 = arith.addf %149, %166 : vector<64x64xf32>
    %c41 = arith.constant 41 : index
    %168 = memref.load %arg2[%c41] : memref<144xf32, #tpu.memory_space<smem>>
    %169 = vector.broadcast %168 : f32 to vector<64x64xf32>
    %170 = arith.mulf %169, %159 : vector<64x64xf32>
    %171 = arith.addf %153, %170 : vector<64x64xf32>
    %c45 = arith.constant 45 : index
    %172 = memref.load %arg2[%c45] : memref<144xf32, #tpu.memory_space<smem>>
    %173 = vector.broadcast %172 : f32 to vector<64x64xf32>
    %174 = arith.mulf %173, %159 : vector<64x64xf32>
    %175 = arith.addf %157, %174 : vector<64x64xf32>
    %c0_40 = arith.constant 0 : index
    %c2_41 = arith.constant 2 : index
    %c0_42 = arith.constant 0 : index
    %c2_43 = arith.constant 2 : index
    %176 = vector.load %arg1[%c0_40, %c2_41, %c0_42, %c2_43] : memref<1x4x66x66xf32, #tpu.memory_space<vmem>>, vector<1x1x64x64xf32>
    %177 = vector.shape_cast %176 : vector<1x1x64x64xf32> to vector<64x64xf32>
    %c34 = arith.constant 34 : index
    %178 = memref.load %arg2[%c34] : memref<144xf32, #tpu.memory_space<smem>>
    %179 = vector.broadcast %178 : f32 to vector<64x64xf32>
    %180 = arith.mulf %179, %177 : vector<64x64xf32>
    %181 = arith.addf %163, %180 : vector<64x64xf32>
    %c38 = arith.constant 38 : index
    %182 = memref.load %arg2[%c38] : memref<144xf32, #tpu.memory_space<smem>>
    %183 = vector.broadcast %182 : f32 to vector<64x64xf32>
    %184 = arith.mulf %183, %177 : vector<64x64xf32>
    %185 = arith.addf %167, %184 : vector<64x64xf32>
    %c42 = arith.constant 42 : index
    %186 = memref.load %arg2[%c42] : memref<144xf32, #tpu.memory_space<smem>>
    %187 = vector.broadcast %186 : f32 to vector<64x64xf32>
    %188 = arith.mulf %187, %177 : vector<64x64xf32>
    %189 = arith.addf %171, %188 : vector<64x64xf32>
    %c46 = arith.constant 46 : index
    %190 = memref.load %arg2[%c46] : memref<144xf32, #tpu.memory_space<smem>>
    %191 = vector.broadcast %190 : f32 to vector<64x64xf32>
    %192 = arith.mulf %191, %177 : vector<64x64xf32>
    %193 = arith.addf %175, %192 : vector<64x64xf32>
    %c0_44 = arith.constant 0 : index
    %c3_45 = arith.constant 3 : index
    %c0_46 = arith.constant 0 : index
    %c2_47 = arith.constant 2 : index
    %194 = vector.load %arg1[%c0_44, %c3_45, %c0_46, %c2_47] : memref<1x4x66x66xf32, #tpu.memory_space<vmem>>, vector<1x1x64x64xf32>
    %195 = vector.shape_cast %194 : vector<1x1x64x64xf32> to vector<64x64xf32>
    %c35 = arith.constant 35 : index
    %196 = memref.load %arg2[%c35] : memref<144xf32, #tpu.memory_space<smem>>
    %197 = vector.broadcast %196 : f32 to vector<64x64xf32>
    %198 = arith.mulf %197, %195 : vector<64x64xf32>
    %199 = arith.addf %181, %198 : vector<64x64xf32>
    %c39 = arith.constant 39 : index
    %200 = memref.load %arg2[%c39] : memref<144xf32, #tpu.memory_space<smem>>
    %201 = vector.broadcast %200 : f32 to vector<64x64xf32>
    %202 = arith.mulf %201, %195 : vector<64x64xf32>
    %203 = arith.addf %185, %202 : vector<64x64xf32>
    %c43 = arith.constant 43 : index
    %204 = memref.load %arg2[%c43] : memref<144xf32, #tpu.memory_space<smem>>
    %205 = vector.broadcast %204 : f32 to vector<64x64xf32>
    %206 = arith.mulf %205, %195 : vector<64x64xf32>
    %207 = arith.addf %189, %206 : vector<64x64xf32>
    %c47 = arith.constant 47 : index
    %208 = memref.load %arg2[%c47] : memref<144xf32, #tpu.memory_space<smem>>
    %209 = vector.broadcast %208 : f32 to vector<64x64xf32>
    %210 = arith.mulf %209, %195 : vector<64x64xf32>
    %211 = arith.addf %193, %210 : vector<64x64xf32>
    %c0_48 = arith.constant 0 : index
    %c0_49 = arith.constant 0 : index
    %c1_50 = arith.constant 1 : index
    %c0_51 = arith.constant 0 : index
    %212 = vector.load %arg1[%c0_48, %c0_49, %c1_50, %c0_51] : memref<1x4x66x66xf32, #tpu.memory_space<vmem>>, vector<1x1x64x64xf32>
    %213 = vector.shape_cast %212 : vector<1x1x64x64xf32> to vector<64x64xf32>
    %c48 = arith.constant 48 : index
    %214 = memref.load %arg2[%c48] : memref<144xf32, #tpu.memory_space<smem>>
    %215 = vector.broadcast %214 : f32 to vector<64x64xf32>
    %216 = arith.mulf %215, %213 : vector<64x64xf32>
    %217 = arith.addf %199, %216 : vector<64x64xf32>
    %c52 = arith.constant 52 : index
    %218 = memref.load %arg2[%c52] : memref<144xf32, #tpu.memory_space<smem>>
    %219 = vector.broadcast %218 : f32 to vector<64x64xf32>
    %220 = arith.mulf %219, %213 : vector<64x64xf32>
    %221 = arith.addf %203, %220 : vector<64x64xf32>
    %c56 = arith.constant 56 : index
    %222 = memref.load %arg2[%c56] : memref<144xf32, #tpu.memory_space<smem>>
    %223 = vector.broadcast %222 : f32 to vector<64x64xf32>
    %224 = arith.mulf %223, %213 : vector<64x64xf32>
    %225 = arith.addf %207, %224 : vector<64x64xf32>
    %c60 = arith.constant 60 : index
    %226 = memref.load %arg2[%c60] : memref<144xf32, #tpu.memory_space<smem>>
    %227 = vector.broadcast %226 : f32 to vector<64x64xf32>
    %228 = arith.mulf %227, %213 : vector<64x64xf32>
    %229 = arith.addf %211, %228 : vector<64x64xf32>
    %c0_52 = arith.constant 0 : index
    %c1_53 = arith.constant 1 : index
    %c1_54 = arith.constant 1 : index
    %c0_55 = arith.constant 0 : index
    %230 = vector.load %arg1[%c0_52, %c1_53, %c1_54, %c0_55] : memref<1x4x66x66xf32, #tpu.memory_space<vmem>>, vector<1x1x64x64xf32>
    %231 = vector.shape_cast %230 : vector<1x1x64x64xf32> to vector<64x64xf32>
    %c49 = arith.constant 49 : index
    %232 = memref.load %arg2[%c49] : memref<144xf32, #tpu.memory_space<smem>>
    %233 = vector.broadcast %232 : f32 to vector<64x64xf32>
    %234 = arith.mulf %233, %231 : vector<64x64xf32>
    %235 = arith.addf %217, %234 : vector<64x64xf32>
    %c53 = arith.constant 53 : index
    %236 = memref.load %arg2[%c53] : memref<144xf32, #tpu.memory_space<smem>>
    %237 = vector.broadcast %236 : f32 to vector<64x64xf32>
    %238 = arith.mulf %237, %231 : vector<64x64xf32>
    %239 = arith.addf %221, %238 : vector<64x64xf32>
    %c57 = arith.constant 57 : index
    %240 = memref.load %arg2[%c57] : memref<144xf32, #tpu.memory_space<smem>>
    %241 = vector.broadcast %240 : f32 to vector<64x64xf32>
    %242 = arith.mulf %241, %231 : vector<64x64xf32>
    %243 = arith.addf %225, %242 : vector<64x64xf32>
    %c61 = arith.constant 61 : index
    %244 = memref.load %arg2[%c61] : memref<144xf32, #tpu.memory_space<smem>>
    %245 = vector.broadcast %244 : f32 to vector<64x64xf32>
    %246 = arith.mulf %245, %231 : vector<64x64xf32>
    %247 = arith.addf %229, %246 : vector<64x64xf32>
    %c0_56 = arith.constant 0 : index
    %c2_57 = arith.constant 2 : index
    %c1_58 = arith.constant 1 : index
    %c0_59 = arith.constant 0 : index
    %248 = vector.load %arg1[%c0_56, %c2_57, %c1_58, %c0_59] : memref<1x4x66x66xf32, #tpu.memory_space<vmem>>, vector<1x1x64x64xf32>
    %249 = vector.shape_cast %248 : vector<1x1x64x64xf32> to vector<64x64xf32>
    %c50 = arith.constant 50 : index
    %250 = memref.load %arg2[%c50] : memref<144xf32, #tpu.memory_space<smem>>
    %251 = vector.broadcast %250 : f32 to vector<64x64xf32>
    %252 = arith.mulf %251, %249 : vector<64x64xf32>
    %253 = arith.addf %235, %252 : vector<64x64xf32>
    %c54 = arith.constant 54 : index
    %254 = memref.load %arg2[%c54] : memref<144xf32, #tpu.memory_space<smem>>
    %255 = vector.broadcast %254 : f32 to vector<64x64xf32>
    %256 = arith.mulf %255, %249 : vector<64x64xf32>
    %257 = arith.addf %239, %256 : vector<64x64xf32>
    %c58 = arith.constant 58 : index
    %258 = memref.load %arg2[%c58] : memref<144xf32, #tpu.memory_space<smem>>
    %259 = vector.broadcast %258 : f32 to vector<64x64xf32>
    %260 = arith.mulf %259, %249 : vector<64x64xf32>
    %261 = arith.addf %243, %260 : vector<64x64xf32>
    %c62 = arith.constant 62 : index
    %262 = memref.load %arg2[%c62] : memref<144xf32, #tpu.memory_space<smem>>
    %263 = vector.broadcast %262 : f32 to vector<64x64xf32>
    %264 = arith.mulf %263, %249 : vector<64x64xf32>
    %265 = arith.addf %247, %264 : vector<64x64xf32>
    %c0_60 = arith.constant 0 : index
    %c3_61 = arith.constant 3 : index
    %c1_62 = arith.constant 1 : index
    %c0_63 = arith.constant 0 : index
    %266 = vector.load %arg1[%c0_60, %c3_61, %c1_62, %c0_63] : memref<1x4x66x66xf32, #tpu.memory_space<vmem>>, vector<1x1x64x64xf32>
    %267 = vector.shape_cast %266 : vector<1x1x64x64xf32> to vector<64x64xf32>
    %c51 = arith.constant 51 : index
    %268 = memref.load %arg2[%c51] : memref<144xf32, #tpu.memory_space<smem>>
    %269 = vector.broadcast %268 : f32 to vector<64x64xf32>
    %270 = arith.mulf %269, %267 : vector<64x64xf32>
    %271 = arith.addf %253, %270 : vector<64x64xf32>
    %c55 = arith.constant 55 : index
    %272 = memref.load %arg2[%c55] : memref<144xf32, #tpu.memory_space<smem>>
    %273 = vector.broadcast %272 : f32 to vector<64x64xf32>
    %274 = arith.mulf %273, %267 : vector<64x64xf32>
    %275 = arith.addf %257, %274 : vector<64x64xf32>
    %c59 = arith.constant 59 : index
    %276 = memref.load %arg2[%c59] : memref<144xf32, #tpu.memory_space<smem>>
    %277 = vector.broadcast %276 : f32 to vector<64x64xf32>
    %278 = arith.mulf %277, %267 : vector<64x64xf32>
    %279 = arith.addf %261, %278 : vector<64x64xf32>
    %c63 = arith.constant 63 : index
    %280 = memref.load %arg2[%c63] : memref<144xf32, #tpu.memory_space<smem>>
    %281 = vector.broadcast %280 : f32 to vector<64x64xf32>
    %282 = arith.mulf %281, %267 : vector<64x64xf32>
    %283 = arith.addf %265, %282 : vector<64x64xf32>
    %c0_64 = arith.constant 0 : index
    %c0_65 = arith.constant 0 : index
    %c1_66 = arith.constant 1 : index
    %c1_67 = arith.constant 1 : index
    %284 = vector.load %arg1[%c0_64, %c0_65, %c1_66, %c1_67] : memref<1x4x66x66xf32, #tpu.memory_space<vmem>>, vector<1x1x64x64xf32>
    %285 = vector.shape_cast %284 : vector<1x1x64x64xf32> to vector<64x64xf32>
    %c64 = arith.constant 64 : index
    %286 = memref.load %arg2[%c64] : memref<144xf32, #tpu.memory_space<smem>>
    %287 = vector.broadcast %286 : f32 to vector<64x64xf32>
    %288 = arith.mulf %287, %285 : vector<64x64xf32>
    %289 = arith.addf %271, %288 : vector<64x64xf32>
    %c68 = arith.constant 68 : index
    %290 = memref.load %arg2[%c68] : memref<144xf32, #tpu.memory_space<smem>>
    %291 = vector.broadcast %290 : f32 to vector<64x64xf32>
    %292 = arith.mulf %291, %285 : vector<64x64xf32>
    %293 = arith.addf %275, %292 : vector<64x64xf32>
    %c72 = arith.constant 72 : index
    %294 = memref.load %arg2[%c72] : memref<144xf32, #tpu.memory_space<smem>>
    %295 = vector.broadcast %294 : f32 to vector<64x64xf32>
    %296 = arith.mulf %295, %285 : vector<64x64xf32>
    %297 = arith.addf %279, %296 : vector<64x64xf32>
    %c76 = arith.constant 76 : index
    %298 = memref.load %arg2[%c76] : memref<144xf32, #tpu.memory_space<smem>>
    %299 = vector.broadcast %298 : f32 to vector<64x64xf32>
    %300 = arith.mulf %299, %285 : vector<64x64xf32>
    %301 = arith.addf %283, %300 : vector<64x64xf32>
    %c0_68 = arith.constant 0 : index
    %c1_69 = arith.constant 1 : index
    %c1_70 = arith.constant 1 : index
    %c1_71 = arith.constant 1 : index
    %302 = vector.load %arg1[%c0_68, %c1_69, %c1_70, %c1_71] : memref<1x4x66x66xf32, #tpu.memory_space<vmem>>, vector<1x1x64x64xf32>
    %303 = vector.shape_cast %302 : vector<1x1x64x64xf32> to vector<64x64xf32>
    %c65 = arith.constant 65 : index
    %304 = memref.load %arg2[%c65] : memref<144xf32, #tpu.memory_space<smem>>
    %305 = vector.broadcast %304 : f32 to vector<64x64xf32>
    %306 = arith.mulf %305, %303 : vector<64x64xf32>
    %307 = arith.addf %289, %306 : vector<64x64xf32>
    %c69 = arith.constant 69 : index
    %308 = memref.load %arg2[%c69] : memref<144xf32, #tpu.memory_space<smem>>
    %309 = vector.broadcast %308 : f32 to vector<64x64xf32>
    %310 = arith.mulf %309, %303 : vector<64x64xf32>
    %311 = arith.addf %293, %310 : vector<64x64xf32>
    %c73 = arith.constant 73 : index
    %312 = memref.load %arg2[%c73] : memref<144xf32, #tpu.memory_space<smem>>
    %313 = vector.broadcast %312 : f32 to vector<64x64xf32>
    %314 = arith.mulf %313, %303 : vector<64x64xf32>
    %315 = arith.addf %297, %314 : vector<64x64xf32>
    %c77 = arith.constant 77 : index
    %316 = memref.load %arg2[%c77] : memref<144xf32, #tpu.memory_space<smem>>
    %317 = vector.broadcast %316 : f32 to vector<64x64xf32>
    %318 = arith.mulf %317, %303 : vector<64x64xf32>
    %319 = arith.addf %301, %318 : vector<64x64xf32>
    %c0_72 = arith.constant 0 : index
    %c2_73 = arith.constant 2 : index
    %c1_74 = arith.constant 1 : index
    %c1_75 = arith.constant 1 : index
    %320 = vector.load %arg1[%c0_72, %c2_73, %c1_74, %c1_75] : memref<1x4x66x66xf32, #tpu.memory_space<vmem>>, vector<1x1x64x64xf32>
    %321 = vector.shape_cast %320 : vector<1x1x64x64xf32> to vector<64x64xf32>
    %c66 = arith.constant 66 : index
    %322 = memref.load %arg2[%c66] : memref<144xf32, #tpu.memory_space<smem>>
    %323 = vector.broadcast %322 : f32 to vector<64x64xf32>
    %324 = arith.mulf %323, %321 : vector<64x64xf32>
    %325 = arith.addf %307, %324 : vector<64x64xf32>
    %c70 = arith.constant 70 : index
    %326 = memref.load %arg2[%c70] : memref<144xf32, #tpu.memory_space<smem>>
    %327 = vector.broadcast %326 : f32 to vector<64x64xf32>
    %328 = arith.mulf %327, %321 : vector<64x64xf32>
    %329 = arith.addf %311, %328 : vector<64x64xf32>
    %c74 = arith.constant 74 : index
    %330 = memref.load %arg2[%c74] : memref<144xf32, #tpu.memory_space<smem>>
    %331 = vector.broadcast %330 : f32 to vector<64x64xf32>
    %332 = arith.mulf %331, %321 : vector<64x64xf32>
    %333 = arith.addf %315, %332 : vector<64x64xf32>
    %c78 = arith.constant 78 : index
    %334 = memref.load %arg2[%c78] : memref<144xf32, #tpu.memory_space<smem>>
    %335 = vector.broadcast %334 : f32 to vector<64x64xf32>
    %336 = arith.mulf %335, %321 : vector<64x64xf32>
    %337 = arith.addf %319, %336 : vector<64x64xf32>
    %c0_76 = arith.constant 0 : index
    %c3_77 = arith.constant 3 : index
    %c1_78 = arith.constant 1 : index
    %c1_79 = arith.constant 1 : index
    %338 = vector.load %arg1[%c0_76, %c3_77, %c1_78, %c1_79] : memref<1x4x66x66xf32, #tpu.memory_space<vmem>>, vector<1x1x64x64xf32>
    %339 = vector.shape_cast %338 : vector<1x1x64x64xf32> to vector<64x64xf32>
    %c67 = arith.constant 67 : index
    %340 = memref.load %arg2[%c67] : memref<144xf32, #tpu.memory_space<smem>>
    %341 = vector.broadcast %340 : f32 to vector<64x64xf32>
    %342 = arith.mulf %341, %339 : vector<64x64xf32>
    %343 = arith.addf %325, %342 : vector<64x64xf32>
    %c71 = arith.constant 71 : index
    %344 = memref.load %arg2[%c71] : memref<144xf32, #tpu.memory_space<smem>>
    %345 = vector.broadcast %344 : f32 to vector<64x64xf32>
    %346 = arith.mulf %345, %339 : vector<64x64xf32>
    %347 = arith.addf %329, %346 : vector<64x64xf32>
    %c75 = arith.constant 75 : index
    %348 = memref.load %arg2[%c75] : memref<144xf32, #tpu.memory_space<smem>>
    %349 = vector.broadcast %348 : f32 to vector<64x64xf32>
    %350 = arith.mulf %349, %339 : vector<64x64xf32>
    %351 = arith.addf %333, %350 : vector<64x64xf32>
    %c79 = arith.constant 79 : index
    %352 = memref.load %arg2[%c79] : memref<144xf32, #tpu.memory_space<smem>>
    %353 = vector.broadcast %352 : f32 to vector<64x64xf32>
    %354 = arith.mulf %353, %339 : vector<64x64xf32>
    %355 = arith.addf %337, %354 : vector<64x64xf32>
    %c0_80 = arith.constant 0 : index
    %c0_81 = arith.constant 0 : index
    %c1_82 = arith.constant 1 : index
    %c2_83 = arith.constant 2 : index
    %356 = vector.load %arg1[%c0_80, %c0_81, %c1_82, %c2_83] : memref<1x4x66x66xf32, #tpu.memory_space<vmem>>, vector<1x1x64x64xf32>
    %357 = vector.shape_cast %356 : vector<1x1x64x64xf32> to vector<64x64xf32>
    %c80 = arith.constant 80 : index
    %358 = memref.load %arg2[%c80] : memref<144xf32, #tpu.memory_space<smem>>
    %359 = vector.broadcast %358 : f32 to vector<64x64xf32>
    %360 = arith.mulf %359, %357 : vector<64x64xf32>
    %361 = arith.addf %343, %360 : vector<64x64xf32>
    %c84 = arith.constant 84 : index
    %362 = memref.load %arg2[%c84] : memref<144xf32, #tpu.memory_space<smem>>
    %363 = vector.broadcast %362 : f32 to vector<64x64xf32>
    %364 = arith.mulf %363, %357 : vector<64x64xf32>
    %365 = arith.addf %347, %364 : vector<64x64xf32>
    %c88 = arith.constant 88 : index
    %366 = memref.load %arg2[%c88] : memref<144xf32, #tpu.memory_space<smem>>
    %367 = vector.broadcast %366 : f32 to vector<64x64xf32>
    %368 = arith.mulf %367, %357 : vector<64x64xf32>
    %369 = arith.addf %351, %368 : vector<64x64xf32>
    %c92 = arith.constant 92 : index
    %370 = memref.load %arg2[%c92] : memref<144xf32, #tpu.memory_space<smem>>
    %371 = vector.broadcast %370 : f32 to vector<64x64xf32>
    %372 = arith.mulf %371, %357 : vector<64x64xf32>
    %373 = arith.addf %355, %372 : vector<64x64xf32>
    %c0_84 = arith.constant 0 : index
    %c1_85 = arith.constant 1 : index
    %c1_86 = arith.constant 1 : index
    %c2_87 = arith.constant 2 : index
    %374 = vector.load %arg1[%c0_84, %c1_85, %c1_86, %c2_87] : memref<1x4x66x66xf32, #tpu.memory_space<vmem>>, vector<1x1x64x64xf32>
    %375 = vector.shape_cast %374 : vector<1x1x64x64xf32> to vector<64x64xf32>
    %c81 = arith.constant 81 : index
    %376 = memref.load %arg2[%c81] : memref<144xf32, #tpu.memory_space<smem>>
    %377 = vector.broadcast %376 : f32 to vector<64x64xf32>
    %378 = arith.mulf %377, %375 : vector<64x64xf32>
    %379 = arith.addf %361, %378 : vector<64x64xf32>
    %c85 = arith.constant 85 : index
    %380 = memref.load %arg2[%c85] : memref<144xf32, #tpu.memory_space<smem>>
    %381 = vector.broadcast %380 : f32 to vector<64x64xf32>
    %382 = arith.mulf %381, %375 : vector<64x64xf32>
    %383 = arith.addf %365, %382 : vector<64x64xf32>
    %c89 = arith.constant 89 : index
    %384 = memref.load %arg2[%c89] : memref<144xf32, #tpu.memory_space<smem>>
    %385 = vector.broadcast %384 : f32 to vector<64x64xf32>
    %386 = arith.mulf %385, %375 : vector<64x64xf32>
    %387 = arith.addf %369, %386 : vector<64x64xf32>
    %c93 = arith.constant 93 : index
    %388 = memref.load %arg2[%c93] : memref<144xf32, #tpu.memory_space<smem>>
    %389 = vector.broadcast %388 : f32 to vector<64x64xf32>
    %390 = arith.mulf %389, %375 : vector<64x64xf32>
    %391 = arith.addf %373, %390 : vector<64x64xf32>
    %c0_88 = arith.constant 0 : index
    %c2_89 = arith.constant 2 : index
    %c1_90 = arith.constant 1 : index
    %c2_91 = arith.constant 2 : index
    %392 = vector.load %arg1[%c0_88, %c2_89, %c1_90, %c2_91] : memref<1x4x66x66xf32, #tpu.memory_space<vmem>>, vector<1x1x64x64xf32>
    %393 = vector.shape_cast %392 : vector<1x1x64x64xf32> to vector<64x64xf32>
    %c82 = arith.constant 82 : index
    %394 = memref.load %arg2[%c82] : memref<144xf32, #tpu.memory_space<smem>>
    %395 = vector.broadcast %394 : f32 to vector<64x64xf32>
    %396 = arith.mulf %395, %393 : vector<64x64xf32>
    %397 = arith.addf %379, %396 : vector<64x64xf32>
    %c86 = arith.constant 86 : index
    %398 = memref.load %arg2[%c86] : memref<144xf32, #tpu.memory_space<smem>>
    %399 = vector.broadcast %398 : f32 to vector<64x64xf32>
    %400 = arith.mulf %399, %393 : vector<64x64xf32>
    %401 = arith.addf %383, %400 : vector<64x64xf32>
    %c90 = arith.constant 90 : index
    %402 = memref.load %arg2[%c90] : memref<144xf32, #tpu.memory_space<smem>>
    %403 = vector.broadcast %402 : f32 to vector<64x64xf32>
    %404 = arith.mulf %403, %393 : vector<64x64xf32>
    %405 = arith.addf %387, %404 : vector<64x64xf32>
    %c94 = arith.constant 94 : index
    %406 = memref.load %arg2[%c94] : memref<144xf32, #tpu.memory_space<smem>>
    %407 = vector.broadcast %406 : f32 to vector<64x64xf32>
    %408 = arith.mulf %407, %393 : vector<64x64xf32>
    %409 = arith.addf %391, %408 : vector<64x64xf32>
    %c0_92 = arith.constant 0 : index
    %c3_93 = arith.constant 3 : index
    %c1_94 = arith.constant 1 : index
    %c2_95 = arith.constant 2 : index
    %410 = vector.load %arg1[%c0_92, %c3_93, %c1_94, %c2_95] : memref<1x4x66x66xf32, #tpu.memory_space<vmem>>, vector<1x1x64x64xf32>
    %411 = vector.shape_cast %410 : vector<1x1x64x64xf32> to vector<64x64xf32>
    %c83 = arith.constant 83 : index
    %412 = memref.load %arg2[%c83] : memref<144xf32, #tpu.memory_space<smem>>
    %413 = vector.broadcast %412 : f32 to vector<64x64xf32>
    %414 = arith.mulf %413, %411 : vector<64x64xf32>
    %415 = arith.addf %397, %414 : vector<64x64xf32>
    %c87 = arith.constant 87 : index
    %416 = memref.load %arg2[%c87] : memref<144xf32, #tpu.memory_space<smem>>
    %417 = vector.broadcast %416 : f32 to vector<64x64xf32>
    %418 = arith.mulf %417, %411 : vector<64x64xf32>
    %419 = arith.addf %401, %418 : vector<64x64xf32>
    %c91 = arith.constant 91 : index
    %420 = memref.load %arg2[%c91] : memref<144xf32, #tpu.memory_space<smem>>
    %421 = vector.broadcast %420 : f32 to vector<64x64xf32>
    %422 = arith.mulf %421, %411 : vector<64x64xf32>
    %423 = arith.addf %405, %422 : vector<64x64xf32>
    %c95 = arith.constant 95 : index
    %424 = memref.load %arg2[%c95] : memref<144xf32, #tpu.memory_space<smem>>
    %425 = vector.broadcast %424 : f32 to vector<64x64xf32>
    %426 = arith.mulf %425, %411 : vector<64x64xf32>
    %427 = arith.addf %409, %426 : vector<64x64xf32>
    %c0_96 = arith.constant 0 : index
    %c0_97 = arith.constant 0 : index
    %c2_98 = arith.constant 2 : index
    %c0_99 = arith.constant 0 : index
    %428 = vector.load %arg1[%c0_96, %c0_97, %c2_98, %c0_99] : memref<1x4x66x66xf32, #tpu.memory_space<vmem>>, vector<1x1x64x64xf32>
    %429 = vector.shape_cast %428 : vector<1x1x64x64xf32> to vector<64x64xf32>
    %c96 = arith.constant 96 : index
    %430 = memref.load %arg2[%c96] : memref<144xf32, #tpu.memory_space<smem>>
    %431 = vector.broadcast %430 : f32 to vector<64x64xf32>
    %432 = arith.mulf %431, %429 : vector<64x64xf32>
    %433 = arith.addf %415, %432 : vector<64x64xf32>
    %c100 = arith.constant 100 : index
    %434 = memref.load %arg2[%c100] : memref<144xf32, #tpu.memory_space<smem>>
    %435 = vector.broadcast %434 : f32 to vector<64x64xf32>
    %436 = arith.mulf %435, %429 : vector<64x64xf32>
    %437 = arith.addf %419, %436 : vector<64x64xf32>
    %c104 = arith.constant 104 : index
    %438 = memref.load %arg2[%c104] : memref<144xf32, #tpu.memory_space<smem>>
    %439 = vector.broadcast %438 : f32 to vector<64x64xf32>
    %440 = arith.mulf %439, %429 : vector<64x64xf32>
    %441 = arith.addf %423, %440 : vector<64x64xf32>
    %c108 = arith.constant 108 : index
    %442 = memref.load %arg2[%c108] : memref<144xf32, #tpu.memory_space<smem>>
    %443 = vector.broadcast %442 : f32 to vector<64x64xf32>
    %444 = arith.mulf %443, %429 : vector<64x64xf32>
    %445 = arith.addf %427, %444 : vector<64x64xf32>
    %c0_100 = arith.constant 0 : index
    %c1_101 = arith.constant 1 : index
    %c2_102 = arith.constant 2 : index
    %c0_103 = arith.constant 0 : index
    %446 = vector.load %arg1[%c0_100, %c1_101, %c2_102, %c0_103] : memref<1x4x66x66xf32, #tpu.memory_space<vmem>>, vector<1x1x64x64xf32>
    %447 = vector.shape_cast %446 : vector<1x1x64x64xf32> to vector<64x64xf32>
    %c97 = arith.constant 97 : index
    %448 = memref.load %arg2[%c97] : memref<144xf32, #tpu.memory_space<smem>>
    %449 = vector.broadcast %448 : f32 to vector<64x64xf32>
    %450 = arith.mulf %449, %447 : vector<64x64xf32>
    %451 = arith.addf %433, %450 : vector<64x64xf32>
    %c101 = arith.constant 101 : index
    %452 = memref.load %arg2[%c101] : memref<144xf32, #tpu.memory_space<smem>>
    %453 = vector.broadcast %452 : f32 to vector<64x64xf32>
    %454 = arith.mulf %453, %447 : vector<64x64xf32>
    %455 = arith.addf %437, %454 : vector<64x64xf32>
    %c105 = arith.constant 105 : index
    %456 = memref.load %arg2[%c105] : memref<144xf32, #tpu.memory_space<smem>>
    %457 = vector.broadcast %456 : f32 to vector<64x64xf32>
    %458 = arith.mulf %457, %447 : vector<64x64xf32>
    %459 = arith.addf %441, %458 : vector<64x64xf32>
    %c109 = arith.constant 109 : index
    %460 = memref.load %arg2[%c109] : memref<144xf32, #tpu.memory_space<smem>>
    %461 = vector.broadcast %460 : f32 to vector<64x64xf32>
    %462 = arith.mulf %461, %447 : vector<64x64xf32>
    %463 = arith.addf %445, %462 : vector<64x64xf32>
    %c0_104 = arith.constant 0 : index
    %c2_105 = arith.constant 2 : index
    %c2_106 = arith.constant 2 : index
    %c0_107 = arith.constant 0 : index
    %464 = vector.load %arg1[%c0_104, %c2_105, %c2_106, %c0_107] : memref<1x4x66x66xf32, #tpu.memory_space<vmem>>, vector<1x1x64x64xf32>
    %465 = vector.shape_cast %464 : vector<1x1x64x64xf32> to vector<64x64xf32>
    %c98 = arith.constant 98 : index
    %466 = memref.load %arg2[%c98] : memref<144xf32, #tpu.memory_space<smem>>
    %467 = vector.broadcast %466 : f32 to vector<64x64xf32>
    %468 = arith.mulf %467, %465 : vector<64x64xf32>
    %469 = arith.addf %451, %468 : vector<64x64xf32>
    %c102 = arith.constant 102 : index
    %470 = memref.load %arg2[%c102] : memref<144xf32, #tpu.memory_space<smem>>
    %471 = vector.broadcast %470 : f32 to vector<64x64xf32>
    %472 = arith.mulf %471, %465 : vector<64x64xf32>
    %473 = arith.addf %455, %472 : vector<64x64xf32>
    %c106 = arith.constant 106 : index
    %474 = memref.load %arg2[%c106] : memref<144xf32, #tpu.memory_space<smem>>
    %475 = vector.broadcast %474 : f32 to vector<64x64xf32>
    %476 = arith.mulf %475, %465 : vector<64x64xf32>
    %477 = arith.addf %459, %476 : vector<64x64xf32>
    %c110 = arith.constant 110 : index
    %478 = memref.load %arg2[%c110] : memref<144xf32, #tpu.memory_space<smem>>
    %479 = vector.broadcast %478 : f32 to vector<64x64xf32>
    %480 = arith.mulf %479, %465 : vector<64x64xf32>
    %481 = arith.addf %463, %480 : vector<64x64xf32>
    %c0_108 = arith.constant 0 : index
    %c3_109 = arith.constant 3 : index
    %c2_110 = arith.constant 2 : index
    %c0_111 = arith.constant 0 : index
    %482 = vector.load %arg1[%c0_108, %c3_109, %c2_110, %c0_111] : memref<1x4x66x66xf32, #tpu.memory_space<vmem>>, vector<1x1x64x64xf32>
    %483 = vector.shape_cast %482 : vector<1x1x64x64xf32> to vector<64x64xf32>
    %c99 = arith.constant 99 : index
    %484 = memref.load %arg2[%c99] : memref<144xf32, #tpu.memory_space<smem>>
    %485 = vector.broadcast %484 : f32 to vector<64x64xf32>
    %486 = arith.mulf %485, %483 : vector<64x64xf32>
    %487 = arith.addf %469, %486 : vector<64x64xf32>
    %c103 = arith.constant 103 : index
    %488 = memref.load %arg2[%c103] : memref<144xf32, #tpu.memory_space<smem>>
    %489 = vector.broadcast %488 : f32 to vector<64x64xf32>
    %490 = arith.mulf %489, %483 : vector<64x64xf32>
    %491 = arith.addf %473, %490 : vector<64x64xf32>
    %c107 = arith.constant 107 : index
    %492 = memref.load %arg2[%c107] : memref<144xf32, #tpu.memory_space<smem>>
    %493 = vector.broadcast %492 : f32 to vector<64x64xf32>
    %494 = arith.mulf %493, %483 : vector<64x64xf32>
    %495 = arith.addf %477, %494 : vector<64x64xf32>
    %c111 = arith.constant 111 : index
    %496 = memref.load %arg2[%c111] : memref<144xf32, #tpu.memory_space<smem>>
    %497 = vector.broadcast %496 : f32 to vector<64x64xf32>
    %498 = arith.mulf %497, %483 : vector<64x64xf32>
    %499 = arith.addf %481, %498 : vector<64x64xf32>
    %c0_112 = arith.constant 0 : index
    %c0_113 = arith.constant 0 : index
    %c2_114 = arith.constant 2 : index
    %c1_115 = arith.constant 1 : index
    %500 = vector.load %arg1[%c0_112, %c0_113, %c2_114, %c1_115] : memref<1x4x66x66xf32, #tpu.memory_space<vmem>>, vector<1x1x64x64xf32>
    %501 = vector.shape_cast %500 : vector<1x1x64x64xf32> to vector<64x64xf32>
    %c112 = arith.constant 112 : index
    %502 = memref.load %arg2[%c112] : memref<144xf32, #tpu.memory_space<smem>>
    %503 = vector.broadcast %502 : f32 to vector<64x64xf32>
    %504 = arith.mulf %503, %501 : vector<64x64xf32>
    %505 = arith.addf %487, %504 : vector<64x64xf32>
    %c116 = arith.constant 116 : index
    %506 = memref.load %arg2[%c116] : memref<144xf32, #tpu.memory_space<smem>>
    %507 = vector.broadcast %506 : f32 to vector<64x64xf32>
    %508 = arith.mulf %507, %501 : vector<64x64xf32>
    %509 = arith.addf %491, %508 : vector<64x64xf32>
    %c120 = arith.constant 120 : index
    %510 = memref.load %arg2[%c120] : memref<144xf32, #tpu.memory_space<smem>>
    %511 = vector.broadcast %510 : f32 to vector<64x64xf32>
    %512 = arith.mulf %511, %501 : vector<64x64xf32>
    %513 = arith.addf %495, %512 : vector<64x64xf32>
    %c124 = arith.constant 124 : index
    %514 = memref.load %arg2[%c124] : memref<144xf32, #tpu.memory_space<smem>>
    %515 = vector.broadcast %514 : f32 to vector<64x64xf32>
    %516 = arith.mulf %515, %501 : vector<64x64xf32>
    %517 = arith.addf %499, %516 : vector<64x64xf32>
    %c0_116 = arith.constant 0 : index
    %c1_117 = arith.constant 1 : index
    %c2_118 = arith.constant 2 : index
    %c1_119 = arith.constant 1 : index
    %518 = vector.load %arg1[%c0_116, %c1_117, %c2_118, %c1_119] : memref<1x4x66x66xf32, #tpu.memory_space<vmem>>, vector<1x1x64x64xf32>
    %519 = vector.shape_cast %518 : vector<1x1x64x64xf32> to vector<64x64xf32>
    %c113 = arith.constant 113 : index
    %520 = memref.load %arg2[%c113] : memref<144xf32, #tpu.memory_space<smem>>
    %521 = vector.broadcast %520 : f32 to vector<64x64xf32>
    %522 = arith.mulf %521, %519 : vector<64x64xf32>
    %523 = arith.addf %505, %522 : vector<64x64xf32>
    %c117 = arith.constant 117 : index
    %524 = memref.load %arg2[%c117] : memref<144xf32, #tpu.memory_space<smem>>
    %525 = vector.broadcast %524 : f32 to vector<64x64xf32>
    %526 = arith.mulf %525, %519 : vector<64x64xf32>
    %527 = arith.addf %509, %526 : vector<64x64xf32>
    %c121 = arith.constant 121 : index
    %528 = memref.load %arg2[%c121] : memref<144xf32, #tpu.memory_space<smem>>
    %529 = vector.broadcast %528 : f32 to vector<64x64xf32>
    %530 = arith.mulf %529, %519 : vector<64x64xf32>
    %531 = arith.addf %513, %530 : vector<64x64xf32>
    %c125 = arith.constant 125 : index
    %532 = memref.load %arg2[%c125] : memref<144xf32, #tpu.memory_space<smem>>
    %533 = vector.broadcast %532 : f32 to vector<64x64xf32>
    %534 = arith.mulf %533, %519 : vector<64x64xf32>
    %535 = arith.addf %517, %534 : vector<64x64xf32>
    %c0_120 = arith.constant 0 : index
    %c2_121 = arith.constant 2 : index
    %c2_122 = arith.constant 2 : index
    %c1_123 = arith.constant 1 : index
    %536 = vector.load %arg1[%c0_120, %c2_121, %c2_122, %c1_123] : memref<1x4x66x66xf32, #tpu.memory_space<vmem>>, vector<1x1x64x64xf32>
    %537 = vector.shape_cast %536 : vector<1x1x64x64xf32> to vector<64x64xf32>
    %c114 = arith.constant 114 : index
    %538 = memref.load %arg2[%c114] : memref<144xf32, #tpu.memory_space<smem>>
    %539 = vector.broadcast %538 : f32 to vector<64x64xf32>
    %540 = arith.mulf %539, %537 : vector<64x64xf32>
    %541 = arith.addf %523, %540 : vector<64x64xf32>
    %c118 = arith.constant 118 : index
    %542 = memref.load %arg2[%c118] : memref<144xf32, #tpu.memory_space<smem>>
    %543 = vector.broadcast %542 : f32 to vector<64x64xf32>
    %544 = arith.mulf %543, %537 : vector<64x64xf32>
    %545 = arith.addf %527, %544 : vector<64x64xf32>
    %c122 = arith.constant 122 : index
    %546 = memref.load %arg2[%c122] : memref<144xf32, #tpu.memory_space<smem>>
    %547 = vector.broadcast %546 : f32 to vector<64x64xf32>
    %548 = arith.mulf %547, %537 : vector<64x64xf32>
    %549 = arith.addf %531, %548 : vector<64x64xf32>
    %c126 = arith.constant 126 : index
    %550 = memref.load %arg2[%c126] : memref<144xf32, #tpu.memory_space<smem>>
    %551 = vector.broadcast %550 : f32 to vector<64x64xf32>
    %552 = arith.mulf %551, %537 : vector<64x64xf32>
    %553 = arith.addf %535, %552 : vector<64x64xf32>
    %c0_124 = arith.constant 0 : index
    %c3_125 = arith.constant 3 : index
    %c2_126 = arith.constant 2 : index
    %c1_127 = arith.constant 1 : index
    %554 = vector.load %arg1[%c0_124, %c3_125, %c2_126, %c1_127] : memref<1x4x66x66xf32, #tpu.memory_space<vmem>>, vector<1x1x64x64xf32>
    %555 = vector.shape_cast %554 : vector<1x1x64x64xf32> to vector<64x64xf32>
    %c115 = arith.constant 115 : index
    %556 = memref.load %arg2[%c115] : memref<144xf32, #tpu.memory_space<smem>>
    %557 = vector.broadcast %556 : f32 to vector<64x64xf32>
    %558 = arith.mulf %557, %555 : vector<64x64xf32>
    %559 = arith.addf %541, %558 : vector<64x64xf32>
    %c119 = arith.constant 119 : index
    %560 = memref.load %arg2[%c119] : memref<144xf32, #tpu.memory_space<smem>>
    %561 = vector.broadcast %560 : f32 to vector<64x64xf32>
    %562 = arith.mulf %561, %555 : vector<64x64xf32>
    %563 = arith.addf %545, %562 : vector<64x64xf32>
    %c123 = arith.constant 123 : index
    %564 = memref.load %arg2[%c123] : memref<144xf32, #tpu.memory_space<smem>>
    %565 = vector.broadcast %564 : f32 to vector<64x64xf32>
    %566 = arith.mulf %565, %555 : vector<64x64xf32>
    %567 = arith.addf %549, %566 : vector<64x64xf32>
    %c127 = arith.constant 127 : index
    %568 = memref.load %arg2[%c127] : memref<144xf32, #tpu.memory_space<smem>>
    %569 = vector.broadcast %568 : f32 to vector<64x64xf32>
    %570 = arith.mulf %569, %555 : vector<64x64xf32>
    %571 = arith.addf %553, %570 : vector<64x64xf32>
    %c0_128 = arith.constant 0 : index
    %c0_129 = arith.constant 0 : index
    %c2_130 = arith.constant 2 : index
    %c2_131 = arith.constant 2 : index
    %572 = vector.load %arg1[%c0_128, %c0_129, %c2_130, %c2_131] : memref<1x4x66x66xf32, #tpu.memory_space<vmem>>, vector<1x1x64x64xf32>
    %573 = vector.shape_cast %572 : vector<1x1x64x64xf32> to vector<64x64xf32>
    %c128 = arith.constant 128 : index
    %574 = memref.load %arg2[%c128] : memref<144xf32, #tpu.memory_space<smem>>
    %575 = vector.broadcast %574 : f32 to vector<64x64xf32>
    %576 = arith.mulf %575, %573 : vector<64x64xf32>
    %577 = arith.addf %559, %576 : vector<64x64xf32>
    %c132 = arith.constant 132 : index
    %578 = memref.load %arg2[%c132] : memref<144xf32, #tpu.memory_space<smem>>
    %579 = vector.broadcast %578 : f32 to vector<64x64xf32>
    %580 = arith.mulf %579, %573 : vector<64x64xf32>
    %581 = arith.addf %563, %580 : vector<64x64xf32>
    %c136 = arith.constant 136 : index
    %582 = memref.load %arg2[%c136] : memref<144xf32, #tpu.memory_space<smem>>
    %583 = vector.broadcast %582 : f32 to vector<64x64xf32>
    %584 = arith.mulf %583, %573 : vector<64x64xf32>
    %585 = arith.addf %567, %584 : vector<64x64xf32>
    %c140 = arith.constant 140 : index
    %586 = memref.load %arg2[%c140] : memref<144xf32, #tpu.memory_space<smem>>
    %587 = vector.broadcast %586 : f32 to vector<64x64xf32>
    %588 = arith.mulf %587, %573 : vector<64x64xf32>
    %589 = arith.addf %571, %588 : vector<64x64xf32>
    %c0_132 = arith.constant 0 : index
    %c1_133 = arith.constant 1 : index
    %c2_134 = arith.constant 2 : index
    %c2_135 = arith.constant 2 : index
    %590 = vector.load %arg1[%c0_132, %c1_133, %c2_134, %c2_135] : memref<1x4x66x66xf32, #tpu.memory_space<vmem>>, vector<1x1x64x64xf32>
    %591 = vector.shape_cast %590 : vector<1x1x64x64xf32> to vector<64x64xf32>
    %c129 = arith.constant 129 : index
    %592 = memref.load %arg2[%c129] : memref<144xf32, #tpu.memory_space<smem>>
    %593 = vector.broadcast %592 : f32 to vector<64x64xf32>
    %594 = arith.mulf %593, %591 : vector<64x64xf32>
    %595 = arith.addf %577, %594 : vector<64x64xf32>
    %c133 = arith.constant 133 : index
    %596 = memref.load %arg2[%c133] : memref<144xf32, #tpu.memory_space<smem>>
    %597 = vector.broadcast %596 : f32 to vector<64x64xf32>
    %598 = arith.mulf %597, %591 : vector<64x64xf32>
    %599 = arith.addf %581, %598 : vector<64x64xf32>
    %c137 = arith.constant 137 : index
    %600 = memref.load %arg2[%c137] : memref<144xf32, #tpu.memory_space<smem>>
    %601 = vector.broadcast %600 : f32 to vector<64x64xf32>
    %602 = arith.mulf %601, %591 : vector<64x64xf32>
    %603 = arith.addf %585, %602 : vector<64x64xf32>
    %c141 = arith.constant 141 : index
    %604 = memref.load %arg2[%c141] : memref<144xf32, #tpu.memory_space<smem>>
    %605 = vector.broadcast %604 : f32 to vector<64x64xf32>
    %606 = arith.mulf %605, %591 : vector<64x64xf32>
    %607 = arith.addf %589, %606 : vector<64x64xf32>
    %c0_136 = arith.constant 0 : index
    %c2_137 = arith.constant 2 : index
    %c2_138 = arith.constant 2 : index
    %c2_139 = arith.constant 2 : index
    %608 = vector.load %arg1[%c0_136, %c2_137, %c2_138, %c2_139] : memref<1x4x66x66xf32, #tpu.memory_space<vmem>>, vector<1x1x64x64xf32>
    %609 = vector.shape_cast %608 : vector<1x1x64x64xf32> to vector<64x64xf32>
    %c130 = arith.constant 130 : index
    %610 = memref.load %arg2[%c130] : memref<144xf32, #tpu.memory_space<smem>>
    %611 = vector.broadcast %610 : f32 to vector<64x64xf32>
    %612 = arith.mulf %611, %609 : vector<64x64xf32>
    %613 = arith.addf %595, %612 : vector<64x64xf32>
    %c134 = arith.constant 134 : index
    %614 = memref.load %arg2[%c134] : memref<144xf32, #tpu.memory_space<smem>>
    %615 = vector.broadcast %614 : f32 to vector<64x64xf32>
    %616 = arith.mulf %615, %609 : vector<64x64xf32>
    %617 = arith.addf %599, %616 : vector<64x64xf32>
    %c138 = arith.constant 138 : index
    %618 = memref.load %arg2[%c138] : memref<144xf32, #tpu.memory_space<smem>>
    %619 = vector.broadcast %618 : f32 to vector<64x64xf32>
    %620 = arith.mulf %619, %609 : vector<64x64xf32>
    %621 = arith.addf %603, %620 : vector<64x64xf32>
    %c142 = arith.constant 142 : index
    %622 = memref.load %arg2[%c142] : memref<144xf32, #tpu.memory_space<smem>>
    %623 = vector.broadcast %622 : f32 to vector<64x64xf32>
    %624 = arith.mulf %623, %609 : vector<64x64xf32>
    %625 = arith.addf %607, %624 : vector<64x64xf32>
    %c0_140 = arith.constant 0 : index
    %c3_141 = arith.constant 3 : index
    %c2_142 = arith.constant 2 : index
    %c2_143 = arith.constant 2 : index
    %626 = vector.load %arg1[%c0_140, %c3_141, %c2_142, %c2_143] : memref<1x4x66x66xf32, #tpu.memory_space<vmem>>, vector<1x1x64x64xf32>
    %627 = vector.shape_cast %626 : vector<1x1x64x64xf32> to vector<64x64xf32>
    %c131 = arith.constant 131 : index
    %628 = memref.load %arg2[%c131] : memref<144xf32, #tpu.memory_space<smem>>
    %629 = vector.broadcast %628 : f32 to vector<64x64xf32>
    %630 = arith.mulf %629, %627 : vector<64x64xf32>
    %631 = arith.addf %613, %630 : vector<64x64xf32>
    %c135 = arith.constant 135 : index
    %632 = memref.load %arg2[%c135] : memref<144xf32, #tpu.memory_space<smem>>
    %633 = vector.broadcast %632 : f32 to vector<64x64xf32>
    %634 = arith.mulf %633, %627 : vector<64x64xf32>
    %635 = arith.addf %617, %634 : vector<64x64xf32>
    %c139 = arith.constant 139 : index
    %636 = memref.load %arg2[%c139] : memref<144xf32, #tpu.memory_space<smem>>
    %637 = vector.broadcast %636 : f32 to vector<64x64xf32>
    %638 = arith.mulf %637, %627 : vector<64x64xf32>
    %639 = arith.addf %621, %638 : vector<64x64xf32>
    %c143 = arith.constant 143 : index
    %640 = memref.load %arg2[%c143] : memref<144xf32, #tpu.memory_space<smem>>
    %641 = vector.broadcast %640 : f32 to vector<64x64xf32>
    %642 = arith.mulf %641, %627 : vector<64x64xf32>
    %643 = arith.addf %625, %642 : vector<64x64xf32>
    %c0_144 = arith.constant 0 : index
    %c0_145 = arith.constant 0 : index
    %c0_146 = arith.constant 0 : index
    %c0_147 = arith.constant 0 : index
    %644 = vector.load %arg3[%c0_144, %c0_145, %c0_146, %c0_147] : memref<1x4x64x64xf32, #tpu.memory_space<vmem>>, vector<1x1x64x64xf32>
    %645 = vector.shape_cast %644 : vector<1x1x64x64xf32> to vector<64x64xf32>
    %646 = vector.shape_cast %631 : vector<64x64xf32> to vector<1x1x64x64xf32>
    tpu.vector_store %arg3[%c0_144, %c0_145, %c0_146, %c0_147], %646 {strides = array<i32>} : memref<1x4x64x64xf32, #tpu.memory_space<vmem>>, vector<1x1x64x64xf32>,
    %c0_148 = arith.constant 0 : index
    %c1_149 = arith.constant 1 : index
    %c0_150 = arith.constant 0 : index
    %c0_151 = arith.constant 0 : index
    %647 = vector.load %arg3[%c0_148, %c1_149, %c0_150, %c0_151] : memref<1x4x64x64xf32, #tpu.memory_space<vmem>>, vector<1x1x64x64xf32>
    %648 = vector.shape_cast %647 : vector<1x1x64x64xf32> to vector<64x64xf32>
    %649 = vector.shape_cast %635 : vector<64x64xf32> to vector<1x1x64x64xf32>
    tpu.vector_store %arg3[%c0_148, %c1_149, %c0_150, %c0_151], %649 {strides = array<i32>} : memref<1x4x64x64xf32, #tpu.memory_space<vmem>>, vector<1x1x64x64xf32>,
    %c0_152 = arith.constant 0 : index
    %c2_153 = arith.constant 2 : index
    %c0_154 = arith.constant 0 : index
    %c0_155 = arith.constant 0 : index
    %650 = vector.load %arg3[%c0_152, %c2_153, %c0_154, %c0_155] : memref<1x4x64x64xf32, #tpu.memory_space<vmem>>, vector<1x1x64x64xf32>
    %651 = vector.shape_cast %650 : vector<1x1x64x64xf32> to vector<64x64xf32>
    %652 = vector.shape_cast %639 : vector<64x64xf32> to vector<1x1x64x64xf32>
    tpu.vector_store %arg3[%c0_152, %c2_153, %c0_154, %c0_155], %652 {strides = array<i32>} : memref<1x4x64x64xf32, #tpu.memory_space<vmem>>, vector<1x1x64x64xf32>,
    %c0_156 = arith.constant 0 : index
    %c3_157 = arith.constant 3 : index
    %c0_158 = arith.constant 0 : index
    %c0_159 = arith.constant 0 : index
    %653 = vector.load %arg3[%c0_156, %c3_157, %c0_158, %c0_159] : memref<1x4x64x64xf32, #tpu.memory_space<vmem>>, vector<1x1x64x64xf32>
    %654 = vector.shape_cast %653 : vector<1x1x64x64xf32> to vector<64x64xf32>
    %655 = vector.shape_cast %643 : vector<64x64xf32> to vector<1x1x64x64xf32>
    tpu.vector_store %arg3[%c0_156, %c3_157, %c0_158, %c0_159], %655 {strides = array<i32>} : memref<1x4x64x64xf32, #tpu.memory_space<vmem>>, vector<1x1x64x64xf32>,
    return
  }
  func.func @transform_0(%arg0: i32) -> (i32, i32, i32, i32) {
    %c0_i32 = arith.constant 0 : i32
    %c0_i32_0 = arith.constant 0 : i32
    %c0_i32_1 = arith.constant 0 : i32
    %c0_i32_2 = arith.constant 0 : i32
    return %arg0, %c0_i32, %c0_i32_0, %c0_i32_1 : i32, i32, i32, i32
  }
  func.func @transform_1(%arg0: i32) -> i32 {
    %c0_i32 = arith.constant 0 : i32
    %c0_i32_0 = arith.constant 0 : i32
    return %c0_i32 : i32
  }
  func.func @transform_2(%arg0: i32) -> (i32, i32, i32, i32) {
    %c0_i32 = arith.constant 0 : i32
    %c0_i32_0 = arith.constant 0 : i32
    %c0_i32_1 = arith.constant 0 : i32
    %c0_i32_2 = arith.constant 0 : i32
    return %arg0, %c0_i32, %c0_i32_0, %c0_i32_1 : i32, i32, i32, i32
  }
}

</mosaic_0001>

<llo_original>
// kernel: _lambda_.1
$region0: #{_lambda_.1}
  #allocation0 [shape = 'u32[]', space=smem, size = 0x4, offset = 0x4, fixed_abs, tag = 'smem constant byte address 0x4 - core index']
  #allocation1 [shape = 'u32[144,128]{1,0:T(1,128)}', space=vmem, size = 0x12000, scoped, tag = 'internal scratch']
  %s0 = inlined_call_operand.vmem [shape: f32[2,4,66,66], index: 0, kind: input, shape index: {}]
  %s1 = inlined_call_operand.vmem [shape: f32[144], index: 1, kind: input, shape index: {}]
  %s2 = inlined_call_operand.hbm [shape: f32[2,4,64,64], index: 2, kind: output, shape index: {}]
  %s3 = sld [smem:[#allocation0]]
  $region45: #{_lambda_.1} parent=0
    _
  %s5 = ssub.s32 1, %s3
  %s6 = scalar_select 0, %s5, %s3
  $region1: #{_lambda_.1} parent=0
    #allocation2 [shape = 'u8[1024]{0}', space=smem, size = 0x400, scoped, tag = 'input window, operand 1, single buffered']
    #allocation3 [shape = 's32[2]{0}', space=sflag, size = 0x8, scoped, tag = 'scoped memory for _lambda_.1']
    #allocation4 [shape = 's32[2]{0}', space=sflag, size = 0x8, scoped, tag = 'scoped memory for _lambda_.1']
    #allocation5 [shape = 'u8[262144]{0}', space=vmem, size = 0x40000, scoped, tag = 'output window, operand 0']
    %7 = vsyncpa [#allocation4], 0
    %8 = vsyncpa [#allocation3], 0
    %s9 = scalar_lea.sflag [#allocation3], 1
    %10 = vsyncpa %s9, 0
    loop: start=0, step=1, limit=4
    $region2: #{_lambda_.1} parent=1 // loop_pre_header
      _
    $region3: #{_lambda_.1} parent=1 // loop_header
      %s12 = sphi 0, %s16
      %p13 = scmp.ge.s32.totalorder %s12, 4
      %s22 = sphi 0, %s24
      %s25 = sphi 0, %s22
      %s26 = sphi 0, %s25
      %s42 = sphi 0, %s26
      %s46 = sphi 0, %s46
      %s48 = sphi 0, %s46
      %s49 = sphi 0, %s48
      %s63 = sphi 0, %s49
      %s69 = sphi 0, %s71
      %s72 = sphi 0, %s69
      %s73 = sphi 0, %s72
      %s89 = sphi 0, %s73
    $region4: #{_lambda_.1} parent=1 // loop_header_branch
      %15 = sbr.rel (%p13) target = $region8
    $region5: #{_lambda_.1} parent=1 // loop_body
      %s17 = ssub.s32 %s12, 1
      %s18 = ssub.s32 %s12, 2
      %s19 = sadd.s32 %s12, 1
      %s20 = ssub.s32 %s12, %s19
      %p21 = scmp.eq.s32.totalorder %s20, 0
      %s23 = sadd.s32 %s22, 1
      %s24 = scalar_select %p21, %s22, %s23
      %p27 = pneg %p21
      %p28 = scmp.eq.s32.totalorder %s12, 1
      %p29 = por %p27, %p28
      %p30 = scmp.ne.s32.totalorder %s22, %s25
      %p31 = scmp.eq.s32.totalorder %s12, 0
      %p32 = por %p30, %p31
      %p33 = scmp.ne.s32.totalorder %s22, %s25
      %p34 = scmp.eq.s32.totalorder %s17, 1
      %p35 = por %p33, %p34
      %p36 = scmp.ne.s32.totalorder %s25, %s26
      %p37 = scmp.eq.s32.totalorder %s17, 0
      %p38 = por %p36, %p37
      %p39 = scmp.ne.s32.totalorder %s25, %s26
      %p40 = scmp.eq.s32.totalorder %s18, 1
      %p41 = por %p39, %p40
      %p43 = scmp.ne.s32.totalorder %s26, %s42
      %p44 = scmp.eq.s32.totalorder %s18, 0
      %p45 = por %p43, %p44
      %s47 = sadd.s32 %s46, 1
      %p50 = scmp.eq.s32.totalorder %s12, 1
      %p51 = scmp.ne.s32.totalorder %s46, %s48
      %p52 = scmp.eq.s32.totalorder %s12, 0
      %p53 = por %p51, %p52
      %p54 = scmp.ne.s32.totalorder %s46, %s48
      %p55 = scmp.eq.s32.totalorder %s17, 1
      %p56 = por %p54, %p55
      %p57 = scmp.ne.s32.totalorder %s48, %s49
      %p58 = scmp.eq.s32.totalorder %s17, 0
      %p59 = por %p57, %p58
      %p60 = scmp.ne.s32.totalorder %s48, %s49
      %p61 = scmp.eq.s32.totalorder %s18, 1
      %p62 = por %p60, %p61
      %p64 = scmp.ne.s32.totalorder %s49, %s63
      %p65 = scmp.eq.s32.totalorder %s18, 0
      %p66 = por %p64, %p65
      %s67 = ssub.s32 %s12, %s19
      %p68 = scmp.eq.s32.totalorder %s67, 0
      %s70 = sadd.s32 %s69, 1
      %s71 = scalar_select %p68, %s69, %s70
      %p74 = pneg %p68
      %p75 = scmp.eq.s32.totalorder %s12, 1
      %p76 = por %p74, %p75
      %p77 = scmp.ne.s32.totalorder %s69, %s72
      %p78 = scmp.eq.s32.totalorder %s12, 0
      %p79 = por %p77, %p78
      %p80 = scmp.ne.s32.totalorder %s69, %s72
      %p81 = scmp.eq.s32.totalorder %s17, 1
      %p82 = por %p80, %p81
      %p83 = scmp.ne.s32.totalorder %s72, %s73
      %p84 = scmp.eq.s32.totalorder %s17, 0
      %p85 = por %p83, %p84
      %p86 = scmp.ne.s32.totalorder %s72, %s73
      %p87 = scmp.eq.s32.totalorder %s18, 1
      %p88 = por %p86, %p87
      %p90 = scmp.ne.s32.totalorder %s73, %s89
      %p91 = scmp.eq.s32.totalorder %s18, 0
      %p92 = por %p90, %p91
      %p93 = scmp.le.s32.totalorder 1, %s12
      %p94 = scmp.lt.s32.totalorder %s12, 3
      %p95 = pnand %p93, %p94
      %p96 = pneg %p95
      // Predicated region
      $region9: #{_lambda_.1} parent=5 // pred_check
        _
      $region10: #{_lambda_.1} parent=5 // pred_check_branch
        %98 = sbr.rel (%p95) target = $region12
      $region11: #{_lambda_.1} parent=5 // pred_region
        %s99 = ssub.s32 %s12, 1
        // Predicated region
        $region13: #{_lambda_.1} parent=11 // pred_check
          %p100 = pneg %p59
        $region14: #{_lambda_.1} parent=11 // pred_check_branch
          %102 = sbr.rel (%p100) target = $region16
        $region15: #{_lambda_.1} parent=11 // pred_region
          %s104 = ssub.s32 32, 32
          %105 = vsyncadd [#allocation4], %s104
          %s107 = sshll.u32 %s1, 4
          %s108 = int_to_ptr.vmem [resolvable:$true] %s107
          %110 = dma.vmem_to_smem %s108, 32, [#allocation2], [#allocation4]
        $region16: #{_lambda_.1} parent=11 // pred_fallthru
          _
      $region12: #{_lambda_.1} parent=5 // pred_fallthru
        _
      %p111 = scmp.lt.s32.totalorder %s12, 2
      // Predicated region
      $region17: #{_lambda_.1} parent=5 // pred_check
        %p112 = pneg %p111
      $region18: #{_lambda_.1} parent=5 // pred_check_branch
        %114 = sbr.rel (%p112) target = $region20
      $region19: #{_lambda_.1} parent=5 // pred_region
        // Predicated region
        $region21: #{_lambda_.1} parent=19 // pred_check
          %p115 = pneg %p32
        $region22: #{_lambda_.1} parent=19 // pred_check_branch
          %117 = sbr.rel (%p115) target = $region24
        $region23: #{_lambda_.1} parent=19 // pred_region
          %p118 = scmp.lt.s32.totalorder %s12, 1
          %s119 = scalar_select %p118, %s12, 1
          %s120 = smul.addr %s119, 36
          %s121 = smul.addr %s120, 8
          %s122 = scalar_lea.vmem %s0, %s121
        $region24: #{_lambda_.1} parent=19 // pred_fallthru
          _
      $region20: #{_lambda_.1} parent=5 // pred_fallthru
        _
      %p123 = scmp.le.s32.totalorder 1, %s12
      %p124 = scmp.lt.s32.totalorder %s12, 3
      %p125 = pnand %p123, %p124
      %p126 = pneg %p125
      // Predicated region
      $region25: #{_lambda_.1} parent=5 // pred_check
        _
      $region26: #{_lambda_.1} parent=5 // pred_check_branch
        %128 = sbr.rel (%p125) target = $region28
      $region27: #{_lambda_.1} parent=5 // pred_region
        %s129 = ssub.s32 %s12, 1
        // Predicated region
        $region29: #{_lambda_.1} parent=27 // pred_check
          %p130 = pneg %p59
        $region30: #{_lambda_.1} parent=27 // pred_check_branch
          %132 = sbr.rel (%p130) target = $region32
        $region31: #{_lambda_.1} parent=27 // pred_region
          %133 = dma.done [#allocation4], 32
        $region32: #{_lambda_.1} parent=27 // pred_fallthru
          _
        %134 = sfence
        %p135 = scmp.lt.s32.totalorder %s17, 1
        %s136 = scalar_select %p135, %s17, 1
        %s137 = smul.addr %s136, 36
        %s138 = smul.addr %s137, 8
        %s139 = scalar_lea.vmem %s0, %s138
        %p140 = pneg %p38
        %p141 = pneg %p35
        %p142 = pneg %p59
        %p143 = pneg %p56
        %p144 = pneg %p85
        %p145 = pneg %p82
        %s146 = sand.u32 %s72, 1
        %s147 = scalar_lea.sflag [#allocation3], %s146
        %s148 = sand.u32 %s72, 1
        %s149 = smul.addr %s148, 256
        %s150 = scalar_lea.vmem [#allocation5], %s149
        %p151 = scmp.lt.s32.totalorder %s17, 1
        %s152 = scalar_select %p151, %s17, 1
        %s153 = smul.addr %s152, 36
        %s154 = smul.addr %s153, 8
        %s155 = scalar_lea.vmem %s0, %s154
        %v156 = vld [vmem:[%s155] sm:$0xff]
        %v157 = vld [vmem:[%s155 + $0x8] sm:$0xff]
        %v158 = vld [vmem:[%s155 + $0x10] sm:$0xff]
        %v159 = vld [vmem:[%s155 + $0x18] sm:$0xff]
        %v160 = vld [vmem:[%s155 + $0x20] sm:$0xff]
        %v161 = vld [vmem:[%s155 + $0x28] sm:$0xff]
        %v162 = vld [vmem:[%s155 + $0x30] sm:$0xff]
        %v163 = vld [vmem:[%s155 + $0x38] sm:$0xff]
        %s164 = sld [smem:[#allocation2]]
        %v165 = vstv %s164
        %v166 = vmul.f32 %v165, %v156
        %v167 = vmul.f32 %v165, %v157
        %v168 = vmul.f32 %v165, %v158
        %v169 = vmul.f32 %v165, %v159
        %v170 = vmul.f32 %v165, %v160
        %v171 = vmul.f32 %v165, %v161
        %v172 = vmul.f32 %v165, %v162
        %v173 = vmul.f32 %v165, %v163
        %s174 = sld [smem:[#allocation2 + $0x4]]
        %v175 = vstv %s174
        %v176 = vmul.f32 %v175, %v156
        %v177 = vmul.f32 %v175, %v157
        %v178 = vmul.f32 %v175, %v158
        %v179 = vmul.f32 %v175, %v159
        %v180 = vmul.f32 %v175, %v160
        %v181 = vmul.f32 %v175, %v161
        %v182 = vmul.f32 %v175, %v162
        %v183 = vmul.f32 %v175, %v163
        %s184 = sld [smem:[#allocation2 + $0x8]]
        %v185 = vstv %s184
        %v186 = vmul.f32 %v185, %v156
        %v187 = vmul.f32 %v185, %v157
        %v188 = vmul.f32 %v185, %v158
        %v189 = vmul.f32 %v185, %v159
        %v190 = vmul.f32 %v185, %v160
        %v191 = vmul.f32 %v185, %v161
        %v192 = vmul.f32 %v185, %v162
        %v193 = vmul.f32 %v185, %v163
        %s194 = sld [smem:[#allocation2 + $0xc]]
        %v195 = vstv %s194
        %v196 = vmul.f32 %v195, %v156
        %v197 = vmul.f32 %v195, %v157
        %v198 = vmul.f32 %v195, %v158
        %v199 = vmul.f32 %v195, %v159
        %v200 = vmul.f32 %v195, %v160
        %v201 = vmul.f32 %v195, %v161
        %v202 = vmul.f32 %v195, %v162
        %v203 = vmul.f32 %v195, %v163
        %s204 = scalar_lea.vmem %s155, 72
        %v205 = vld [vmem:[%s204] sm:$0xff]
        %v206 = vld [vmem:[%s204 + $0x8] sm:$0xff]
        %v207 = vld [vmem:[%s204 + $0x10] sm:$0xff]
        %v208 = vld [vmem:[%s204 + $0x18] sm:$0xff]
        %v209 = vld [vmem:[%s204 + $0x20] sm:$0xff]
        %v210 = vld [vmem:[%s204 + $0x28] sm:$0xff]
        %v211 = vld [vmem:[%s204 + $0x30] sm:$0xff]
        %v212 = vld [vmem:[%s204 + $0x38] sm:$0xff]
        %s213 = sld [smem:[#allocation2 + $0x1]]
        %v214 = vstv %s213
        %v215 = vmul.f32 %v214, %v205
        %v216 = vmul.f32 %v214, %v206
        %v217 = vmul.f32 %v214, %v207
        %v218 = vmul.f32 %v214, %v208
        %v219 = vmul.f32 %v214, %v209
        %v220 = vmul.f32 %v214, %v210
        %v221 = vmul.f32 %v214, %v211
        %v222 = vmul.f32 %v214, %v212
        %v223 = vadd.f32 %v166, %v215
        %v224 = vadd.f32 %v167, %v216
        %v225 = vadd.f32 %v168, %v217
        %v226 = vadd.f32 %v169, %v218
        %v227 = vadd.f32 %v170, %v219
        %v228 = vadd.f32 %v171, %v220
        %v229 = vadd.f32 %v172, %v221
        %v230 = vadd.f32 %v173, %v222
        %s231 = sld [smem:[#allocation2 + $0x5]]
        %v232 = vstv %s231
        %v233 = vmul.f32 %v232, %v205
        %v234 = vmul.f32 %v232, %v206
        %v235 = vmul.f32 %v232, %v207
        %v236 = vmul.f32 %v232, %v208
        %v237 = vmul.f32 %v232, %v209
        %v238 = vmul.f32 %v232, %v210
        %v239 = vmul.f32 %v232, %v211
        %v240 = vmul.f32 %v232, %v212
        %v241 = vadd.f32 %v176, %v233
        %v242 = vadd.f32 %v177, %v234
        %v243 = vadd.f32 %v178, %v235
        %v244 = vadd.f32 %v179, %v236
        %v245 = vadd.f32 %v180, %v237
        %v246 = vadd.f32 %v181, %v238
        %v247 = vadd.f32 %v182, %v239
        %v248 = vadd.f32 %v183, %v240
        %s249 = sld [smem:[#allocation2 + $0x9]]
        %v250 = vstv %s249
        %v251 = vmul.f32 %v250, %v205
        %v252 = vmul.f32 %v250, %v206
        %v253 = vmul.f32 %v250, %v207
        %v254 = vmul.f32 %v250, %v208
        %v255 = vmul.f32 %v250, %v209
        %v256 = vmul.f32 %v250, %v210
        %v257 = vmul.f32 %v250, %v211
        %v258 = vmul.f32 %v250, %v212
        %v259 = vadd.f32 %v186, %v251
        %v260 = vadd.f32 %v187, %v252
        %v261 = vadd.f32 %v188, %v253
        %v262 = vadd.f32 %v189, %v254
        %v263 = vadd.f32 %v190, %v255
        %v264 = vadd.f32 %v191, %v256
        %v265 = vadd.f32 %v192, %v257
        %v266 = vadd.f32 %v193, %v258
        %s267 = sld [smem:[#allocation2 + $0xd]]
        %v268 = vstv %s267
        %v269 = vmul.f32 %v268, %v205
        %v270 = vmul.f32 %v268, %v206
        %v271 = vmul.f32 %v268, %v207
        %v272 = vmul.f32 %v268, %v208
        %v273 = vmul.f32 %v268, %v209
        %v274 = vmul.f32 %v268, %v210
        %v275 = vmul.f32 %v268, %v211
        %v276 = vmul.f32 %v268, %v212
        %v277 = vadd.f32 %v196, %v269
        %v278 = vadd.f32 %v197, %v270
        %v279 = vadd.f32 %v198, %v271
        %v280 = vadd.f32 %v199, %v272
        %v281 = vadd.f32 %v200, %v273
        %v282 = vadd.f32 %v201, %v274
        %v283 = vadd.f32 %v202, %v275
        %v284 = vadd.f32 %v203, %v276
        %s285 = scalar_lea.vmem %s155, 144
        %v286 = vld [vmem:[%s285] sm:$0xff]
        %v287 = vld [vmem:[%s285 + $0x8] sm:$0xff]
        %v288 = vld [vmem:[%s285 + $0x10] sm:$0xff]
        %v289 = vld [vmem:[%s285 + $0x18] sm:$0xff]
        %v290 = vld [vmem:[%s285 + $0x20] sm:$0xff]
        %v291 = vld [vmem:[%s285 + $0x28] sm:$0xff]
        %v292 = vld [vmem:[%s285 + $0x30] sm:$0xff]
        %v293 = vld [vmem:[%s285 + $0x38] sm:$0xff]
        %s294 = sld [smem:[#allocation2 + $0x2]]
        %v295 = vstv %s294
        %v296 = vmul.f32 %v295, %v286
        %v297 = vmul.f32 %v295, %v287
        %v298 = vmul.f32 %v295, %v288
        %v299 = vmul.f32 %v295, %v289
        %v300 = vmul.f32 %v295, %v290
        %v301 = vmul.f32 %v295, %v291
        %v302 = vmul.f32 %v295, %v292
        %v303 = vmul.f32 %v295, %v293
        %v304 = vadd.f32 %v223, %v296
        %v305 = vadd.f32 %v224, %v297
        %v306 = vadd.f32 %v225, %v298
        %v307 = vadd.f32 %v226, %v299
        %v308 = vadd.f32 %v227, %v300
        %v309 = vadd.f32 %v228, %v301
        %v310 = vadd.f32 %v229, %v302
        %v311 = vadd.f32 %v230, %v303
        %s312 = sld [smem:[#allocation2 + $0x6]]
        %v313 = vstv %s312
        %v314 = vmul.f32 %v313, %v286
        %v315 = vmul.f32 %v313, %v287
        %v316 = vmul.f32 %v313, %v288
        %v317 = vmul.f32 %v313, %v289
        %v318 = vmul.f32 %v313, %v290
        %v319 = vmul.f32 %v313, %v291
        %v320 = vmul.f32 %v313, %v292
        %v321 = vmul.f32 %v313, %v293
        %v322 = vadd.f32 %v241, %v314
        %v323 = vadd.f32 %v242, %v315
        %v324 = vadd.f32 %v243, %v316
        %v325 = vadd.f32 %v244, %v317
        %v326 = vadd.f32 %v245, %v318
        %v327 = vadd.f32 %v246, %v319
        %v328 = vadd.f32 %v247, %v320
        %v329 = vadd.f32 %v248, %v321
        %s330 = sld [smem:[#allocation2 + $0xa]]
        %v331 = vstv %s330
        %v332 = vmul.f32 %v331, %v286
        %v333 = vmul.f32 %v331, %v287
        %v334 = vmul.f32 %v331, %v288
        %v335 = vmul.f32 %v331, %v289
        %v336 = vmul.f32 %v331, %v290
        %v337 = vmul.f32 %v331, %v291
        %v338 = vmul.f32 %v331, %v292
        %v339 = vmul.f32 %v331, %v293
        %v340 = vadd.f32 %v259, %v332
        %v341 = vadd.f32 %v260, %v333
        %v342 = vadd.f32 %v261, %v334
        %v343 = vadd.f32 %v262, %v335
        %v344 = vadd.f32 %v263, %v336
        %v345 = vadd.f32 %v264, %v337
        %v346 = vadd.f32 %v265, %v338
        %v347 = vadd.f32 %v266, %v339
        %s348 = sld [smem:[#allocation2 + $0xe]]
        %v349 = vstv %s348
        %v350 = vmul.f32 %v349, %v286
        %v351 = vmul.f32 %v349, %v287
        %v352 = vmul.f32 %v349, %v288
        %v353 = vmul.f32 %v349, %v289
        %v354 = vmul.f32 %v349, %v290
        %v355 = vmul.f32 %v349, %v291
        %v356 = vmul.f32 %v349, %v292
        %v357 = vmul.f32 %v349, %v293
        %v358 = vadd.f32 %v277, %v350
        %v359 = vadd.f32 %v278, %v351
        %v360 = vadd.f32 %v279, %v352
        %v361 = vadd.f32 %v280, %v353
        %v362 = vadd.f32 %v281, %v354
        %v363 = vadd.f32 %v282, %v355
        %v364 = vadd.f32 %v283, %v356
        %v365 = vadd.f32 %v284, %v357
        %s366 = scalar_lea.vmem %s155, 216
        %v367 = vld [vmem:[%s366] sm:$0xff]
        %v368 = vld [vmem:[%s366 + $0x8] sm:$0xff]
        %v369 = vld [vmem:[%s366 + $0x10] sm:$0xff]
        %v370 = vld [vmem:[%s366 + $0x18] sm:$0xff]
        %v371 = vld [vmem:[%s366 + $0x20] sm:$0xff]
        %v372 = vld [vmem:[%s366 + $0x28] sm:$0xff]
        %v373 = vld [vmem:[%s366 + $0x30] sm:$0xff]
        %v374 = vld [vmem:[%s366 + $0x38] sm:$0xff]
        %s375 = sld [smem:[#allocation2 + $0x3]]
        %v376 = vstv %s375
        %v377 = vmul.f32 %v376, %v367
        %v378 = vmul.f32 %v376, %v368
        %v379 = vmul.f32 %v376, %v369
        %v380 = vmul.f32 %v376, %v370
        %v381 = vmul.f32 %v376, %v371
        %v382 = vmul.f32 %v376, %v372
        %v383 = vmul.f32 %v376, %v373
        %v384 = vmul.f32 %v376, %v374
        %v385 = vadd.f32 %v304, %v377
        %v386 = vadd.f32 %v305, %v378
        %v387 = vadd.f32 %v306, %v379
        %v388 = vadd.f32 %v307, %v380
        %v389 = vadd.f32 %v308, %v381
        %v390 = vadd.f32 %v309, %v382
        %v391 = vadd.f32 %v310, %v383
        %v392 = vadd.f32 %v311, %v384
        %s393 = sld [smem:[#allocation2 + $0x7]]
        %v394 = vstv %s393
        %v395 = vmul.f32 %v394, %v367
        %v396 = vmul.f32 %v394, %v368
        %v397 = vmul.f32 %v394, %v369
        %v398 = vmul.f32 %v394, %v370
        %v399 = vmul.f32 %v394, %v371
        %v400 = vmul.f32 %v394, %v372
        %v401 = vmul.f32 %v394, %v373
        %v402 = vmul.f32 %v394, %v374
        %v403 = vadd.f32 %v322, %v395
        %v404 = vadd.f32 %v323, %v396
        %v405 = vadd.f32 %v324, %v397
        %v406 = vadd.f32 %v325, %v398
        %v407 = vadd.f32 %v326, %v399
        %v408 = vadd.f32 %v327, %v400
        %v409 = vadd.f32 %v328, %v401
        %v410 = vadd.f32 %v329, %v402
        %s411 = sld [smem:[#allocation2 + $0xb]]
        %v412 = vstv %s411
        %v413 = vmul.f32 %v412, %v367
        %v414 = vmul.f32 %v412, %v368
        %v415 = vmul.f32 %v412, %v369
        %v416 = vmul.f32 %v412, %v370
        %v417 = vmul.f32 %v412, %v371
        %v418 = vmul.f32 %v412, %v372
        %v419 = vmul.f32 %v412, %v373
        %v420 = vmul.f32 %v412, %v374
        %v421 = vadd.f32 %v340, %v413
        %v422 = vadd.f32 %v341, %v414
        %v423 = vadd.f32 %v342, %v415
        %v424 = vadd.f32 %v343, %v416
        %v425 = vadd.f32 %v344, %v417
        %v426 = vadd.f32 %v345, %v418
        %v427 = vadd.f32 %v346, %v419
        %v428 = vadd.f32 %v347, %v420
        %s429 = sld [smem:[#allocation2 + $0xf]]
        %v430 = vstv %s429
        %v431 = vmul.f32 %v430, %v367
        %v432 = vmul.f32 %v430, %v368
        %v433 = vmul.f32 %v430, %v369
        %v434 = vmul.f32 %v430, %v370
        %v435 = vmul.f32 %v430, %v371
        %v436 = vmul.f32 %v430, %v372
        %v437 = vmul.f32 %v430, %v373
        %v438 = vmul.f32 %v430, %v374
        %v439 = vadd.f32 %v358, %v431
        %v440 = vadd.f32 %v359, %v432
        %v441 = vadd.f32 %v360, %v433
        %v442 = vadd.f32 %v361, %v434
        %v443 = vadd.f32 %v362, %v435
        %v444 = vadd.f32 %v363, %v436
        %v445 = vadd.f32 %v364, %v437
        %v446 = vadd.f32 %v365, %v438
        %s447 = sld [smem:[#allocation2 + $0x10]]
        %v448 = vstv %s447
        %v449 = vmul.f32 %v448, %v156
        %v450 = vmul.f32 %v448, %v157
        %v451 = vmul.f32 %v448, %v158
        %v452 = vmul.f32 %v448, %v159
        %v453 = vmul.f32 %v448, %v160
        %v454 = vmul.f32 %v448, %v161
        %v455 = vmul.f32 %v448, %v162
        %v456 = vmul.f32 %v448, %v163
        %465 = vrot.lane.b32.xlu0 %v449, 127
        %v466 = vpop.permute.xlu0 %465
        %467 = vrot.lane.b32.xlu0 %v450, 127
        %v468 = vpop.permute.xlu0 %467
        %469 = vrot.lane.b32.xlu0 %v451, 127
        %v470 = vpop.permute.xlu0 %469
        %471 = vrot.lane.b32.xlu0 %v452, 127
        %v472 = vpop.permute.xlu0 %471
        %473 = vrot.lane.b32.xlu0 %v453, 127
        %v474 = vpop.permute.xlu0 %473
        %475 = vrot.lane.b32.xlu0 %v454, 127
        %v476 = vpop.permute.xlu0 %475
        %477 = vrot.lane.b32.xlu0 %v455, 127
        %v478 = vpop.permute.xlu0 %477
        %479 = vrot.lane.b32.xlu0 %v456, 127
        %v480 = vpop.permute.xlu0 %479
        %v489 = vadd.f32 %v385, %v466
        %v490 = vadd.f32 %v386, %v468
        %v491 = vadd.f32 %v387, %v470
        %v492 = vadd.f32 %v388, %v472
        %v493 = vadd.f32 %v389, %v474
        %v494 = vadd.f32 %v390, %v476
        %v495 = vadd.f32 %v391, %v478
        %v496 = vadd.f32 %v392, %v480
        %s497 = sld [smem:[#allocation2 + $0x14]]
        %v498 = vstv %s497
        %v499 = vmul.f32 %v498, %v156
        %v500 = vmul.f32 %v498, %v157
        %v501 = vmul.f32 %v498, %v158
        %v502 = vmul.f32 %v498, %v159
        %v503 = vmul.f32 %v498, %v160
        %v504 = vmul.f32 %v498, %v161
        %v505 = vmul.f32 %v498, %v162
        %v506 = vmul.f32 %v498, %v163
        %515 = vrot.lane.b32.xlu0 %v499, 127
        %v516 = vpop.permute.xlu0 %515
        %517 = vrot.lane.b32.xlu0 %v500, 127
        %v518 = vpop.permute.xlu0 %517
        %519 = vrot.lane.b32.xlu0 %v501, 127
        %v520 = vpop.permute.xlu0 %519
        %521 = vrot.lane.b32.xlu0 %v502, 127
        %v522 = vpop.permute.xlu0 %521
        %523 = vrot.lane.b32.xlu0 %v503, 127
        %v524 = vpop.permute.xlu0 %523
        %525 = vrot.lane.b32.xlu0 %v504, 127
        %v526 = vpop.permute.xlu0 %525
        %527 = vrot.lane.b32.xlu0 %v505, 127
        %v528 = vpop.permute.xlu0 %527
        %529 = vrot.lane.b32.xlu0 %v506, 127
        %v530 = vpop.permute.xlu0 %529
        %v539 = vadd.f32 %v403, %v516
        %v540 = vadd.f32 %v404, %v518
        %v541 = vadd.f32 %v405, %v520
        %v542 = vadd.f32 %v406, %v522
        %v543 = vadd.f32 %v407, %v524
        %v544 = vadd.f32 %v408, %v526
        %v545 = vadd.f32 %v409, %v528
        %v546 = vadd.f32 %v410, %v530
        %s547 = sld [smem:[#allocation2 + $0x18]]
        %v548 = vstv %s547
        %v549 = vmul.f32 %v548, %v156
        %v550 = vmul.f32 %v548, %v157
        %v551 = vmul.f32 %v548, %v158
        %v552 = vmul.f32 %v548, %v159
        %v553 = vmul.f32 %v548, %v160
        %v554 = vmul.f32 %v548, %v161
        %v555 = vmul.f32 %v548, %v162
        %v556 = vmul.f32 %v548, %v163
        %565 = vrot.lane.b32.xlu0 %v549, 127
        %v566 = vpop.permute.xlu0 %565
        %567 = vrot.lane.b32.xlu0 %v550, 127
        %v568 = vpop.permute.xlu0 %567
        %569 = vrot.lane.b32.xlu0 %v551, 127
        %v570 = vpop.permute.xlu0 %569
        %571 = vrot.lane.b32.xlu0 %v552, 127
        %v572 = vpop.permute.xlu0 %571
        %573 = vrot.lane.b32.xlu0 %v553, 127
        %v574 = vpop.permute.xlu0 %573
        %575 = vrot.lane.b32.xlu0 %v554, 127
        %v576 = vpop.permute.xlu0 %575
        %577 = vrot.lane.b32.xlu0 %v555, 127
        %v578 = vpop.permute.xlu0 %577
        %579 = vrot.lane.b32.xlu0 %v556, 127
        %v580 = vpop.permute.xlu0 %579
        %v589 = vadd.f32 %v421, %v566
        %v590 = vadd.f32 %v422, %v568
        %v591 = vadd.f32 %v423, %v570
        %v592 = vadd.f32 %v424, %v572
        %v593 = vadd.f32 %v425, %v574
        %v594 = vadd.f32 %v426, %v576
        %v595 = vadd.f32 %v427, %v578
        %v596 = vadd.f32 %v428, %v580
        %s597 = sld [smem:[#allocation2 + $0x1c]]
        %v598 = vstv %s597
        %v599 = vmul.f32 %v598, %v156
        %v600 = vmul.f32 %v598, %v157
        %v601 = vmul.f32 %v598, %v158
        %v602 = vmul.f32 %v598, %v159
        %v603 = vmul.f32 %v598, %v160
        %v604 = vmul.f32 %v598, %v161
        %v605 = vmul.f32 %v598, %v162
        %v606 = vmul.f32 %v598, %v163
        %615 = vrot.lane.b32.xlu0 %v599, 127
        %v616 = vpop.permute.xlu0 %615
        %617 = vrot.lane.b32.xlu0 %v600, 127
        %v618 = vpop.permute.xlu0 %617
        %619 = vrot.lane.b32.xlu0 %v601, 127
        %v620 = vpop.permute.xlu0 %619
        %621 = vrot.lane.b32.xlu0 %v602, 127
        %v622 = vpop.permute.xlu0 %621
        %623 = vrot.lane.b32.xlu0 %v603, 127
        %v624 = vpop.permute.xlu0 %623
        %625 = vrot.lane.b32.xlu0 %v604, 127
        %v626 = vpop.permute.xlu0 %625
        %627 = vrot.lane.b32.xlu0 %v605, 127
        %v628 = vpop.permute.xlu0 %627
        %629 = vrot.lane.b32.xlu0 %v606, 127
        %v630 = vpop.permute.xlu0 %629
        %v639 = vadd.f32 %v439, %v616
        %v640 = vadd.f32 %v440, %v618
        %v641 = vadd.f32 %v441, %v620
        %v642 = vadd.f32 %v442, %v622
        %v643 = vadd.f32 %v443, %v624
        %v644 = vadd.f32 %v444, %v626
        %v645 = vadd.f32 %v445, %v628
        %v646 = vadd.f32 %v446, %v630
        %s647 = sld [smem:[#allocation2 + $0x11]]
        %v648 = vstv %s647
        %v649 = vmul.f32 %v648, %v205
        %v650 = vmul.f32 %v648, %v206
        %v651 = vmul.f32 %v648, %v207
        %v652 = vmul.f32 %v648, %v208
        %v653 = vmul.f32 %v648, %v209
        %v654 = vmul.f32 %v648, %v210
        %v655 = vmul.f32 %v648, %v211
        %v656 = vmul.f32 %v648, %v212
        %665 = vrot.lane.b32.xlu0 %v649, 127
        %v666 = vpop.permute.xlu0 %665
        %667 = vrot.lane.b32.xlu0 %v650, 127
        %v668 = vpop.permute.xlu0 %667
        %669 = vrot.lane.b32.xlu0 %v651, 127
        %v670 = vpop.permute.xlu0 %669
        %671 = vrot.lane.b32.xlu0 %v652, 127
        %v672 = vpop.permute.xlu0 %671
        %673 = vrot.lane.b32.xlu0 %v653, 127
        %v674 = vpop.permute.xlu0 %673
        %675 = vrot.lane.b32.xlu0 %v654, 127
        %v676 = vpop.permute.xlu0 %675
        %677 = vrot.lane.b32.xlu0 %v655, 127
        %v678 = vpop.permute.xlu0 %677
        %679 = vrot.lane.b32.xlu0 %v656, 127
        %v680 = vpop.permute.xlu0 %679
        %v689 = vadd.f32 %v489, %v666
        %v690 = vadd.f32 %v490, %v668
        %v691 = vadd.f32 %v491, %v670
        %v692 = vadd.f32 %v492, %v672
        %v693 = vadd.f32 %v493, %v674
        %v694 = vadd.f32 %v494, %v676
        %v695 = vadd.f32 %v495, %v678
        %v696 = vadd.f32 %v496, %v680
        %s697 = sld [smem:[#allocation2 + $0x15]]
        %v698 = vstv %s697
        %v699 = vmul.f32 %v698, %v205
        %v700 = vmul.f32 %v698, %v206
        %v701 = vmul.f32 %v698, %v207
        %v702 = vmul.f32 %v698, %v208
        %v703 = vmul.f32 %v698, %v209
        %v704 = vmul.f32 %v698, %v210
        %v705 = vmul.f32 %v698, %v211
        %v706 = vmul.f32 %v698, %v212
        %715 = vrot.lane.b32.xlu0 %v699, 127
        %v716 = vpop.permute.xlu0 %715
        %717 = vrot.lane.b32.xlu0 %v700, 127
        %v718 = vpop.permute.xlu0 %717
        %719 = vrot.lane.b32.xlu0 %v701, 127
        %v720 = vpop.permute.xlu0 %719
        %721 = vrot.lane.b32.xlu0 %v702, 127
        %v722 = vpop.permute.xlu0 %721
        %723 = vrot.lane.b32.xlu0 %v703, 127
        %v724 = vpop.permute.xlu0 %723
        %725 = vrot.lane.b32.xlu0 %v704, 127
        %v726 = vpop.permute.xlu0 %725
        %727 = vrot.lane.b32.xlu0 %v705, 127
        %v728 = vpop.permute.xlu0 %727
        %729 = vrot.lane.b32.xlu0 %v706, 127
        %v730 = vpop.permute.xlu0 %729
        %v739 = vadd.f32 %v539, %v716
        %v740 = vadd.f32 %v540, %v718
        %v741 = vadd.f32 %v541, %v720
        %v742 = vadd.f32 %v542, %v722
        %v743 = vadd.f32 %v543, %v724
        %v744 = vadd.f32 %v544, %v726
        %v745 = vadd.f32 %v545, %v728
        %v746 = vadd.f32 %v546, %v730
        %s747 = sld [smem:[#allocation2 + $0x19]]
        %v748 = vstv %s747
        %v749 = vmul.f32 %v748, %v205
        %v750 = vmul.f32 %v748, %v206
        %v751 = vmul.f32 %v748, %v207
        %v752 = vmul.f32 %v748, %v208
        %v753 = vmul.f32 %v748, %v209
        %v754 = vmul.f32 %v748, %v210
        %v755 = vmul.f32 %v748, %v211
        %v756 = vmul.f32 %v748, %v212
        %765 = vrot.lane.b32.xlu0 %v749, 127
        %v766 = vpop.permute.xlu0 %765
        %767 = vrot.lane.b32.xlu0 %v750, 127
        %v768 = vpop.permute.xlu0 %767
        %769 = vrot.lane.b32.xlu0 %v751, 127
        %v770 = vpop.permute.xlu0 %769
        %771 = vrot.lane.b32.xlu0 %v752, 127
        %v772 = vpop.permute.xlu0 %771
        %773 = vrot.lane.b32.xlu0 %v753, 127
        %v774 = vpop.permute.xlu0 %773
        %775 = vrot.lane.b32.xlu0 %v754, 127
        %v776 = vpop.permute.xlu0 %775
        %777 = vrot.lane.b32.xlu0 %v755, 127
        %v778 = vpop.permute.xlu0 %777
        %779 = vrot.lane.b32.xlu0 %v756, 127
        %v780 = vpop.permute.xlu0 %779
        %v789 = vadd.f32 %v589, %v766
        %v790 = vadd.f32 %v590, %v768
        %v791 = vadd.f32 %v591, %v770
        %v792 = vadd.f32 %v592, %v772
        %v793 = vadd.f32 %v593, %v774
        %v794 = vadd.f32 %v594, %v776
        %v795 = vadd.f32 %v595, %v778
        %v796 = vadd.f32 %v596, %v780
        %s797 = sld [smem:[#allocation2 + $0x1d]]
        %v798 = vstv %s797
        %v799 = vmul.f32 %v798, %v205
        %v800 = vmul.f32 %v798, %v206
        %v801 = vmul.f32 %v798, %v207
        %v802 = vmul.f32 %v798, %v208
        %v803 = vmul.f32 %v798, %v209
        %v804 = vmul.f32 %v798, %v210
        %v805 = vmul.f32 %v798, %v211
        %v806 = vmul.f32 %v798, %v212
        %815 = vrot.lane.b32.xlu0 %v799, 127
        %v816 = vpop.permute.xlu0 %815
        %817 = vrot.lane.b32.xlu0 %v800, 127
        %v818 = vpop.permute.xlu0 %817
        %819 = vrot.lane.b32.xlu0 %v801, 127
        %v820 = vpop.permute.xlu0 %819
        %821 = vrot.lane.b32.xlu0 %v802, 127
        %v822 = vpop.permute.xlu0 %821
        %823 = vrot.lane.b32.xlu0 %v803, 127
        %v824 = vpop.permute.xlu0 %823
        %825 = vrot.lane.b32.xlu0 %v804, 127
        %v826 = vpop.permute.xlu0 %825
        %827 = vrot.lane.b32.xlu0 %v805, 127
        %v828 = vpop.permute.xlu0 %827
        %829 = vrot.lane.b32.xlu0 %v806, 127
        %v830 = vpop.permute.xlu0 %829
        %v839 = vadd.f32 %v639, %v816
        %v840 = vadd.f32 %v640, %v818
        %v841 = vadd.f32 %v641, %v820
        %v842 = vadd.f32 %v642, %v822
        %v843 = vadd.f32 %v643, %v824
        %v844 = vadd.f32 %v644, %v826
        %v845 = vadd.f32 %v645, %v828
        %v846 = vadd.f32 %v646, %v830
        %s847 = sld [smem:[#allocation2 + $0x12]]
        %v848 = vstv %s847
        %v849 = vmul.f32 %v848, %v286
        %v850 = vmul.f32 %v848, %v287
        %v851 = vmul.f32 %v848, %v288
        %v852 = vmul.f32 %v848, %v289
        %v853 = vmul.f32 %v848, %v290
        %v854 = vmul.f32 %v848, %v291
        %v855 = vmul.f32 %v848, %v292
        %v856 = vmul.f32 %v848, %v293
        %865 = vrot.lane.b32.xlu0 %v849, 127
        %v866 = vpop.permute.xlu0 %865
        %867 = vrot.lane.b32.xlu0 %v850, 127
        %v868 = vpop.permute.xlu0 %867
        %869 = vrot.lane.b32.xlu0 %v851, 127
        %v870 = vpop.permute.xlu0 %869
        %871 = vrot.lane.b32.xlu0 %v852, 127
        %v872 = vpop.permute.xlu0 %871
        %873 = vrot.lane.b32.xlu0 %v853, 127
        %v874 = vpop.permute.xlu0 %873
        %875 = vrot.lane.b32.xlu0 %v854, 127
        %v876 = vpop.permute.xlu0 %875
        %877 = vrot.lane.b32.xlu0 %v855, 127
        %v878 = vpop.permute.xlu0 %877
        %879 = vrot.lane.b32.xlu0 %v856, 127
        %v880 = vpop.permute.xlu0 %879
        %v889 = vadd.f32 %v689, %v866
        %v890 = vadd.f32 %v690, %v868
        %v891 = vadd.f32 %v691, %v870
        %v892 = vadd.f32 %v692, %v872
        %v893 = vadd.f32 %v693, %v874
        %v894 = vadd.f32 %v694, %v876
        %v895 = vadd.f32 %v695, %v878
        %v896 = vadd.f32 %v696, %v880
        %s897 = sld [smem:[#allocation2 + $0x16]]
        %v898 = vstv %s897
        %v899 = vmul.f32 %v898, %v286
        %v900 = vmul.f32 %v898, %v287
        %v901 = vmul.f32 %v898, %v288
        %v902 = vmul.f32 %v898, %v289
        %v903 = vmul.f32 %v898, %v290
        %v904 = vmul.f32 %v898, %v291
        %v905 = vmul.f32 %v898, %v292
        %v906 = vmul.f32 %v898, %v293
        %915 = vrot.lane.b32.xlu0 %v899, 127
        %v916 = vpop.permute.xlu0 %915
        %917 = vrot.lane.b32.xlu0 %v900, 127
        %v918 = vpop.permute.xlu0 %917
        %919 = vrot.lane.b32.xlu0 %v901, 127
        %v920 = vpop.permute.xlu0 %919
        %921 = vrot.lane.b32.xlu0 %v902, 127
        %v922 = vpop.permute.xlu0 %921
        %923 = vrot.lane.b32.xlu0 %v903, 127
        %v924 = vpop.permute.xlu0 %923
        %925 = vrot.lane.b32.xlu0 %v904, 127
        %v926 = vpop.permute.xlu0 %925
        %927 = vrot.lane.b32.xlu0 %v905, 127
        %v928 = vpop.permute.xlu0 %927
        %929 = vrot.lane.b32.xlu0 %v906, 127
        %v930 = vpop.permute.xlu0 %929
        %v939 = vadd.f32 %v739, %v916
        %v940 = vadd.f32 %v740, %v918
        %v941 = vadd.f32 %v741, %v920
        %v942 = vadd.f32 %v742, %v922
        %v943 = vadd.f32 %v743, %v924
        %v944 = vadd.f32 %v744, %v926
        %v945 = vadd.f32 %v745, %v928
        %v946 = vadd.f32 %v746, %v930
        %s947 = sld [smem:[#allocation2 + $0x1a]]
        %v948 = vstv %s947
        %v949 = vmul.f32 %v948, %v286
        %v950 = vmul.f32 %v948, %v287
        %v951 = vmul.f32 %v948, %v288
        %v952 = vmul.f32 %v948, %v289
        %v953 = vmul.f32 %v948, %v290
        %v954 = vmul.f32 %v948, %v291
        %v955 = vmul.f32 %v948, %v292
        %v956 = vmul.f32 %v948, %v293
        %965 = vrot.lane.b32.xlu0 %v949, 127
        %v966 = vpop.permute.xlu0 %965
        %967 = vrot.lane.b32.xlu0 %v950, 127
        %v968 = vpop.permute.xlu0 %967
        %969 = vrot.lane.b32.xlu0 %v951, 127
        %v970 = vpop.permute.xlu0 %969
        %971 = vrot.lane.b32.xlu0 %v952, 127
        %v972 = vpop.permute.xlu0 %971
        %973 = vrot.lane.b32.xlu0 %v953, 127
        %v974 = vpop.permute.xlu0 %973
        %975 = vrot.lane.b32.xlu0 %v954, 127
        %v976 = vpop.permute.xlu0 %975
        %977 = vrot.lane.b32.xlu0 %v955, 127
        %v978 = vpop.permute.xlu0 %977
        %979 = vrot.lane.b32.xlu0 %v956, 127
        %v980 = vpop.permute.xlu0 %979
        %v989 = vadd.f32 %v789, %v966
        %v990 = vadd.f32 %v790, %v968
        %v991 = vadd.f32 %v791, %v970
        %v992 = vadd.f32 %v792, %v972
        %v993 = vadd.f32 %v793, %v974
        %v994 = vadd.f32 %v794, %v976
        %v995 = vadd.f32 %v795, %v978
        %v996 = vadd.f32 %v796, %v980
        %s997 = sld [smem:[#allocation2 + $0x1e]]
        %v998 = vstv %s997
        %v999 = vmul.f32 %v998, %v286
        %v1000 = vmul.f32 %v998, %v287
        %v1001 = vmul.f32 %v998, %v288
        %v1002 = vmul.f32 %v998, %v289
        %v1003 = vmul.f32 %v998, %v290
        %v1004 = vmul.f32 %v998, %v291
        %v1005 = vmul.f32 %v998, %v292
        %v1006 = vmul.f32 %v998, %v293
        %1015 = vrot.lane.b32.xlu0 %v999, 127
        %v1016 = vpop.permute.xlu0 %1015
        %1017 = vrot.lane.b32.xlu0 %v1000, 127
        %v1018 = vpop.permute.xlu0 %1017
        %1019 = vrot.lane.b32.xlu0 %v1001, 127
        %v1020 = vpop.permute.xlu0 %1019
        %1021 = vrot.lane.b32.xlu0 %v1002, 127
        %v1022 = vpop.permute.xlu0 %1021
        %1023 = vrot.lane.b32.xlu0 %v1003, 127
        %v1024 = vpop.permute.xlu0 %1023
        %1025 = vrot.lane.b32.xlu0 %v1004, 127
        %v1026 = vpop.permute.xlu0 %1025
        %1027 = vrot.lane.b32.xlu0 %v1005, 127
        %v1028 = vpop.permute.xlu0 %1027
        %1029 = vrot.lane.b32.xlu0 %v1006, 127
        %v1030 = vpop.permute.xlu0 %1029
        %v1039 = vadd.f32 %v839, %v1016
        %v1040 = vadd.f32 %v840, %v1018
        %v1041 = vadd.f32 %v841, %v1020
        %v1042 = vadd.f32 %v842, %v1022
        %v1043 = vadd.f32 %v843, %v1024
        %v1044 = vadd.f32 %v844, %v1026
        %v1045 = vadd.f32 %v845, %v1028
        %v1046 = vadd.f32 %v846, %v1030
        %s1047 = sld [smem:[#allocation2 + $0x13]]
        %v1048 = vstv %s1047
        %v1049 = vmul.f32 %v1048, %v367
        %v1050 = vmul.f32 %v1048, %v368
        %v1051 = vmul.f32 %v1048, %v369
        %v1052 = vmul.f32 %v1048, %v370
        %v1053 = vmul.f32 %v1048, %v371
        %v1054 = vmul.f32 %v1048, %v372
        %v1055 = vmul.f32 %v1048, %v373
        %v1056 = vmul.f32 %v1048, %v374
        %1065 = vrot.lane.b32.xlu0 %v1049, 127
        %v1066 = vpop.permute.xlu0 %1065
        %1067 = vrot.lane.b32.xlu0 %v1050, 127
        %v1068 = vpop.permute.xlu0 %1067
        %1069 = vrot.lane.b32.xlu0 %v1051, 127
        %v1070 = vpop.permute.xlu0 %1069
        %1071 = vrot.lane.b32.xlu0 %v1052, 127
        %v1072 = vpop.permute.xlu0 %1071
        %1073 = vrot.lane.b32.xlu0 %v1053, 127
        %v1074 = vpop.permute.xlu0 %1073
        %1075 = vrot.lane.b32.xlu0 %v1054, 127
        %v1076 = vpop.permute.xlu0 %1075
        %1077 = vrot.lane.b32.xlu0 %v1055, 127
        %v1078 = vpop.permute.xlu0 %1077
        %1079 = vrot.lane.b32.xlu0 %v1056, 127
        %v1080 = vpop.permute.xlu0 %1079
        %v1089 = vadd.f32 %v889, %v1066
        %v1090 = vadd.f32 %v890, %v1068
        %v1091 = vadd.f32 %v891, %v1070
        %v1092 = vadd.f32 %v892, %v1072
        %v1093 = vadd.f32 %v893, %v1074
        %v1094 = vadd.f32 %v894, %v1076
        %v1095 = vadd.f32 %v895, %v1078
        %v1096 = vadd.f32 %v896, %v1080
        %s1097 = sld [smem:[#allocation2 + $0x17]]
        %v1098 = vstv %s1097
        %v1099 = vmul.f32 %v1098, %v367
        %v1100 = vmul.f32 %v1098, %v368
        %v1101 = vmul.f32 %v1098, %v369
        %v1102 = vmul.f32 %v1098, %v370
        %v1103 = vmul.f32 %v1098, %v371
        %v1104 = vmul.f32 %v1098, %v372
        %v1105 = vmul.f32 %v1098, %v373
        %v1106 = vmul.f32 %v1098, %v374
        %1115 = vrot.lane.b32.xlu0 %v1099, 127
        %v1116 = vpop.permute.xlu0 %1115
        %1117 = vrot.lane.b32.xlu0 %v1100, 127
        %v1118 = vpop.permute.xlu0 %1117
        %1119 = vrot.lane.b32.xlu0 %v1101, 127
        %v1120 = vpop.permute.xlu0 %1119
        %1121 = vrot.lane.b32.xlu0 %v1102, 127
        %v1122 = vpop.permute.xlu0 %1121
        %1123 = vrot.lane.b32.xlu0 %v1103, 127
        %v1124 = vpop.permute.xlu0 %1123
        %1125 = vrot.lane.b32.xlu0 %v1104, 127
        %v1126 = vpop.permute.xlu0 %1125
        %1127 = vrot.lane.b32.xlu0 %v1105, 127
        %v1128 = vpop.permute.xlu0 %1127
        %1129 = vrot.lane.b32.xlu0 %v1106, 127
        %v1130 = vpop.permute.xlu0 %1129
        %v1139 = vadd.f32 %v939, %v1116
        %v1140 = vadd.f32 %v940, %v1118
        %v1141 = vadd.f32 %v941, %v1120
        %v1142 = vadd.f32 %v942, %v1122
        %v1143 = vadd.f32 %v943, %v1124
        %v1144 = vadd.f32 %v944, %v1126
        %v1145 = vadd.f32 %v945, %v1128
        %v1146 = vadd.f32 %v946, %v1130
        %s1147 = sld [smem:[#allocation2 + $0x1b]]
        %v1148 = vstv %s1147
        %v1149 = vmul.f32 %v1148, %v367
        %v1150 = vmul.f32 %v1148, %v368
        %v1151 = vmul.f32 %v1148, %v369
        %v1152 = vmul.f32 %v1148, %v370
        %v1153 = vmul.f32 %v1148, %v371
        %v1154 = vmul.f32 %v1148, %v372
        %v1155 = vmul.f32 %v1148, %v373
        %v1156 = vmul.f32 %v1148, %v374
        %1165 = vrot.lane.b32.xlu0 %v1149, 127
        %v1166 = vpop.permute.xlu0 %1165
        %1167 = vrot.lane.b32.xlu0 %v1150, 127
        %v1168 = vpop.permute.xlu0 %1167
        %1169 = vrot.lane.b32.xlu0 %v1151, 127
        %v1170 = vpop.permute.xlu0 %1169
        %1171 = vrot.lane.b32.xlu0 %v1152, 127
        %v1172 = vpop.permute.xlu0 %1171
        %1173 = vrot.lane.b32.xlu0 %v1153, 127
        %v1174 = vpop.permute.xlu0 %1173
        %1175 = vrot.lane.b32.xlu0 %v1154, 127
        %v1176 = vpop.permute.xlu0 %1175
        %1177 = vrot.lane.b32.xlu0 %v1155, 127
        %v1178 = vpop.permute.xlu0 %1177
        %1179 = vrot.lane.b32.xlu0 %v1156, 127
        %v1180 = vpop.permute.xlu0 %1179
        %v1189 = vadd.f32 %v989, %v1166
        %v1190 = vadd.f32 %v990, %v1168
        %v1191 = vadd.f32 %v991, %v1170
        %v1192 = vadd.f32 %v992, %v1172
        %v1193 = vadd.f32 %v993, %v1174
        %v1194 = vadd.f32 %v994, %v1176
        %v1195 = vadd.f32 %v995, %v1178
        %v1196 = vadd.f32 %v996, %v1180
        %s1197 = sld [smem:[#allocation2 + $0x1f]]
        %v1198 = vstv %s1197
        %v1199 = vmul.f32 %v1198, %v367
        %v1200 = vmul.f32 %v1198, %v368
        %v1201 = vmul.f32 %v1198, %v369
        %v1202 = vmul.f32 %v1198, %v370
        %v1203 = vmul.f32 %v1198, %v371
        %v1204 = vmul.f32 %v1198, %v372
        %v1205 = vmul.f32 %v1198, %v373
        %v1206 = vmul.f32 %v1198, %v374
        %1215 = vrot.lane.b32.xlu0 %v1199, 127
        %v1216 = vpop.permute.xlu0 %1215
        %1217 = vrot.lane.b32.xlu0 %v1200, 127
        %v1218 = vpop.permute.xlu0 %1217
        %1219 = vrot.lane.b32.xlu0 %v1201, 127
        %v1220 = vpop.permute.xlu0 %1219
        %1221 = vrot.lane.b32.xlu0 %v1202, 127
        %v1222 = vpop.permute.xlu0 %1221
        %1223 = vrot.lane.b32.xlu0 %v1203, 127
        %v1224 = vpop.permute.xlu0 %1223
        %1225 = vrot.lane.b32.xlu0 %v1204, 127
        %v1226 = vpop.permute.xlu0 %1225
        %1227 = vrot.lane.b32.xlu0 %v1205, 127
        %v1228 = vpop.permute.xlu0 %1227
        %1229 = vrot.lane.b32.xlu0 %v1206, 127
        %v1230 = vpop.permute.xlu0 %1229
        %v1239 = vadd.f32 %v1039, %v1216
        %v1240 = vadd.f32 %v1040, %v1218
        %v1241 = vadd.f32 %v1041, %v1220
        %v1242 = vadd.f32 %v1042, %v1222
        %v1243 = vadd.f32 %v1043, %v1224
        %v1244 = vadd.f32 %v1044, %v1226
        %v1245 = vadd.f32 %v1045, %v1228
        %v1246 = vadd.f32 %v1046, %v1230
        %s1247 = sld [smem:[#allocation2 + $0x20]]
        %v1248 = vstv %s1247
        %v1249 = vmul.f32 %v1248, %v156
        %v1250 = vmul.f32 %v1248, %v157
        %v1251 = vmul.f32 %v1248, %v158
        %v1252 = vmul.f32 %v1248, %v159
        %v1253 = vmul.f32 %v1248, %v160
        %v1254 = vmul.f32 %v1248, %v161
        %v1255 = vmul.f32 %v1248, %v162
        %v1256 = vmul.f32 %v1248, %v163
        %1265 = vrot.lane.b32.xlu0 %v1249, 126
        %v1266 = vpop.permute.xlu0 %1265
        %1267 = vrot.lane.b32.xlu0 %v1250, 126
        %v1268 = vpop.permute.xlu0 %1267
        %1269 = vrot.lane.b32.xlu0 %v1251, 126
        %v1270 = vpop.permute.xlu0 %1269
        %1271 = vrot.lane.b32.xlu0 %v1252, 126
        %v1272 = vpop.permute.xlu0 %1271
        %1273 = vrot.lane.b32.xlu0 %v1253, 126
        %v1274 = vpop.permute.xlu0 %1273
        %1275 = vrot.lane.b32.xlu0 %v1254, 126
        %v1276 = vpop.permute.xlu0 %1275
        %1277 = vrot.lane.b32.xlu0 %v1255, 126
        %v1278 = vpop.permute.xlu0 %1277
        %1279 = vrot.lane.b32.xlu0 %v1256, 126
        %v1280 = vpop.permute.xlu0 %1279
        %v1289 = vadd.f32 %v1089, %v1266
        %v1290 = vadd.f32 %v1090, %v1268
        %v1291 = vadd.f32 %v1091, %v1270
        %v1292 = vadd.f32 %v1092, %v1272
        %v1293 = vadd.f32 %v1093, %v1274
        %v1294 = vadd.f32 %v1094, %v1276
        %v1295 = vadd.f32 %v1095, %v1278
        %v1296 = vadd.f32 %v1096, %v1280
        %s1297 = sld [smem:[#allocation2 + $0x24]]
        %v1298 = vstv %s1297
        %v1299 = vmul.f32 %v1298, %v156
        %v1300 = vmul.f32 %v1298, %v157
        %v1301 = vmul.f32 %v1298, %v158
        %v1302 = vmul.f32 %v1298, %v159
        %v1303 = vmul.f32 %v1298, %v160
        %v1304 = vmul.f32 %v1298, %v161
        %v1305 = vmul.f32 %v1298, %v162
        %v1306 = vmul.f32 %v1298, %v163
        %1315 = vrot.lane.b32.xlu0 %v1299, 126
        %v1316 = vpop.permute.xlu0 %1315
        %1317 = vrot.lane.b32.xlu0 %v1300, 126
        %v1318 = vpop.permute.xlu0 %1317
        %1319 = vrot.lane.b32.xlu0 %v1301, 126
        %v1320 = vpop.permute.xlu0 %1319
        %1321 = vrot.lane.b32.xlu0 %v1302, 126
        %v1322 = vpop.permute.xlu0 %1321
        %1323 = vrot.lane.b32.xlu0 %v1303, 126
        %v1324 = vpop.permute.xlu0 %1323
        %1325 = vrot.lane.b32.xlu0 %v1304, 126
        %v1326 = vpop.permute.xlu0 %1325
        %1327 = vrot.lane.b32.xlu0 %v1305, 126
        %v1328 = vpop.permute.xlu0 %1327
        %1329 = vrot.lane.b32.xlu0 %v1306, 126
        %v1330 = vpop.permute.xlu0 %1329
        %v1339 = vadd.f32 %v1139, %v1316
        %v1340 = vadd.f32 %v1140, %v1318
        %v1341 = vadd.f32 %v1141, %v1320
        %v1342 = vadd.f32 %v1142, %v1322
        %v1343 = vadd.f32 %v1143, %v1324
        %v1344 = vadd.f32 %v1144, %v1326
        %v1345 = vadd.f32 %v1145, %v1328
        %v1346 = vadd.f32 %v1146, %v1330
        %s1347 = sld [smem:[#allocation2 + $0x28]]
        %v1348 = vstv %s1347
        %v1349 = vmul.f32 %v1348, %v156
        %v1350 = vmul.f32 %v1348, %v157
        %v1351 = vmul.f32 %v1348, %v158
        %v1352 = vmul.f32 %v1348, %v159
        %v1353 = vmul.f32 %v1348, %v160
        %v1354 = vmul.f32 %v1348, %v161
        %v1355 = vmul.f32 %v1348, %v162
        %v1356 = vmul.f32 %v1348, %v163
        %1365 = vrot.lane.b32.xlu0 %v1349, 126
        %v1366 = vpop.permute.xlu0 %1365
        %1367 = vrot.lane.b32.xlu0 %v1350, 126
        %v1368 = vpop.permute.xlu0 %1367
        %1369 = vrot.lane.b32.xlu0 %v1351, 126
        %v1370 = vpop.permute.xlu0 %1369
        %1371 = vrot.lane.b32.xlu0 %v1352, 126
        %v1372 = vpop.permute.xlu0 %1371
        %1373 = vrot.lane.b32.xlu0 %v1353, 126
        %v1374 = vpop.permute.xlu0 %1373
        %1375 = vrot.lane.b32.xlu0 %v1354, 126
        %v1376 = vpop.permute.xlu0 %1375
        %1377 = vrot.lane.b32.xlu0 %v1355, 126
        %v1378 = vpop.permute.xlu0 %1377
        %1379 = vrot.lane.b32.xlu0 %v1356, 126
        %v1380 = vpop.permute.xlu0 %1379
        %v1389 = vadd.f32 %v1189, %v1366
        %v1390 = vadd.f32 %v1190, %v1368
        %v1391 = vadd.f32 %v1191, %v1370
        %v1392 = vadd.f32 %v1192, %v1372
        %v1393 = vadd.f32 %v1193, %v1374
        %v1394 = vadd.f32 %v1194, %v1376
        %v1395 = vadd.f32 %v1195, %v1378
        %v1396 = vadd.f32 %v1196, %v1380
        %s1397 = sld [smem:[#allocation2 + $0x2c]]
        %v1398 = vstv %s1397
        %v1399 = vmul.f32 %v1398, %v156
        %v1400 = vmul.f32 %v1398, %v157
        %v1401 = vmul.f32 %v1398, %v158
        %v1402 = vmul.f32 %v1398, %v159
        %v1403 = vmul.f32 %v1398, %v160
        %v1404 = vmul.f32 %v1398, %v161
        %v1405 = vmul.f32 %v1398, %v162
        %v1406 = vmul.f32 %v1398, %v163
        %1415 = vrot.lane.b32.xlu0 %v1399, 126
        %v1416 = vpop.permute.xlu0 %1415
        %1417 = vrot.lane.b32.xlu0 %v1400, 126
        %v1418 = vpop.permute.xlu0 %1417
        %1419 = vrot.lane.b32.xlu0 %v1401, 126
        %v1420 = vpop.permute.xlu0 %1419
        %1421 = vrot.lane.b32.xlu0 %v1402, 126
        %v1422 = vpop.permute.xlu0 %1421
        %1423 = vrot.lane.b32.xlu0 %v1403, 126
        %v1424 = vpop.permute.xlu0 %1423
        %1425 = vrot.lane.b32.xlu0 %v1404, 126
        %v1426 = vpop.permute.xlu0 %1425
        %1427 = vrot.lane.b32.xlu0 %v1405, 126
        %v1428 = vpop.permute.xlu0 %1427
        %1429 = vrot.lane.b32.xlu0 %v1406, 126
        %v1430 = vpop.permute.xlu0 %1429
        %v1439 = vadd.f32 %v1239, %v1416
        %v1440 = vadd.f32 %v1240, %v1418
        %v1441 = vadd.f32 %v1241, %v1420
        %v1442 = vadd.f32 %v1242, %v1422
        %v1443 = vadd.f32 %v1243, %v1424
        %v1444 = vadd.f32 %v1244, %v1426
        %v1445 = vadd.f32 %v1245, %v1428
        %v1446 = vadd.f32 %v1246, %v1430
        %s1447 = sld [smem:[#allocation2 + $0x21]]
        %v1448 = vstv %s1447
        %v1449 = vmul.f32 %v1448, %v205
        %v1450 = vmul.f32 %v1448, %v206
        %v1451 = vmul.f32 %v1448, %v207
        %v1452 = vmul.f32 %v1448, %v208
        %v1453 = vmul.f32 %v1448, %v209
        %v1454 = vmul.f32 %v1448, %v210
        %v1455 = vmul.f32 %v1448, %v211
        %v1456 = vmul.f32 %v1448, %v212
        %1465 = vrot.lane.b32.xlu0 %v1449, 126
        %v1466 = vpop.permute.xlu0 %1465
        %1467 = vrot.lane.b32.xlu0 %v1450, 126
        %v1468 = vpop.permute.xlu0 %1467
        %1469 = vrot.lane.b32.xlu0 %v1451, 126
        %v1470 = vpop.permute.xlu0 %1469
        %1471 = vrot.lane.b32.xlu0 %v1452, 126
        %v1472 = vpop.permute.xlu0 %1471
        %1473 = vrot.lane.b32.xlu0 %v1453, 126
        %v1474 = vpop.permute.xlu0 %1473
        %1475 = vrot.lane.b32.xlu0 %v1454, 126
        %v1476 = vpop.permute.xlu0 %1475
        %1477 = vrot.lane.b32.xlu0 %v1455, 126
        %v1478 = vpop.permute.xlu0 %1477
        %1479 = vrot.lane.b32.xlu0 %v1456, 126
        %v1480 = vpop.permute.xlu0 %1479
        %v1489 = vadd.f32 %v1289, %v1466
        %v1490 = vadd.f32 %v1290, %v1468
        %v1491 = vadd.f32 %v1291, %v1470
        %v1492 = vadd.f32 %v1292, %v1472
        %v1493 = vadd.f32 %v1293, %v1474
        %v1494 = vadd.f32 %v1294, %v1476
        %v1495 = vadd.f32 %v1295, %v1478
        %v1496 = vadd.f32 %v1296, %v1480
        %s1497 = sld [smem:[#allocation2 + $0x25]]
        %v1498 = vstv %s1497
        %v1499 = vmul.f32 %v1498, %v205
        %v1500 = vmul.f32 %v1498, %v206
        %v1501 = vmul.f32 %v1498, %v207
        %v1502 = vmul.f32 %v1498, %v208
        %v1503 = vmul.f32 %v1498, %v209
        %v1504 = vmul.f32 %v1498, %v210
        %v1505 = vmul.f32 %v1498, %v211
        %v1506 = vmul.f32 %v1498, %v212
        %1515 = vrot.lane.b32.xlu0 %v1499, 126
        %v1516 = vpop.permute.xlu0 %1515
        %1517 = vrot.lane.b32.xlu0 %v1500, 126
        %v1518 = vpop.permute.xlu0 %1517
        %1519 = vrot.lane.b32.xlu0 %v1501, 126
        %v1520 = vpop.permute.xlu0 %1519
        %1521 = vrot.lane.b32.xlu0 %v1502, 126
        %v1522 = vpop.permute.xlu0 %1521
        %1523 = vrot.lane.b32.xlu0 %v1503, 126
        %v1524 = vpop.permute.xlu0 %1523
        %1525 = vrot.lane.b32.xlu0 %v1504, 126
        %v1526 = vpop.permute.xlu0 %1525
        %1527 = vrot.lane.b32.xlu0 %v1505, 126
        %v1528 = vpop.permute.xlu0 %1527
        %1529 = vrot.lane.b32.xlu0 %v1506, 126
        %v1530 = vpop.permute.xlu0 %1529
        %v1539 = vadd.f32 %v1339, %v1516
        %v1540 = vadd.f32 %v1340, %v1518
        %v1541 = vadd.f32 %v1341, %v1520
        %v1542 = vadd.f32 %v1342, %v1522
        %v1543 = vadd.f32 %v1343, %v1524
        %v1544 = vadd.f32 %v1344, %v1526
        %v1545 = vadd.f32 %v1345, %v1528
        %v1546 = vadd.f32 %v1346, %v1530
        %s1547 = sld [smem:[#allocation2 + $0x29]]
        %v1548 = vstv %s1547
        %v1549 = vmul.f32 %v1548, %v205
        %v1550 = vmul.f32 %v1548, %v206
        %v1551 = vmul.f32 %v1548, %v207
        %v1552 = vmul.f32 %v1548, %v208
        %v1553 = vmul.f32 %v1548, %v209
        %v1554 = vmul.f32 %v1548, %v210
        %v1555 = vmul.f32 %v1548, %v211
        %v1556 = vmul.f32 %v1548, %v212
        %1565 = vrot.lane.b32.xlu0 %v1549, 126
        %v1566 = vpop.permute.xlu0 %1565
        %1567 = vrot.lane.b32.xlu0 %v1550, 126
        %v1568 = vpop.permute.xlu0 %1567
        %1569 = vrot.lane.b32.xlu0 %v1551, 126
        %v1570 = vpop.permute.xlu0 %1569
        %1571 = vrot.lane.b32.xlu0 %v1552, 126
        %v1572 = vpop.permute.xlu0 %1571
        %1573 = vrot.lane.b32.xlu0 %v1553, 126
        %v1574 = vpop.permute.xlu0 %1573
        %1575 = vrot.lane.b32.xlu0 %v1554, 126
        %v1576 = vpop.permute.xlu0 %1575
        %1577 = vrot.lane.b32.xlu0 %v1555, 126
        %v1578 = vpop.permute.xlu0 %1577
        %1579 = vrot.lane.b32.xlu0 %v1556, 126
        %v1580 = vpop.permute.xlu0 %1579
        %v1589 = vadd.f32 %v1389, %v1566
        %v1590 = vadd.f32 %v1390, %v1568
        %v1591 = vadd.f32 %v1391, %v1570
        %v1592 = vadd.f32 %v1392, %v1572
        %v1593 = vadd.f32 %v1393, %v1574
        %v1594 = vadd.f32 %v1394, %v1576
        %v1595 = vadd.f32 %v1395, %v1578
        %v1596 = vadd.f32 %v1396, %v1580
        %s1597 = sld [smem:[#allocation2 + $0x2d]]
        %v1598 = vstv %s1597
        %v1599 = vmul.f32 %v1598, %v205
        %v1600 = vmul.f32 %v1598, %v206
        %v1601 = vmul.f32 %v1598, %v207
        %v1602 = vmul.f32 %v1598, %v208
        %v1603 = vmul.f32 %v1598, %v209
        %v1604 = vmul.f32 %v1598, %v210
        %v1605 = vmul.f32 %v1598, %v211
        %v1606 = vmul.f32 %v1598, %v212
        %1615 = vrot.lane.b32.xlu0 %v1599, 126
        %v1616 = vpop.permute.xlu0 %1615
        %1617 = vrot.lane.b32.xlu0 %v1600, 126
        %v1618 = vpop.permute.xlu0 %1617
        %1619 = vrot.lane.b32.xlu0 %v1601, 126
        %v1620 = vpop.permute.xlu0 %1619
        %1621 = vrot.lane.b32.xlu0 %v1602, 126
        %v1622 = vpop.permute.xlu0 %1621
        %1623 = vrot.lane.b32.xlu0 %v1603, 126
        %v1624 = vpop.permute.xlu0 %1623
        %1625 = vrot.lane.b32.xlu0 %v1604, 126
        %v1626 = vpop.permute.xlu0 %1625
        %1627 = vrot.lane.b32.xlu0 %v1605, 126
        %v1628 = vpop.permute.xlu0 %1627
        %1629 = vrot.lane.b32.xlu0 %v1606, 126
        %v1630 = vpop.permute.xlu0 %1629
        %v1639 = vadd.f32 %v1439, %v1616
        %v1640 = vadd.f32 %v1440, %v1618
        %v1641 = vadd.f32 %v1441, %v1620
        %v1642 = vadd.f32 %v1442, %v1622
        %v1643 = vadd.f32 %v1443, %v1624
        %v1644 = vadd.f32 %v1444, %v1626
        %v1645 = vadd.f32 %v1445, %v1628
        %v1646 = vadd.f32 %v1446, %v1630
        %s1647 = sld [smem:[#allocation2 + $0x22]]
        %v1648 = vstv %s1647
        %v1649 = vmul.f32 %v1648, %v286
        %v1650 = vmul.f32 %v1648, %v287
        %v1651 = vmul.f32 %v1648, %v288
        %v1652 = vmul.f32 %v1648, %v289
        %v1653 = vmul.f32 %v1648, %v290
        %v1654 = vmul.f32 %v1648, %v291
        %v1655 = vmul.f32 %v1648, %v292
        %v1656 = vmul.f32 %v1648, %v293
        %1665 = vrot.lane.b32.xlu0 %v1649, 126
        %v1666 = vpop.permute.xlu0 %1665
        %1667 = vrot.lane.b32.xlu0 %v1650, 126
        %v1668 = vpop.permute.xlu0 %1667
        %1669 = vrot.lane.b32.xlu0 %v1651, 126
        %v1670 = vpop.permute.xlu0 %1669
        %1671 = vrot.lane.b32.xlu0 %v1652, 126
        %v1672 = vpop.permute.xlu0 %1671
        %1673 = vrot.lane.b32.xlu0 %v1653, 126
        %v1674 = vpop.permute.xlu0 %1673
        %1675 = vrot.lane.b32.xlu0 %v1654, 126
        %v1676 = vpop.permute.xlu0 %1675
        %1677 = vrot.lane.b32.xlu0 %v1655, 126
        %v1678 = vpop.permute.xlu0 %1677
        %1679 = vrot.lane.b32.xlu0 %v1656, 126
        %v1680 = vpop.permute.xlu0 %1679
        %v1689 = vadd.f32 %v1489, %v1666
        %v1690 = vadd.f32 %v1490, %v1668
        %v1691 = vadd.f32 %v1491, %v1670
        %v1692 = vadd.f32 %v1492, %v1672
        %v1693 = vadd.f32 %v1493, %v1674
        %v1694 = vadd.f32 %v1494, %v1676
        %v1695 = vadd.f32 %v1495, %v1678
        %v1696 = vadd.f32 %v1496, %v1680
        %s1697 = sld [smem:[#allocation2 + $0x26]]
        %v1698 = vstv %s1697
        %v1699 = vmul.f32 %v1698, %v286
        %v1700 = vmul.f32 %v1698, %v287
        %v1701 = vmul.f32 %v1698, %v288
        %v1702 = vmul.f32 %v1698, %v289
        %v1703 = vmul.f32 %v1698, %v290
        %v1704 = vmul.f32 %v1698, %v291
        %v1705 = vmul.f32 %v1698, %v292
        %v1706 = vmul.f32 %v1698, %v293
        %1715 = vrot.lane.b32.xlu0 %v1699, 126
        %v1716 = vpop.permute.xlu0 %1715
        %1717 = vrot.lane.b32.xlu0 %v1700, 126
        %v1718 = vpop.permute.xlu0 %1717
        %1719 = vrot.lane.b32.xlu0 %v1701, 126
        %v1720 = vpop.permute.xlu0 %1719
        %1721 = vrot.lane.b32.xlu0 %v1702, 126
        %v1722 = vpop.permute.xlu0 %1721
        %1723 = vrot.lane.b32.xlu0 %v1703, 126
        %v1724 = vpop.permute.xlu0 %1723
        %1725 = vrot.lane.b32.xlu0 %v1704, 126
        %v1726 = vpop.permute.xlu0 %1725
        %1727 = vrot.lane.b32.xlu0 %v1705, 126
        %v1728 = vpop.permute.xlu0 %1727
        %1729 = vrot.lane.b32.xlu0 %v1706, 126
        %v1730 = vpop.permute.xlu0 %1729
        %v1739 = vadd.f32 %v1539, %v1716
        %v1740 = vadd.f32 %v1540, %v1718
        %v1741 = vadd.f32 %v1541, %v1720
        %v1742 = vadd.f32 %v1542, %v1722
        %v1743 = vadd.f32 %v1543, %v1724
        %v1744 = vadd.f32 %v1544, %v1726
        %v1745 = vadd.f32 %v1545, %v1728
        %v1746 = vadd.f32 %v1546, %v1730
        %s1747 = sld [smem:[#allocation2 + $0x2a]]
        %v1748 = vstv %s1747
        %v1749 = vmul.f32 %v1748, %v286
        %v1750 = vmul.f32 %v1748, %v287
        %v1751 = vmul.f32 %v1748, %v288
        %v1752 = vmul.f32 %v1748, %v289
        %v1753 = vmul.f32 %v1748, %v290
        %v1754 = vmul.f32 %v1748, %v291
        %v1755 = vmul.f32 %v1748, %v292
        %v1756 = vmul.f32 %v1748, %v293
        %1765 = vrot.lane.b32.xlu0 %v1749, 126
        %v1766 = vpop.permute.xlu0 %1765
        %1767 = vrot.lane.b32.xlu0 %v1750, 126
        %v1768 = vpop.permute.xlu0 %1767
        %1769 = vrot.lane.b32.xlu0 %v1751, 126
        %v1770 = vpop.permute.xlu0 %1769
        %1771 = vrot.lane.b32.xlu0 %v1752, 126
        %v1772 = vpop.permute.xlu0 %1771
        %1773 = vrot.lane.b32.xlu0 %v1753, 126
        %v1774 = vpop.permute.xlu0 %1773
        %1775 = vrot.lane.b32.xlu0 %v1754, 126
        %v1776 = vpop.permute.xlu0 %1775
        %1777 = vrot.lane.b32.xlu0 %v1755, 126
        %v1778 = vpop.permute.xlu0 %1777
        %1779 = vrot.lane.b32.xlu0 %v1756, 126
        %v1780 = vpop.permute.xlu0 %1779
        %v1789 = vadd.f32 %v1589, %v1766
        %v1790 = vadd.f32 %v1590, %v1768
        %v1791 = vadd.f32 %v1591, %v1770
        %v1792 = vadd.f32 %v1592, %v1772
        %v1793 = vadd.f32 %v1593, %v1774
        %v1794 = vadd.f32 %v1594, %v1776
        %v1795 = vadd.f32 %v1595, %v1778
        %v1796 = vadd.f32 %v1596, %v1780
        %s1797 = sld [smem:[#allocation2 + $0x2e]]
        %v1798 = vstv %s1797
        %v1799 = vmul.f32 %v1798, %v286
        %v1800 = vmul.f32 %v1798, %v287
        %v1801 = vmul.f32 %v1798, %v288
        %v1802 = vmul.f32 %v1798, %v289
        %v1803 = vmul.f32 %v1798, %v290
        %v1804 = vmul.f32 %v1798, %v291
        %v1805 = vmul.f32 %v1798, %v292
        %v1806 = vmul.f32 %v1798, %v293
        %1815 = vrot.lane.b32.xlu0 %v1799, 126
        %v1816 = vpop.permute.xlu0 %1815
        %1817 = vrot.lane.b32.xlu0 %v1800, 126
        %v1818 = vpop.permute.xlu0 %1817
        %1819 = vrot.lane.b32.xlu0 %v1801, 126
        %v1820 = vpop.permute.xlu0 %1819
        %1821 = vrot.lane.b32.xlu0 %v1802, 126
        %v1822 = vpop.permute.xlu0 %1821
        %1823 = vrot.lane.b32.xlu0 %v1803, 126
        %v1824 = vpop.permute.xlu0 %1823
        %1825 = vrot.lane.b32.xlu0 %v1804, 126
        %v1826 = vpop.permute.xlu0 %1825
        %1827 = vrot.lane.b32.xlu0 %v1805, 126
        %v1828 = vpop.permute.xlu0 %1827
        %1829 = vrot.lane.b32.xlu0 %v1806, 126
        %v1830 = vpop.permute.xlu0 %1829
        %v1839 = vadd.f32 %v1639, %v1816
        %v1840 = vadd.f32 %v1640, %v1818
        %v1841 = vadd.f32 %v1641, %v1820
        %v1842 = vadd.f32 %v1642, %v1822
        %v1843 = vadd.f32 %v1643, %v1824
        %v1844 = vadd.f32 %v1644, %v1826
        %v1845 = vadd.f32 %v1645, %v1828
        %v1846 = vadd.f32 %v1646, %v1830
        %s1847 = sld [smem:[#allocation2 + $0x23]]
        %v1848 = vstv %s1847
        %v1849 = vmul.f32 %v1848, %v367
        %v1850 = vmul.f32 %v1848, %v368
        %v1851 = vmul.f32 %v1848, %v369
        %v1852 = vmul.f32 %v1848, %v370
        %v1853 = vmul.f32 %v1848, %v371
        %v1854 = vmul.f32 %v1848, %v372
        %v1855 = vmul.f32 %v1848, %v373
        %v1856 = vmul.f32 %v1848, %v374
        %1865 = vrot.lane.b32.xlu0 %v1849, 126
        %v1866 = vpop.permute.xlu0 %1865
        %1867 = vrot.lane.b32.xlu0 %v1850, 126
        %v1868 = vpop.permute.xlu0 %1867
        %1869 = vrot.lane.b32.xlu0 %v1851, 126
        %v1870 = vpop.permute.xlu0 %1869
        %1871 = vrot.lane.b32.xlu0 %v1852, 126
        %v1872 = vpop.permute.xlu0 %1871
        %1873 = vrot.lane.b32.xlu0 %v1853, 126
        %v1874 = vpop.permute.xlu0 %1873
        %1875 = vrot.lane.b32.xlu0 %v1854, 126
        %v1876 = vpop.permute.xlu0 %1875
        %1877 = vrot.lane.b32.xlu0 %v1855, 126
        %v1878 = vpop.permute.xlu0 %1877
        %1879 = vrot.lane.b32.xlu0 %v1856, 126
        %v1880 = vpop.permute.xlu0 %1879
        %v1889 = vadd.f32 %v1689, %v1866
        %v1890 = vadd.f32 %v1690, %v1868
        %v1891 = vadd.f32 %v1691, %v1870
        %v1892 = vadd.f32 %v1692, %v1872
        %v1893 = vadd.f32 %v1693, %v1874
        %v1894 = vadd.f32 %v1694, %v1876
        %v1895 = vadd.f32 %v1695, %v1878
        %v1896 = vadd.f32 %v1696, %v1880
        %s1897 = sld [smem:[#allocation2 + $0x27]]
        %v1898 = vstv %s1897
        %v1899 = vmul.f32 %v1898, %v367
        %v1900 = vmul.f32 %v1898, %v368
        %v1901 = vmul.f32 %v1898, %v369
        %v1902 = vmul.f32 %v1898, %v370
        %v1903 = vmul.f32 %v1898, %v371
        %v1904 = vmul.f32 %v1898, %v372
        %v1905 = vmul.f32 %v1898, %v373
        %v1906 = vmul.f32 %v1898, %v374
        %1915 = vrot.lane.b32.xlu0 %v1899, 126
        %v1916 = vpop.permute.xlu0 %1915
        %1917 = vrot.lane.b32.xlu0 %v1900, 126
        %v1918 = vpop.permute.xlu0 %1917
        %1919 = vrot.lane.b32.xlu0 %v1901, 126
        %v1920 = vpop.permute.xlu0 %1919
        %1921 = vrot.lane.b32.xlu0 %v1902, 126
        %v1922 = vpop.permute.xlu0 %1921
        %1923 = vrot.lane.b32.xlu0 %v1903, 126
        %v1924 = vpop.permute.xlu0 %1923
        %1925 = vrot.lane.b32.xlu0 %v1904, 126
        %v1926 = vpop.permute.xlu0 %1925
        %1927 = vrot.lane.b32.xlu0 %v1905, 126
        %v1928 = vpop.permute.xlu0 %1927
        %1929 = vrot.lane.b32.xlu0 %v1906, 126
        %v1930 = vpop.permute.xlu0 %1929
        %v1939 = vadd.f32 %v1739, %v1916
        %v1940 = vadd.f32 %v1740, %v1918
        %v1941 = vadd.f32 %v1741, %v1920
        %v1942 = vadd.f32 %v1742, %v1922
        %v1943 = vadd.f32 %v1743, %v1924
        %v1944 = vadd.f32 %v1744, %v1926
        %v1945 = vadd.f32 %v1745, %v1928
        %v1946 = vadd.f32 %v1746, %v1930
        %s1947 = sld [smem:[#allocation2 + $0x2b]]
        %v1948 = vstv %s1947
        %v1949 = vmul.f32 %v1948, %v367
        %v1950 = vmul.f32 %v1948, %v368
        %v1951 = vmul.f32 %v1948, %v369
        %v1952 = vmul.f32 %v1948, %v370
        %v1953 = vmul.f32 %v1948, %v371
        %v1954 = vmul.f32 %v1948, %v372
        %v1955 = vmul.f32 %v1948, %v373
        %v1956 = vmul.f32 %v1948, %v374
        %1965 = vrot.lane.b32.xlu0 %v1949, 126
        %v1966 = vpop.permute.xlu0 %1965
        %1967 = vrot.lane.b32.xlu0 %v1950, 126
        %v1968 = vpop.permute.xlu0 %1967
        %1969 = vrot.lane.b32.xlu0 %v1951, 126
        %v1970 = vpop.permute.xlu0 %1969
        %1971 = vrot.lane.b32.xlu0 %v1952, 126
        %v1972 = vpop.permute.xlu0 %1971
        %1973 = vrot.lane.b32.xlu0 %v1953, 126
        %v1974 = vpop.permute.xlu0 %1973
        %1975 = vrot.lane.b32.xlu0 %v1954, 126
        %v1976 = vpop.permute.xlu0 %1975
        %1977 = vrot.lane.b32.xlu0 %v1955, 126
        %v1978 = vpop.permute.xlu0 %1977
        %1979 = vrot.lane.b32.xlu0 %v1956, 126
        %v1980 = vpop.permute.xlu0 %1979
        %v1989 = vadd.f32 %v1789, %v1966
        %v1990 = vadd.f32 %v1790, %v1968
        %v1991 = vadd.f32 %v1791, %v1970
        %v1992 = vadd.f32 %v1792, %v1972
        %v1993 = vadd.f32 %v1793, %v1974
        %v1994 = vadd.f32 %v1794, %v1976
        %v1995 = vadd.f32 %v1795, %v1978
        %v1996 = vadd.f32 %v1796, %v1980
        %s1997 = sld [smem:[#allocation2 + $0x2f]]
        %v1998 = vstv %s1997
        %v1999 = vmul.f32 %v1998, %v367
        %v2000 = vmul.f32 %v1998, %v368
        %v2001 = vmul.f32 %v1998, %v369
        %v2002 = vmul.f32 %v1998, %v370
        %v2003 = vmul.f32 %v1998, %v371
        %v2004 = vmul.f32 %v1998, %v372
        %v2005 = vmul.f32 %v1998, %v373
        %v2006 = vmul.f32 %v1998, %v374
        %2015 = vrot.lane.b32.xlu0 %v1999, 126
        %v2016 = vpop.permute.xlu0 %2015
        %2017 = vrot.lane.b32.xlu0 %v2000, 126
        %v2018 = vpop.permute.xlu0 %2017
        %2019 = vrot.lane.b32.xlu0 %v2001, 126
        %v2020 = vpop.permute.xlu0 %2019
        %2021 = vrot.lane.b32.xlu0 %v2002, 126
        %v2022 = vpop.permute.xlu0 %2021
        %2023 = vrot.lane.b32.xlu0 %v2003, 126
        %v2024 = vpop.permute.xlu0 %2023
        %2025 = vrot.lane.b32.xlu0 %v2004, 126
        %v2026 = vpop.permute.xlu0 %2025
        %2027 = vrot.lane.b32.xlu0 %v2005, 126
        %v2028 = vpop.permute.xlu0 %2027
        %2029 = vrot.lane.b32.xlu0 %v2006, 126
        %v2030 = vpop.permute.xlu0 %2029
        %v2039 = vadd.f32 %v1839, %v2016
        %v2040 = vadd.f32 %v1840, %v2018
        %v2041 = vadd.f32 %v1841, %v2020
        %v2042 = vadd.f32 %v1842, %v2022
        %v2043 = vadd.f32 %v1843, %v2024
        %v2044 = vadd.f32 %v1844, %v2026
        %v2045 = vadd.f32 %v1845, %v2028
        %v2046 = vadd.f32 %v1846, %v2030
        %v2047 = vld [vmem:[%s155 + $0x1] sm:$0xff]
        %v2048 = vld [vmem:[%s155 + $0x9] sm:$0xff]
        %v2049 = vld [vmem:[%s155 + $0x11] sm:$0xff]
        %v2050 = vld [vmem:[%s155 + $0x19] sm:$0xff]
        %v2051 = vld [vmem:[%s155 + $0x21] sm:$0xff]
        %v2052 = vld [vmem:[%s155 + $0x29] sm:$0xff]
        %v2053 = vld [vmem:[%s155 + $0x31] sm:$0xff]
        %v2054 = vld [vmem:[%s155 + $0x39] sm:$0xff]
        %s2055 = sld [smem:[#allocation2 + $0x30]]
        %v2056 = vstv %s2055
        %v2057 = vmul.f32 %v2056, %v2047
        %v2058 = vmul.f32 %v2056, %v2048
        %v2059 = vmul.f32 %v2056, %v2049
        %v2060 = vmul.f32 %v2056, %v2050
        %v2061 = vmul.f32 %v2056, %v2051
        %v2062 = vmul.f32 %v2056, %v2052
        %v2063 = vmul.f32 %v2056, %v2053
        %v2064 = vmul.f32 %v2056, %v2054
        %v2065 = vadd.f32 %v1889, %v2057
        %v2066 = vadd.f32 %v1890, %v2058
        %v2067 = vadd.f32 %v1891, %v2059
        %v2068 = vadd.f32 %v1892, %v2060
        %v2069 = vadd.f32 %v1893, %v2061
        %v2070 = vadd.f32 %v1894, %v2062
        %v2071 = vadd.f32 %v1895, %v2063
        %v2072 = vadd.f32 %v1896, %v2064
        %s2073 = sld [smem:[#allocation2 + $0x34]]
        %v2074 = vstv %s2073
        %v2075 = vmul.f32 %v2074, %v2047
        %v2076 = vmul.f32 %v2074, %v2048
        %v2077 = vmul.f32 %v2074, %v2049
        %v2078 = vmul.f32 %v2074, %v2050
        %v2079 = vmul.f32 %v2074, %v2051
        %v2080 = vmul.f32 %v2074, %v2052
        %v2081 = vmul.f32 %v2074, %v2053
        %v2082 = vmul.f32 %v2074, %v2054
        %v2083 = vadd.f32 %v1939, %v2075
        %v2084 = vadd.f32 %v1940, %v2076
        %v2085 = vadd.f32 %v1941, %v2077
        %v2086 = vadd.f32 %v1942, %v2078
        %v2087 = vadd.f32 %v1943, %v2079
        %v2088 = vadd.f32 %v1944, %v2080
        %v2089 = vadd.f32 %v1945, %v2081
        %v2090 = vadd.f32 %v1946, %v2082
        %s2091 = sld [smem:[#allocation2 + $0x38]]
        %v2092 = vstv %s2091
        %v2093 = vmul.f32 %v2092, %v2047
        %v2094 = vmul.f32 %v2092, %v2048
        %v2095 = vmul.f32 %v2092, %v2049
        %v2096 = vmul.f32 %v2092, %v2050
        %v2097 = vmul.f32 %v2092, %v2051
        %v2098 = vmul.f32 %v2092, %v2052
        %v2099 = vmul.f32 %v2092, %v2053
        %v2100 = vmul.f32 %v2092, %v2054
        %v2101 = vadd.f32 %v1989, %v2093
        %v2102 = vadd.f32 %v1990, %v2094
        %v2103 = vadd.f32 %v1991, %v2095
        %v2104 = vadd.f32 %v1992, %v2096
        %v2105 = vadd.f32 %v1993, %v2097
        %v2106 = vadd.f32 %v1994, %v2098
        %v2107 = vadd.f32 %v1995, %v2099
        %v2108 = vadd.f32 %v1996, %v2100
        %s2109 = sld [smem:[#allocation2 + $0x3c]]
        %v2110 = vstv %s2109
        %v2111 = vmul.f32 %v2110, %v2047
        %v2112 = vmul.f32 %v2110, %v2048
        %v2113 = vmul.f32 %v2110, %v2049
        %v2114 = vmul.f32 %v2110, %v2050
        %v2115 = vmul.f32 %v2110, %v2051
        %v2116 = vmul.f32 %v2110, %v2052
        %v2117 = vmul.f32 %v2110, %v2053
        %v2118 = vmul.f32 %v2110, %v2054
        %v2119 = vadd.f32 %v2039, %v2111
        %v2120 = vadd.f32 %v2040, %v2112
        %v2121 = vadd.f32 %v2041, %v2113
        %v2122 = vadd.f32 %v2042, %v2114
        %v2123 = vadd.f32 %v2043, %v2115
        %v2124 = vadd.f32 %v2044, %v2116
        %v2125 = vadd.f32 %v2045, %v2117
        %v2126 = vadd.f32 %v2046, %v2118
        %v2127 = vld [vmem:[%s204 + $0x1] sm:$0xff]
        %v2128 = vld [vmem:[%s204 + $0x9] sm:$0xff]
        %v2129 = vld [vmem:[%s204 + $0x11] sm:$0xff]
        %v2130 = vld [vmem:[%s204 + $0x19] sm:$0xff]
        %v2131 = vld [vmem:[%s204 + $0x21] sm:$0xff]
        %v2132 = vld [vmem:[%s204 + $0x29] sm:$0xff]
        %v2133 = vld [vmem:[%s204 + $0x31] sm:$0xff]
        %v2134 = vld [vmem:[%s204 + $0x39] sm:$0xff]
        %s2135 = sld [smem:[#allocation2 + $0x31]]
        %v2136 = vstv %s2135
        %v2137 = vmul.f32 %v2136, %v2127
        %v2138 = vmul.f32 %v2136, %v2128
        %v2139 = vmul.f32 %v2136, %v2129
        %v2140 = vmul.f32 %v2136, %v2130
        %v2141 = vmul.f32 %v2136, %v2131
        %v2142 = vmul.f32 %v2136, %v2132
        %v2143 = vmul.f32 %v2136, %v2133
        %v2144 = vmul.f32 %v2136, %v2134
        %v2145 = vadd.f32 %v2065, %v2137
        %v2146 = vadd.f32 %v2066, %v2138
        %v2147 = vadd.f32 %v2067, %v2139
        %v2148 = vadd.f32 %v2068, %v2140
        %v2149 = vadd.f32 %v2069, %v2141
        %v2150 = vadd.f32 %v2070, %v2142
        %v2151 = vadd.f32 %v2071, %v2143
        %v2152 = vadd.f32 %v2072, %v2144
        %s2153 = sld [smem:[#allocation2 + $0x35]]
        %v2154 = vstv %s2153
        %v2155 = vmul.f32 %v2154, %v2127
        %v2156 = vmul.f32 %v2154, %v2128
        %v2157 = vmul.f32 %v2154, %v2129
        %v2158 = vmul.f32 %v2154, %v2130
        %v2159 = vmul.f32 %v2154, %v2131
        %v2160 = vmul.f32 %v2154, %v2132
        %v2161 = vmul.f32 %v2154, %v2133
        %v2162 = vmul.f32 %v2154, %v2134
        %v2163 = vadd.f32 %v2083, %v2155
        %v2164 = vadd.f32 %v2084, %v2156
        %v2165 = vadd.f32 %v2085, %v2157
        %v2166 = vadd.f32 %v2086, %v2158
        %v2167 = vadd.f32 %v2087, %v2159
        %v2168 = vadd.f32 %v2088, %v2160
        %v2169 = vadd.f32 %v2089, %v2161
        %v2170 = vadd.f32 %v2090, %v2162
        %s2171 = sld [smem:[#allocation2 + $0x39]]
        %v2172 = vstv %s2171
        %v2173 = vmul.f32 %v2172, %v2127
        %v2174 = vmul.f32 %v2172, %v2128
        %v2175 = vmul.f32 %v2172, %v2129
        %v2176 = vmul.f32 %v2172, %v2130
        %v2177 = vmul.f32 %v2172, %v2131
        %v2178 = vmul.f32 %v2172, %v2132
        %v2179 = vmul.f32 %v2172, %v2133
        %v2180 = vmul.f32 %v2172, %v2134
        %v2181 = vadd.f32 %v2101, %v2173
        %v2182 = vadd.f32 %v2102, %v2174
        %v2183 = vadd.f32 %v2103, %v2175
        %v2184 = vadd.f32 %v2104, %v2176
        %v2185 = vadd.f32 %v2105, %v2177
        %v2186 = vadd.f32 %v2106, %v2178
        %v2187 = vadd.f32 %v2107, %v2179
        %v2188 = vadd.f32 %v2108, %v2180
        %s2189 = sld [smem:[#allocation2 + $0x3d]]
        %v2190 = vstv %s2189
        %v2191 = vmul.f32 %v2190, %v2127
        %v2192 = vmul.f32 %v2190, %v2128
        %v2193 = vmul.f32 %v2190, %v2129
        %v2194 = vmul.f32 %v2190, %v2130
        %v2195 = vmul.f32 %v2190, %v2131
        %v2196 = vmul.f32 %v2190, %v2132
        %v2197 = vmul.f32 %v2190, %v2133
        %v2198 = vmul.f32 %v2190, %v2134
        %v2199 = vadd.f32 %v2119, %v2191
        %v2200 = vadd.f32 %v2120, %v2192
        %v2201 = vadd.f32 %v2121, %v2193
        %v2202 = vadd.f32 %v2122, %v2194
        %v2203 = vadd.f32 %v2123, %v2195
        %v2204 = vadd.f32 %v2124, %v2196
        %v2205 = vadd.f32 %v2125, %v2197
        %v2206 = vadd.f32 %v2126, %v2198
        %v2207 = vld [vmem:[%s285 + $0x1] sm:$0xff]
        %v2208 = vld [vmem:[%s285 + $0x9] sm:$0xff]
        %v2209 = vld [vmem:[%s285 + $0x11] sm:$0xff]
        %v2210 = vld [vmem:[%s285 + $0x19] sm:$0xff]
        %v2211 = vld [vmem:[%s285 + $0x21] sm:$0xff]
        %v2212 = vld [vmem:[%s285 + $0x29] sm:$0xff]
        %v2213 = vld [vmem:[%s285 + $0x31] sm:$0xff]
        %v2214 = vld [vmem:[%s285 + $0x39] sm:$0xff]
        %s2215 = sld [smem:[#allocation2 + $0x32]]
        %v2216 = vstv %s2215
        %v2217 = vmul.f32 %v2216, %v2207
        %v2218 = vmul.f32 %v2216, %v2208
        %v2219 = vmul.f32 %v2216, %v2209
        %v2220 = vmul.f32 %v2216, %v2210
        %v2221 = vmul.f32 %v2216, %v2211
        %v2222 = vmul.f32 %v2216, %v2212
        %v2223 = vmul.f32 %v2216, %v2213
        %v2224 = vmul.f32 %v2216, %v2214
        %v2225 = vadd.f32 %v2145, %v2217
        %v2226 = vadd.f32 %v2146, %v2218
        %v2227 = vadd.f32 %v2147, %v2219
        %v2228 = vadd.f32 %v2148, %v2220
        %v2229 = vadd.f32 %v2149, %v2221
        %v2230 = vadd.f32 %v2150, %v2222
        %v2231 = vadd.f32 %v2151, %v2223
        %v2232 = vadd.f32 %v2152, %v2224
        %s2233 = sld [smem:[#allocation2 + $0x36]]
        %v2234 = vstv %s2233
        %v2235 = vmul.f32 %v2234, %v2207
        %v2236 = vmul.f32 %v2234, %v2208
        %v2237 = vmul.f32 %v2234, %v2209
        %v2238 = vmul.f32 %v2234, %v2210
        %v2239 = vmul.f32 %v2234, %v2211
        %v2240 = vmul.f32 %v2234, %v2212
        %v2241 = vmul.f32 %v2234, %v2213
        %v2242 = vmul.f32 %v2234, %v2214
        %v2243 = vadd.f32 %v2163, %v2235
        %v2244 = vadd.f32 %v2164, %v2236
        %v2245 = vadd.f32 %v2165, %v2237
        %v2246 = vadd.f32 %v2166, %v2238
        %v2247 = vadd.f32 %v2167, %v2239
        %v2248 = vadd.f32 %v2168, %v2240
        %v2249 = vadd.f32 %v2169, %v2241
        %v2250 = vadd.f32 %v2170, %v2242
        %s2251 = sld [smem:[#allocation2 + $0x3a]]
        %v2252 = vstv %s2251
        %v2253 = vmul.f32 %v2252, %v2207
        %v2254 = vmul.f32 %v2252, %v2208
        %v2255 = vmul.f32 %v2252, %v2209
        %v2256 = vmul.f32 %v2252, %v2210
        %v2257 = vmul.f32 %v2252, %v2211
        %v2258 = vmul.f32 %v2252, %v2212
        %v2259 = vmul.f32 %v2252, %v2213
        %v2260 = vmul.f32 %v2252, %v2214
        %v2261 = vadd.f32 %v2181, %v2253
        %v2262 = vadd.f32 %v2182, %v2254
        %v2263 = vadd.f32 %v2183, %v2255
        %v2264 = vadd.f32 %v2184, %v2256
        %v2265 = vadd.f32 %v2185, %v2257
        %v2266 = vadd.f32 %v2186, %v2258
        %v2267 = vadd.f32 %v2187, %v2259
        %v2268 = vadd.f32 %v2188, %v2260
        %s2269 = sld [smem:[#allocation2 + $0x3e]]
        %v2270 = vstv %s2269
        %v2271 = vmul.f32 %v2270, %v2207
        %v2272 = vmul.f32 %v2270, %v2208
        %v2273 = vmul.f32 %v2270, %v2209
        %v2274 = vmul.f32 %v2270, %v2210
        %v2275 = vmul.f32 %v2270, %v2211
        %v2276 = vmul.f32 %v2270, %v2212
        %v2277 = vmul.f32 %v2270, %v2213
        %v2278 = vmul.f32 %v2270, %v2214
        %v2279 = vadd.f32 %v2199, %v2271
        %v2280 = vadd.f32 %v2200, %v2272
        %v2281 = vadd.f32 %v2201, %v2273
        %v2282 = vadd.f32 %v2202, %v2274
        %v2283 = vadd.f32 %v2203, %v2275
        %v2284 = vadd.f32 %v2204, %v2276
        %v2285 = vadd.f32 %v2205, %v2277
        %v2286 = vadd.f32 %v2206, %v2278
        %v2287 = vld [vmem:[%s366 + $0x1] sm:$0xff]
        %v2288 = vld [vmem:[%s366 + $0x9] sm:$0xff]
        %v2289 = vld [vmem:[%s366 + $0x11] sm:$0xff]
        %v2290 = vld [vmem:[%s366 + $0x19] sm:$0xff]
        %v2291 = vld [vmem:[%s366 + $0x21] sm:$0xff]
        %v2292 = vld [vmem:[%s366 + $0x29] sm:$0xff]
        %v2293 = vld [vmem:[%s366 + $0x31] sm:$0xff]
        %v2294 = vld [vmem:[%s366 + $0x39] sm:$0xff]
        %s2295 = sld [smem:[#allocation2 + $0x33]]
        %v2296 = vstv %s2295
        %v2297 = vmul.f32 %v2296, %v2287
        %v2298 = vmul.f32 %v2296, %v2288
        %v2299 = vmul.f32 %v2296, %v2289
        %v2300 = vmul.f32 %v2296, %v2290
        %v2301 = vmul.f32 %v2296, %v2291
        %v2302 = vmul.f32 %v2296, %v2292
        %v2303 = vmul.f32 %v2296, %v2293
        %v2304 = vmul.f32 %v2296, %v2294
        %v2305 = vadd.f32 %v2225, %v2297
        %v2306 = vadd.f32 %v2226, %v2298
        %v2307 = vadd.f32 %v2227, %v2299
        %v2308 = vadd.f32 %v2228, %v2300
        %v2309 = vadd.f32 %v2229, %v2301
        %v2310 = vadd.f32 %v2230, %v2302
        %v2311 = vadd.f32 %v2231, %v2303
        %v2312 = vadd.f32 %v2232, %v2304
        %s2313 = sld [smem:[#allocation2 + $0x37]]
        %v2314 = vstv %s2313
        %v2315 = vmul.f32 %v2314, %v2287
        %v2316 = vmul.f32 %v2314, %v2288
        %v2317 = vmul.f32 %v2314, %v2289
        %v2318 = vmul.f32 %v2314, %v2290
        %v2319 = vmul.f32 %v2314, %v2291
        %v2320 = vmul.f32 %v2314, %v2292
        %v2321 = vmul.f32 %v2314, %v2293
        %v2322 = vmul.f32 %v2314, %v2294
        %v2323 = vadd.f32 %v2243, %v2315
        %v2324 = vadd.f32 %v2244, %v2316
        %v2325 = vadd.f32 %v2245, %v2317
        %v2326 = vadd.f32 %v2246, %v2318
        %v2327 = vadd.f32 %v2247, %v2319
        %v2328 = vadd.f32 %v2248, %v2320
        %v2329 = vadd.f32 %v2249, %v2321
        %v2330 = vadd.f32 %v2250, %v2322
        %s2331 = sld [smem:[#allocation2 + $0x3b]]
        %v2332 = vstv %s2331
        %v2333 = vmul.f32 %v2332, %v2287
        %v2334 = vmul.f32 %v2332, %v2288
        %v2335 = vmul.f32 %v2332, %v2289
        %v2336 = vmul.f32 %v2332, %v2290
        %v2337 = vmul.f32 %v2332, %v2291
        %v2338 = vmul.f32 %v2332, %v2292
        %v2339 = vmul.f32 %v2332, %v2293
        %v2340 = vmul.f32 %v2332, %v2294
        %v2341 = vadd.f32 %v2261, %v2333
        %v2342 = vadd.f32 %v2262, %v2334
        %v2343 = vadd.f32 %v2263, %v2335
        %v2344 = vadd.f32 %v2264, %v2336
        %v2345 = vadd.f32 %v2265, %v2337
        %v2346 = vadd.f32 %v2266, %v2338
        %v2347 = vadd.f32 %v2267, %v2339
        %v2348 = vadd.f32 %v2268, %v2340
        %s2349 = sld [smem:[#allocation2 + $0x3f]]
        %v2350 = vstv %s2349
        %v2351 = vmul.f32 %v2350, %v2287
        %v2352 = vmul.f32 %v2350, %v2288
        %v2353 = vmul.f32 %v2350, %v2289
        %v2354 = vmul.f32 %v2350, %v2290
        %v2355 = vmul.f32 %v2350, %v2291
        %v2356 = vmul.f32 %v2350, %v2292
        %v2357 = vmul.f32 %v2350, %v2293
        %v2358 = vmul.f32 %v2350, %v2294
        %v2359 = vadd.f32 %v2279, %v2351
        %v2360 = vadd.f32 %v2280, %v2352
        %v2361 = vadd.f32 %v2281, %v2353
        %v2362 = vadd.f32 %v2282, %v2354
        %v2363 = vadd.f32 %v2283, %v2355
        %v2364 = vadd.f32 %v2284, %v2356
        %v2365 = vadd.f32 %v2285, %v2357
        %v2366 = vadd.f32 %v2286, %v2358
        %s2367 = sld [smem:[#allocation2 + $0x40]]
        %v2368 = vstv %s2367
        %v2369 = vmul.f32 %v2368, %v2047
        %v2370 = vmul.f32 %v2368, %v2048
        %v2371 = vmul.f32 %v2368, %v2049
        %v2372 = vmul.f32 %v2368, %v2050
        %v2373 = vmul.f32 %v2368, %v2051
        %v2374 = vmul.f32 %v2368, %v2052
        %v2375 = vmul.f32 %v2368, %v2053
        %v2376 = vmul.f32 %v2368, %v2054
        %2385 = vrot.lane.b32.xlu0 %v2369, 127
        %v2386 = vpop.permute.xlu0 %2385
        %2387 = vrot.lane.b32.xlu0 %v2370, 127
        %v2388 = vpop.permute.xlu0 %2387
        %2389 = vrot.lane.b32.xlu0 %v2371, 127
        %v2390 = vpop.permute.xlu0 %2389
        %2391 = vrot.lane.b32.xlu0 %v2372, 127
        %v2392 = vpop.permute.xlu0 %2391
        %2393 = vrot.lane.b32.xlu0 %v2373, 127
        %v2394 = vpop.permute.xlu0 %2393
        %2395 = vrot.lane.b32.xlu0 %v2374, 127
        %v2396 = vpop.permute.xlu0 %2395
        %2397 = vrot.lane.b32.xlu0 %v2375, 127
        %v2398 = vpop.permute.xlu0 %2397
        %2399 = vrot.lane.b32.xlu0 %v2376, 127
        %v2400 = vpop.permute.xlu0 %2399
        %v2409 = vadd.f32 %v2305, %v2386
        %v2410 = vadd.f32 %v2306, %v2388
        %v2411 = vadd.f32 %v2307, %v2390
        %v2412 = vadd.f32 %v2308, %v2392
        %v2413 = vadd.f32 %v2309, %v2394
        %v2414 = vadd.f32 %v2310, %v2396
        %v2415 = vadd.f32 %v2311, %v2398
        %v2416 = vadd.f32 %v2312, %v2400
        %s2417 = sld [smem:[#allocation2 + $0x44]]
        %v2418 = vstv %s2417
        %v2419 = vmul.f32 %v2418, %v2047
        %v2420 = vmul.f32 %v2418, %v2048
        %v2421 = vmul.f32 %v2418, %v2049
        %v2422 = vmul.f32 %v2418, %v2050
        %v2423 = vmul.f32 %v2418, %v2051
        %v2424 = vmul.f32 %v2418, %v2052
        %v2425 = vmul.f32 %v2418, %v2053
        %v2426 = vmul.f32 %v2418, %v2054
        %2435 = vrot.lane.b32.xlu0 %v2419, 127
        %v2436 = vpop.permute.xlu0 %2435
        %2437 = vrot.lane.b32.xlu0 %v2420, 127
        %v2438 = vpop.permute.xlu0 %2437
        %2439 = vrot.lane.b32.xlu0 %v2421, 127
        %v2440 = vpop.permute.xlu0 %2439
        %2441 = vrot.lane.b32.xlu0 %v2422, 127
        %v2442 = vpop.permute.xlu0 %2441
        %2443 = vrot.lane.b32.xlu0 %v2423, 127
        %v2444 = vpop.permute.xlu0 %2443
        %2445 = vrot.lane.b32.xlu0 %v2424, 127
        %v2446 = vpop.permute.xlu0 %2445
        %2447 = vrot.lane.b32.xlu0 %v2425, 127
        %v2448 = vpop.permute.xlu0 %2447
        %2449 = vrot.lane.b32.xlu0 %v2426, 127
        %v2450 = vpop.permute.xlu0 %2449
        %v2459 = vadd.f32 %v2323, %v2436
        %v2460 = vadd.f32 %v2324, %v2438
        %v2461 = vadd.f32 %v2325, %v2440
        %v2462 = vadd.f32 %v2326, %v2442
        %v2463 = vadd.f32 %v2327, %v2444
        %v2464 = vadd.f32 %v2328, %v2446
        %v2465 = vadd.f32 %v2329, %v2448
        %v2466 = vadd.f32 %v2330, %v2450
        %s2467 = sld [smem:[#allocation2 + $0x48]]
        %v2468 = vstv %s2467
        %v2469 = vmul.f32 %v2468, %v2047
        %v2470 = vmul.f32 %v2468, %v2048
        %v2471 = vmul.f32 %v2468, %v2049
        %v2472 = vmul.f32 %v2468, %v2050
        %v2473 = vmul.f32 %v2468, %v2051
        %v2474 = vmul.f32 %v2468, %v2052
        %v2475 = vmul.f32 %v2468, %v2053
        %v2476 = vmul.f32 %v2468, %v2054
        %2485 = vrot.lane.b32.xlu0 %v2469, 127
        %v2486 = vpop.permute.xlu0 %2485
        %2487 = vrot.lane.b32.xlu0 %v2470, 127
        %v2488 = vpop.permute.xlu0 %2487
        %2489 = vrot.lane.b32.xlu0 %v2471, 127
        %v2490 = vpop.permute.xlu0 %2489
        %2491 = vrot.lane.b32.xlu0 %v2472, 127
        %v2492 = vpop.permute.xlu0 %2491
        %2493 = vrot.lane.b32.xlu0 %v2473, 127
        %v2494 = vpop.permute.xlu0 %2493
        %2495 = vrot.lane.b32.xlu0 %v2474, 127
        %v2496 = vpop.permute.xlu0 %2495
        %2497 = vrot.lane.b32.xlu0 %v2475, 127
        %v2498 = vpop.permute.xlu0 %2497
        %2499 = vrot.lane.b32.xlu0 %v2476, 127
        %v2500 = vpop.permute.xlu0 %2499
        %v2509 = vadd.f32 %v2341, %v2486
        %v2510 = vadd.f32 %v2342, %v2488
        %v2511 = vadd.f32 %v2343, %v2490
        %v2512 = vadd.f32 %v2344, %v2492
        %v2513 = vadd.f32 %v2345, %v2494
        %v2514 = vadd.f32 %v2346, %v2496
        %v2515 = vadd.f32 %v2347, %v2498
        %v2516 = vadd.f32 %v2348, %v2500
        %s2517 = sld [smem:[#allocation2 + $0x4c]]
        %v2518 = vstv %s2517
        %v2519 = vmul.f32 %v2518, %v2047
        %v2520 = vmul.f32 %v2518, %v2048
        %v2521 = vmul.f32 %v2518, %v2049
        %v2522 = vmul.f32 %v2518, %v2050
        %v2523 = vmul.f32 %v2518, %v2051
        %v2524 = vmul.f32 %v2518, %v2052
        %v2525 = vmul.f32 %v2518, %v2053
        %v2526 = vmul.f32 %v2518, %v2054
        %2535 = vrot.lane.b32.xlu0 %v2519, 127
        %v2536 = vpop.permute.xlu0 %2535
        %2537 = vrot.lane.b32.xlu0 %v2520, 127
        %v2538 = vpop.permute.xlu0 %2537
        %2539 = vrot.lane.b32.xlu0 %v2521, 127
        %v2540 = vpop.permute.xlu0 %2539
        %2541 = vrot.lane.b32.xlu0 %v2522, 127
        %v2542 = vpop.permute.xlu0 %2541
        %2543 = vrot.lane.b32.xlu0 %v2523, 127
        %v2544 = vpop.permute.xlu0 %2543
        %2545 = vrot.lane.b32.xlu0 %v2524, 127
        %v2546 = vpop.permute.xlu0 %2545
        %2547 = vrot.lane.b32.xlu0 %v2525, 127
        %v2548 = vpop.permute.xlu0 %2547
        %2549 = vrot.lane.b32.xlu0 %v2526, 127
        %v2550 = vpop.permute.xlu0 %2549
        %v2559 = vadd.f32 %v2359, %v2536
        %v2560 = vadd.f32 %v2360, %v2538
        %v2561 = vadd.f32 %v2361, %v2540
        %v2562 = vadd.f32 %v2362, %v2542
        %v2563 = vadd.f32 %v2363, %v2544
        %v2564 = vadd.f32 %v2364, %v2546
        %v2565 = vadd.f32 %v2365, %v2548
        %v2566 = vadd.f32 %v2366, %v2550
        %s2567 = sld [smem:[#allocation2 + $0x41]]
        %v2568 = vstv %s2567
        %v2569 = vmul.f32 %v2568, %v2127
        %v2570 = vmul.f32 %v2568, %v2128
        %v2571 = vmul.f32 %v2568, %v2129
        %v2572 = vmul.f32 %v2568, %v2130
        %v2573 = vmul.f32 %v2568, %v2131
        %v2574 = vmul.f32 %v2568, %v2132
        %v2575 = vmul.f32 %v2568, %v2133
        %v2576 = vmul.f32 %v2568, %v2134
        %2585 = vrot.lane.b32.xlu0 %v2569, 127
        %v2586 = vpop.permute.xlu0 %2585
        %2587 = vrot.lane.b32.xlu0 %v2570, 127
        %v2588 = vpop.permute.xlu0 %2587
        %2589 = vrot.lane.b32.xlu0 %v2571, 127
        %v2590 = vpop.permute.xlu0 %2589
        %2591 = vrot.lane.b32.xlu0 %v2572, 127
        %v2592 = vpop.permute.xlu0 %2591
        %2593 = vrot.lane.b32.xlu0 %v2573, 127
        %v2594 = vpop.permute.xlu0 %2593
        %2595 = vrot.lane.b32.xlu0 %v2574, 127
        %v2596 = vpop.permute.xlu0 %2595
        %2597 = vrot.lane.b32.xlu0 %v2575, 127
        %v2598 = vpop.permute.xlu0 %2597
        %2599 = vrot.lane.b32.xlu0 %v2576, 127
        %v2600 = vpop.permute.xlu0 %2599
        %v2609 = vadd.f32 %v2409, %v2586
        %v2610 = vadd.f32 %v2410, %v2588
        %v2611 = vadd.f32 %v2411, %v2590
        %v2612 = vadd.f32 %v2412, %v2592
        %v2613 = vadd.f32 %v2413, %v2594
        %v2614 = vadd.f32 %v2414, %v2596
        %v2615 = vadd.f32 %v2415, %v2598
        %v2616 = vadd.f32 %v2416, %v2600
        %s2617 = sld [smem:[#allocation2 + $0x45]]
        %v2618 = vstv %s2617
        %v2619 = vmul.f32 %v2618, %v2127
        %v2620 = vmul.f32 %v2618, %v2128
        %v2621 = vmul.f32 %v2618, %v2129
        %v2622 = vmul.f32 %v2618, %v2130
        %v2623 = vmul.f32 %v2618, %v2131
        %v2624 = vmul.f32 %v2618, %v2132
        %v2625 = vmul.f32 %v2618, %v2133
        %v2626 = vmul.f32 %v2618, %v2134
        %2635 = vrot.lane.b32.xlu0 %v2619, 127
        %v2636 = vpop.permute.xlu0 %2635
        %2637 = vrot.lane.b32.xlu0 %v2620, 127
        %v2638 = vpop.permute.xlu0 %2637
        %2639 = vrot.lane.b32.xlu0 %v2621, 127
        %v2640 = vpop.permute.xlu0 %2639
        %2641 = vrot.lane.b32.xlu0 %v2622, 127
        %v2642 = vpop.permute.xlu0 %2641
        %2643 = vrot.lane.b32.xlu0 %v2623, 127
        %v2644 = vpop.permute.xlu0 %2643
        %2645 = vrot.lane.b32.xlu0 %v2624, 127
        %v2646 = vpop.permute.xlu0 %2645
        %2647 = vrot.lane.b32.xlu0 %v2625, 127
        %v2648 = vpop.permute.xlu0 %2647
        %2649 = vrot.lane.b32.xlu0 %v2626, 127
        %v2650 = vpop.permute.xlu0 %2649
        %v2659 = vadd.f32 %v2459, %v2636
        %v2660 = vadd.f32 %v2460, %v2638
        %v2661 = vadd.f32 %v2461, %v2640
        %v2662 = vadd.f32 %v2462, %v2642
        %v2663 = vadd.f32 %v2463, %v2644
        %v2664 = vadd.f32 %v2464, %v2646
        %v2665 = vadd.f32 %v2465, %v2648
        %v2666 = vadd.f32 %v2466, %v2650
        %s2667 = sld [smem:[#allocation2 + $0x49]]
        %v2668 = vstv %s2667
        %v2669 = vmul.f32 %v2668, %v2127
        %v2670 = vmul.f32 %v2668, %v2128
        %v2671 = vmul.f32 %v2668, %v2129
        %v2672 = vmul.f32 %v2668, %v2130
        %v2673 = vmul.f32 %v2668, %v2131
        %v2674 = vmul.f32 %v2668, %v2132
        %v2675 = vmul.f32 %v2668, %v2133
        %v2676 = vmul.f32 %v2668, %v2134
        %2685 = vrot.lane.b32.xlu0 %v2669, 127
        %v2686 = vpop.permute.xlu0 %2685
        %2687 = vrot.lane.b32.xlu0 %v2670, 127
        %v2688 = vpop.permute.xlu0 %2687
        %2689 = vrot.lane.b32.xlu0 %v2671, 127
        %v2690 = vpop.permute.xlu0 %2689
        %2691 = vrot.lane.b32.xlu0 %v2672, 127
        %v2692 = vpop.permute.xlu0 %2691
        %2693 = vrot.lane.b32.xlu0 %v2673, 127
        %v2694 = vpop.permute.xlu0 %2693
        %2695 = vrot.lane.b32.xlu0 %v2674, 127
        %v2696 = vpop.permute.xlu0 %2695
        %2697 = vrot.lane.b32.xlu0 %v2675, 127
        %v2698 = vpop.permute.xlu0 %2697
        %2699 = vrot.lane.b32.xlu0 %v2676, 127
        %v2700 = vpop.permute.xlu0 %2699
        %v2709 = vadd.f32 %v2509, %v2686
        %v2710 = vadd.f32 %v2510, %v2688
        %v2711 = vadd.f32 %v2511, %v2690
        %v2712 = vadd.f32 %v2512, %v2692
        %v2713 = vadd.f32 %v2513, %v2694
        %v2714 = vadd.f32 %v2514, %v2696
        %v2715 = vadd.f32 %v2515, %v2698
        %v2716 = vadd.f32 %v2516, %v2700
        %s2717 = sld [smem:[#allocation2 + $0x4d]]
        %v2718 = vstv %s2717
        %v2719 = vmul.f32 %v2718, %v2127
        %v2720 = vmul.f32 %v2718, %v2128
        %v2721 = vmul.f32 %v2718, %v2129
        %v2722 = vmul.f32 %v2718, %v2130
        %v2723 = vmul.f32 %v2718, %v2131
        %v2724 = vmul.f32 %v2718, %v2132
        %v2725 = vmul.f32 %v2718, %v2133
        %v2726 = vmul.f32 %v2718, %v2134
        %2735 = vrot.lane.b32.xlu0 %v2719, 127
        %v2736 = vpop.permute.xlu0 %2735
        %2737 = vrot.lane.b32.xlu0 %v2720, 127
        %v2738 = vpop.permute.xlu0 %2737
        %2739 = vrot.lane.b32.xlu0 %v2721, 127
        %v2740 = vpop.permute.xlu0 %2739
        %2741 = vrot.lane.b32.xlu0 %v2722, 127
        %v2742 = vpop.permute.xlu0 %2741
        %2743 = vrot.lane.b32.xlu0 %v2723, 127
        %v2744 = vpop.permute.xlu0 %2743
        %2745 = vrot.lane.b32.xlu0 %v2724, 127
        %v2746 = vpop.permute.xlu0 %2745
        %2747 = vrot.lane.b32.xlu0 %v2725, 127
        %v2748 = vpop.permute.xlu0 %2747
        %2749 = vrot.lane.b32.xlu0 %v2726, 127
        %v2750 = vpop.permute.xlu0 %2749
        %v2759 = vadd.f32 %v2559, %v2736
        %v2760 = vadd.f32 %v2560, %v2738
        %v2761 = vadd.f32 %v2561, %v2740
        %v2762 = vadd.f32 %v2562, %v2742
        %v2763 = vadd.f32 %v2563, %v2744
        %v2764 = vadd.f32 %v2564, %v2746
        %v2765 = vadd.f32 %v2565, %v2748
        %v2766 = vadd.f32 %v2566, %v2750
        %s2767 = sld [smem:[#allocation2 + $0x42]]
        %v2768 = vstv %s2767
        %v2769 = vmul.f32 %v2768, %v2207
        %v2770 = vmul.f32 %v2768, %v2208
        %v2771 = vmul.f32 %v2768, %v2209
        %v2772 = vmul.f32 %v2768, %v2210
        %v2773 = vmul.f32 %v2768, %v2211
        %v2774 = vmul.f32 %v2768, %v2212
        %v2775 = vmul.f32 %v2768, %v2213
        %v2776 = vmul.f32 %v2768, %v2214
        %2785 = vrot.lane.b32.xlu0 %v2769, 127
        %v2786 = vpop.permute.xlu0 %2785
        %2787 = vrot.lane.b32.xlu0 %v2770, 127
        %v2788 = vpop.permute.xlu0 %2787
        %2789 = vrot.lane.b32.xlu0 %v2771, 127
        %v2790 = vpop.permute.xlu0 %2789
        %2791 = vrot.lane.b32.xlu0 %v2772, 127
        %v2792 = vpop.permute.xlu0 %2791
        %2793 = vrot.lane.b32.xlu0 %v2773, 127
        %v2794 = vpop.permute.xlu0 %2793
        %2795 = vrot.lane.b32.xlu0 %v2774, 127
        %v2796 = vpop.permute.xlu0 %2795
        %2797 = vrot.lane.b32.xlu0 %v2775, 127
        %v2798 = vpop.permute.xlu0 %2797
        %2799 = vrot.lane.b32.xlu0 %v2776, 127
        %v2800 = vpop.permute.xlu0 %2799
        %v2809 = vadd.f32 %v2609, %v2786
        %v2810 = vadd.f32 %v2610, %v2788
        %v2811 = vadd.f32 %v2611, %v2790
        %v2812 = vadd.f32 %v2612, %v2792
        %v2813 = vadd.f32 %v2613, %v2794
        %v2814 = vadd.f32 %v2614, %v2796
        %v2815 = vadd.f32 %v2615, %v2798
        %v2816 = vadd.f32 %v2616, %v2800
        %s2817 = sld [smem:[#allocation2 + $0x46]]
        %v2818 = vstv %s2817
        %v2819 = vmul.f32 %v2818, %v2207
        %v2820 = vmul.f32 %v2818, %v2208
        %v2821 = vmul.f32 %v2818, %v2209
        %v2822 = vmul.f32 %v2818, %v2210
        %v2823 = vmul.f32 %v2818, %v2211
        %v2824 = vmul.f32 %v2818, %v2212
        %v2825 = vmul.f32 %v2818, %v2213
        %v2826 = vmul.f32 %v2818, %v2214
        %2835 = vrot.lane.b32.xlu0 %v2819, 127
        %v2836 = vpop.permute.xlu0 %2835
        %2837 = vrot.lane.b32.xlu0 %v2820, 127
        %v2838 = vpop.permute.xlu0 %2837
        %2839 = vrot.lane.b32.xlu0 %v2821, 127
        %v2840 = vpop.permute.xlu0 %2839
        %2841 = vrot.lane.b32.xlu0 %v2822, 127
        %v2842 = vpop.permute.xlu0 %2841
        %2843 = vrot.lane.b32.xlu0 %v2823, 127
        %v2844 = vpop.permute.xlu0 %2843
        %2845 = vrot.lane.b32.xlu0 %v2824, 127
        %v2846 = vpop.permute.xlu0 %2845
        %2847 = vrot.lane.b32.xlu0 %v2825, 127
        %v2848 = vpop.permute.xlu0 %2847
        %2849 = vrot.lane.b32.xlu0 %v2826, 127
        %v2850 = vpop.permute.xlu0 %2849
        %v2859 = vadd.f32 %v2659, %v2836
        %v2860 = vadd.f32 %v2660, %v2838
        %v2861 = vadd.f32 %v2661, %v2840
        %v2862 = vadd.f32 %v2662, %v2842
        %v2863 = vadd.f32 %v2663, %v2844
        %v2864 = vadd.f32 %v2664, %v2846
        %v2865 = vadd.f32 %v2665, %v2848
        %v2866 = vadd.f32 %v2666, %v2850
        %s2867 = sld [smem:[#allocation2 + $0x4a]]
        %v2868 = vstv %s2867
        %v2869 = vmul.f32 %v2868, %v2207
        %v2870 = vmul.f32 %v2868, %v2208
        %v2871 = vmul.f32 %v2868, %v2209
        %v2872 = vmul.f32 %v2868, %v2210
        %v2873 = vmul.f32 %v2868, %v2211
        %v2874 = vmul.f32 %v2868, %v2212
        %v2875 = vmul.f32 %v2868, %v2213
        %v2876 = vmul.f32 %v2868, %v2214
        %2885 = vrot.lane.b32.xlu0 %v2869, 127
        %v2886 = vpop.permute.xlu0 %2885
        %2887 = vrot.lane.b32.xlu0 %v2870, 127
        %v2888 = vpop.permute.xlu0 %2887
        %2889 = vrot.lane.b32.xlu0 %v2871, 127
        %v2890 = vpop.permute.xlu0 %2889
        %2891 = vrot.lane.b32.xlu0 %v2872, 127
        %v2892 = vpop.permute.xlu0 %2891
        %2893 = vrot.lane.b32.xlu0 %v2873, 127
        %v2894 = vpop.permute.xlu0 %2893
        %2895 = vrot.lane.b32.xlu0 %v2874, 127
        %v2896 = vpop.permute.xlu0 %2895
        %2897 = vrot.lane.b32.xlu0 %v2875, 127
        %v2898 = vpop.permute.xlu0 %2897
        %2899 = vrot.lane.b32.xlu0 %v2876, 127
        %v2900 = vpop.permute.xlu0 %2899
        %v2909 = vadd.f32 %v2709, %v2886
        %v2910 = vadd.f32 %v2710, %v2888
        %v2911 = vadd.f32 %v2711, %v2890
        %v2912 = vadd.f32 %v2712, %v2892
        %v2913 = vadd.f32 %v2713, %v2894
        %v2914 = vadd.f32 %v2714, %v2896
        %v2915 = vadd.f32 %v2715, %v2898
        %v2916 = vadd.f32 %v2716, %v2900
        %s2917 = sld [smem:[#allocation2 + $0x4e]]
        %v2918 = vstv %s2917
        %v2919 = vmul.f32 %v2918, %v2207
        %v2920 = vmul.f32 %v2918, %v2208
        %v2921 = vmul.f32 %v2918, %v2209
        %v2922 = vmul.f32 %v2918, %v2210
        %v2923 = vmul.f32 %v2918, %v2211
        %v2924 = vmul.f32 %v2918, %v2212
        %v2925 = vmul.f32 %v2918, %v2213
        %v2926 = vmul.f32 %v2918, %v2214
        %2935 = vrot.lane.b32.xlu0 %v2919, 127
        %v2936 = vpop.permute.xlu0 %2935
        %2937 = vrot.lane.b32.xlu0 %v2920, 127
        %v2938 = vpop.permute.xlu0 %2937
        %2939 = vrot.lane.b32.xlu0 %v2921, 127
        %v2940 = vpop.permute.xlu0 %2939
        %2941 = vrot.lane.b32.xlu0 %v2922, 127
        %v2942 = vpop.permute.xlu0 %2941
        %2943 = vrot.lane.b32.xlu0 %v2923, 127
        %v2944 = vpop.permute.xlu0 %2943
        %2945 = vrot.lane.b32.xlu0 %v2924, 127
        %v2946 = vpop.permute.xlu0 %2945
        %2947 = vrot.lane.b32.xlu0 %v2925, 127
        %v2948 = vpop.permute.xlu0 %2947
        %2949 = vrot.lane.b32.xlu0 %v2926, 127
        %v2950 = vpop.permute.xlu0 %2949
        %v2959 = vadd.f32 %v2759, %v2936
        %v2960 = vadd.f32 %v2760, %v2938
        %v2961 = vadd.f32 %v2761, %v2940
        %v2962 = vadd.f32 %v2762, %v2942
        %v2963 = vadd.f32 %v2763, %v2944
        %v2964 = vadd.f32 %v2764, %v2946
        %v2965 = vadd.f32 %v2765, %v2948
        %v2966 = vadd.f32 %v2766, %v2950
        %s2967 = sld [smem:[#allocation2 + $0x43]]
        %v2968 = vstv %s2967
        %v2969 = vmul.f32 %v2968, %v2287
        %v2970 = vmul.f32 %v2968, %v2288
        %v2971 = vmul.f32 %v2968, %v2289
        %v2972 = vmul.f32 %v2968, %v2290
        %v2973 = vmul.f32 %v2968, %v2291
        %v2974 = vmul.f32 %v2968, %v2292
        %v2975 = vmul.f32 %v2968, %v2293
        %v2976 = vmul.f32 %v2968, %v2294
        %2985 = vrot.lane.b32.xlu0 %v2969, 127
        %v2986 = vpop.permute.xlu0 %2985
        %2987 = vrot.lane.b32.xlu0 %v2970, 127
        %v2988 = vpop.permute.xlu0 %2987
        %2989 = vrot.lane.b32.xlu0 %v2971, 127
        %v2990 = vpop.permute.xlu0 %2989
        %2991 = vrot.lane.b32.xlu0 %v2972, 127
        %v2992 = vpop.permute.xlu0 %2991
        %2993 = vrot.lane.b32.xlu0 %v2973, 127
        %v2994 = vpop.permute.xlu0 %2993
        %2995 = vrot.lane.b32.xlu0 %v2974, 127
        %v2996 = vpop.permute.xlu0 %2995
        %2997 = vrot.lane.b32.xlu0 %v2975, 127
        %v2998 = vpop.permute.xlu0 %2997
        %2999 = vrot.lane.b32.xlu0 %v2976, 127
        %v3000 = vpop.permute.xlu0 %2999
        %v3009 = vadd.f32 %v2809, %v2986
        %v3010 = vadd.f32 %v2810, %v2988
        %v3011 = vadd.f32 %v2811, %v2990
        %v3012 = vadd.f32 %v2812, %v2992
        %v3013 = vadd.f32 %v2813, %v2994
        %v3014 = vadd.f32 %v2814, %v2996
        %v3015 = vadd.f32 %v2815, %v2998
        %v3016 = vadd.f32 %v2816, %v3000
        %s3017 = sld [smem:[#allocation2 + $0x47]]
        %v3018 = vstv %s3017
        %v3019 = vmul.f32 %v3018, %v2287
        %v3020 = vmul.f32 %v3018, %v2288
        %v3021 = vmul.f32 %v3018, %v2289
        %v3022 = vmul.f32 %v3018, %v2290
        %v3023 = vmul.f32 %v3018, %v2291
        %v3024 = vmul.f32 %v3018, %v2292
        %v3025 = vmul.f32 %v3018, %v2293
        %v3026 = vmul.f32 %v3018, %v2294
        %3035 = vrot.lane.b32.xlu0 %v3019, 127
        %v3036 = vpop.permute.xlu0 %3035
        %3037 = vrot.lane.b32.xlu0 %v3020, 127
        %v3038 = vpop.permute.xlu0 %3037
        %3039 = vrot.lane.b32.xlu0 %v3021, 127
        %v3040 = vpop.permute.xlu0 %3039
        %3041 = vrot.lane.b32.xlu0 %v3022, 127
        %v3042 = vpop.permute.xlu0 %3041
        %3043 = vrot.lane.b32.xlu0 %v3023, 127
        %v3044 = vpop.permute.xlu0 %3043
        %3045 = vrot.lane.b32.xlu0 %v3024, 127
        %v3046 = vpop.permute.xlu0 %3045
        %3047 = vrot.lane.b32.xlu0 %v3025, 127
        %v3048 = vpop.permute.xlu0 %3047
        %3049 = vrot.lane.b32.xlu0 %v3026, 127
        %v3050 = vpop.permute.xlu0 %3049
        %v3059 = vadd.f32 %v2859, %v3036
        %v3060 = vadd.f32 %v2860, %v3038
        %v3061 = vadd.f32 %v2861, %v3040
        %v3062 = vadd.f32 %v2862, %v3042
        %v3063 = vadd.f32 %v2863, %v3044
        %v3064 = vadd.f32 %v2864, %v3046
        %v3065 = vadd.f32 %v2865, %v3048
        %v3066 = vadd.f32 %v2866, %v3050
        %s3067 = sld [smem:[#allocation2 + $0x4b]]
        %v3068 = vstv %s3067
        %v3069 = vmul.f32 %v3068, %v2287
        %v3070 = vmul.f32 %v3068, %v2288
        %v3071 = vmul.f32 %v3068, %v2289
        %v3072 = vmul.f32 %v3068, %v2290
        %v3073 = vmul.f32 %v3068, %v2291
        %v3074 = vmul.f32 %v3068, %v2292
        %v3075 = vmul.f32 %v3068, %v2293
        %v3076 = vmul.f32 %v3068, %v2294
        %3085 = vrot.lane.b32.xlu0 %v3069, 127
        %v3086 = vpop.permute.xlu0 %3085
        %3087 = vrot.lane.b32.xlu0 %v3070, 127
        %v3088 = vpop.permute.xlu0 %3087
        %3089 = vrot.lane.b32.xlu0 %v3071, 127
        %v3090 = vpop.permute.xlu0 %3089
        %3091 = vrot.lane.b32.xlu0 %v3072, 127
        %v3092 = vpop.permute.xlu0 %3091
        %3093 = vrot.lane.b32.xlu0 %v3073, 127
        %v3094 = vpop.permute.xlu0 %3093
        %3095 = vrot.lane.b32.xlu0 %v3074, 127
        %v3096 = vpop.permute.xlu0 %3095
        %3097 = vrot.lane.b32.xlu0 %v3075, 127
        %v3098 = vpop.permute.xlu0 %3097
        %3099 = vrot.lane.b32.xlu0 %v3076, 127
        %v3100 = vpop.permute.xlu0 %3099
        %v3109 = vadd.f32 %v2909, %v3086
        %v3110 = vadd.f32 %v2910, %v3088
        %v3111 = vadd.f32 %v2911, %v3090
        %v3112 = vadd.f32 %v2912, %v3092
        %v3113 = vadd.f32 %v2913, %v3094
        %v3114 = vadd.f32 %v2914, %v3096
        %v3115 = vadd.f32 %v2915, %v3098
        %v3116 = vadd.f32 %v2916, %v3100
        %s3117 = sld [smem:[#allocation2 + $0x4f]]
        %v3118 = vstv %s3117
        %v3119 = vmul.f32 %v3118, %v2287
        %v3120 = vmul.f32 %v3118, %v2288
        %v3121 = vmul.f32 %v3118, %v2289
        %v3122 = vmul.f32 %v3118, %v2290
        %v3123 = vmul.f32 %v3118, %v2291
        %v3124 = vmul.f32 %v3118, %v2292
        %v3125 = vmul.f32 %v3118, %v2293
        %v3126 = vmul.f32 %v3118, %v2294
        %3135 = vrot.lane.b32.xlu0 %v3119, 127
        %v3136 = vpop.permute.xlu0 %3135
        %3137 = vrot.lane.b32.xlu0 %v3120, 127
        %v3138 = vpop.permute.xlu0 %3137
        %3139 = vrot.lane.b32.xlu0 %v3121, 127
        %v3140 = vpop.permute.xlu0 %3139
        %3141 = vrot.lane.b32.xlu0 %v3122, 127
        %v3142 = vpop.permute.xlu0 %3141
        %3143 = vrot.lane.b32.xlu0 %v3123, 127
        %v3144 = vpop.permute.xlu0 %3143
        %3145 = vrot.lane.b32.xlu0 %v3124, 127
        %v3146 = vpop.permute.xlu0 %3145
        %3147 = vrot.lane.b32.xlu0 %v3125, 127
        %v3148 = vpop.permute.xlu0 %3147
        %3149 = vrot.lane.b32.xlu0 %v3126, 127
        %v3150 = vpop.permute.xlu0 %3149
        %v3159 = vadd.f32 %v2959, %v3136
        %v3160 = vadd.f32 %v2960, %v3138
        %v3161 = vadd.f32 %v2961, %v3140
        %v3162 = vadd.f32 %v2962, %v3142
        %v3163 = vadd.f32 %v2963, %v3144
        %v3164 = vadd.f32 %v2964, %v3146
        %v3165 = vadd.f32 %v2965, %v3148
        %v3166 = vadd.f32 %v2966, %v3150
        %s3167 = sld [smem:[#allocation2 + $0x50]]
        %v3168 = vstv %s3167
        %v3169 = vmul.f32 %v3168, %v2047
        %v3170 = vmul.f32 %v3168, %v2048
        %v3171 = vmul.f32 %v3168, %v2049
        %v3172 = vmul.f32 %v3168, %v2050
        %v3173 = vmul.f32 %v3168, %v2051
        %v3174 = vmul.f32 %v3168, %v2052
        %v3175 = vmul.f32 %v3168, %v2053
        %v3176 = vmul.f32 %v3168, %v2054
        %3185 = vrot.lane.b32.xlu0 %v3169, 126
        %v3186 = vpop.permute.xlu0 %3185
        %3187 = vrot.lane.b32.xlu0 %v3170, 126
        %v3188 = vpop.permute.xlu0 %3187
        %3189 = vrot.lane.b32.xlu0 %v3171, 126
        %v3190 = vpop.permute.xlu0 %3189
        %3191 = vrot.lane.b32.xlu0 %v3172, 126
        %v3192 = vpop.permute.xlu0 %3191
        %3193 = vrot.lane.b32.xlu0 %v3173, 126
        %v3194 = vpop.permute.xlu0 %3193
        %3195 = vrot.lane.b32.xlu0 %v3174, 126
        %v3196 = vpop.permute.xlu0 %3195
        %3197 = vrot.lane.b32.xlu0 %v3175, 126
        %v3198 = vpop.permute.xlu0 %3197
        %3199 = vrot.lane.b32.xlu0 %v3176, 126
        %v3200 = vpop.permute.xlu0 %3199
        %v3209 = vadd.f32 %v3009, %v3186
        %v3210 = vadd.f32 %v3010, %v3188
        %v3211 = vadd.f32 %v3011, %v3190
        %v3212 = vadd.f32 %v3012, %v3192
        %v3213 = vadd.f32 %v3013, %v3194
        %v3214 = vadd.f32 %v3014, %v3196
        %v3215 = vadd.f32 %v3015, %v3198
        %v3216 = vadd.f32 %v3016, %v3200
        %s3217 = sld [smem:[#allocation2 + $0x54]]
        %v3218 = vstv %s3217
        %v3219 = vmul.f32 %v3218, %v2047
        %v3220 = vmul.f32 %v3218, %v2048
        %v3221 = vmul.f32 %v3218, %v2049
        %v3222 = vmul.f32 %v3218, %v2050
        %v3223 = vmul.f32 %v3218, %v2051
        %v3224 = vmul.f32 %v3218, %v2052
        %v3225 = vmul.f32 %v3218, %v2053
        %v3226 = vmul.f32 %v3218, %v2054
        %3235 = vrot.lane.b32.xlu0 %v3219, 126
        %v3236 = vpop.permute.xlu0 %3235
        %3237 = vrot.lane.b32.xlu0 %v3220, 126
        %v3238 = vpop.permute.xlu0 %3237
        %3239 = vrot.lane.b32.xlu0 %v3221, 126
        %v3240 = vpop.permute.xlu0 %3239
        %3241 = vrot.lane.b32.xlu0 %v3222, 126
        %v3242 = vpop.permute.xlu0 %3241
        %3243 = vrot.lane.b32.xlu0 %v3223, 126
        %v3244 = vpop.permute.xlu0 %3243
        %3245 = vrot.lane.b32.xlu0 %v3224, 126
        %v3246 = vpop.permute.xlu0 %3245
        %3247 = vrot.lane.b32.xlu0 %v3225, 126
        %v3248 = vpop.permute.xlu0 %3247
        %3249 = vrot.lane.b32.xlu0 %v3226, 126
        %v3250 = vpop.permute.xlu0 %3249
        %v3259 = vadd.f32 %v3059, %v3236
        %v3260 = vadd.f32 %v3060, %v3238
        %v3261 = vadd.f32 %v3061, %v3240
        %v3262 = vadd.f32 %v3062, %v3242
        %v3263 = vadd.f32 %v3063, %v3244
        %v3264 = vadd.f32 %v3064, %v3246
        %v3265 = vadd.f32 %v3065, %v3248
        %v3266 = vadd.f32 %v3066, %v3250
        %s3267 = sld [smem:[#allocation2 + $0x58]]
        %v3268 = vstv %s3267
        %v3269 = vmul.f32 %v3268, %v2047
        %v3270 = vmul.f32 %v3268, %v2048
        %v3271 = vmul.f32 %v3268, %v2049
        %v3272 = vmul.f32 %v3268, %v2050
        %v3273 = vmul.f32 %v3268, %v2051
        %v3274 = vmul.f32 %v3268, %v2052
        %v3275 = vmul.f32 %v3268, %v2053
        %v3276 = vmul.f32 %v3268, %v2054
        %3285 = vrot.lane.b32.xlu0 %v3269, 126
        %v3286 = vpop.permute.xlu0 %3285
        %3287 = vrot.lane.b32.xlu0 %v3270, 126
        %v3288 = vpop.permute.xlu0 %3287
        %3289 = vrot.lane.b32.xlu0 %v3271, 126
        %v3290 = vpop.permute.xlu0 %3289
        %3291 = vrot.lane.b32.xlu0 %v3272, 126
        %v3292 = vpop.permute.xlu0 %3291
        %3293 = vrot.lane.b32.xlu0 %v3273, 126
        %v3294 = vpop.permute.xlu0 %3293
        %3295 = vrot.lane.b32.xlu0 %v3274, 126
        %v3296 = vpop.permute.xlu0 %3295
        %3297 = vrot.lane.b32.xlu0 %v3275, 126
        %v3298 = vpop.permute.xlu0 %3297
        %3299 = vrot.lane.b32.xlu0 %v3276, 126
        %v3300 = vpop.permute.xlu0 %3299
        %v3309 = vadd.f32 %v3109, %v3286
        %v3310 = vadd.f32 %v3110, %v3288
        %v3311 = vadd.f32 %v3111, %v3290
        %v3312 = vadd.f32 %v3112, %v3292
        %v3313 = vadd.f32 %v3113, %v3294
        %v3314 = vadd.f32 %v3114, %v3296
        %v3315 = vadd.f32 %v3115, %v3298
        %v3316 = vadd.f32 %v3116, %v3300
        %s3317 = sld [smem:[#allocation2 + $0x5c]]
        %v3318 = vstv %s3317
        %v3319 = vmul.f32 %v3318, %v2047
        %v3320 = vmul.f32 %v3318, %v2048
        %v3321 = vmul.f32 %v3318, %v2049
        %v3322 = vmul.f32 %v3318, %v2050
        %v3323 = vmul.f32 %v3318, %v2051
        %v3324 = vmul.f32 %v3318, %v2052
        %v3325 = vmul.f32 %v3318, %v2053
        %v3326 = vmul.f32 %v3318, %v2054
        %3335 = vrot.lane.b32.xlu0 %v3319, 126
        %v3336 = vpop.permute.xlu0 %3335
        %3337 = vrot.lane.b32.xlu0 %v3320, 126
        %v3338 = vpop.permute.xlu0 %3337
        %3339 = vrot.lane.b32.xlu0 %v3321, 126
        %v3340 = vpop.permute.xlu0 %3339
        %3341 = vrot.lane.b32.xlu0 %v3322, 126
        %v3342 = vpop.permute.xlu0 %3341
        %3343 = vrot.lane.b32.xlu0 %v3323, 126
        %v3344 = vpop.permute.xlu0 %3343
        %3345 = vrot.lane.b32.xlu0 %v3324, 126
        %v3346 = vpop.permute.xlu0 %3345
        %3347 = vrot.lane.b32.xlu0 %v3325, 126
        %v3348 = vpop.permute.xlu0 %3347
        %3349 = vrot.lane.b32.xlu0 %v3326, 126
        %v3350 = vpop.permute.xlu0 %3349
        %v3359 = vadd.f32 %v3159, %v3336
        %v3360 = vadd.f32 %v3160, %v3338
        %v3361 = vadd.f32 %v3161, %v3340
        %v3362 = vadd.f32 %v3162, %v3342
        %v3363 = vadd.f32 %v3163, %v3344
        %v3364 = vadd.f32 %v3164, %v3346
        %v3365 = vadd.f32 %v3165, %v3348
        %v3366 = vadd.f32 %v3166, %v3350
        %s3367 = sld [smem:[#allocation2 + $0x51]]
        %v3368 = vstv %s3367
        %v3369 = vmul.f32 %v3368, %v2127
        %v3370 = vmul.f32 %v3368, %v2128
        %v3371 = vmul.f32 %v3368, %v2129
        %v3372 = vmul.f32 %v3368, %v2130
        %v3373 = vmul.f32 %v3368, %v2131
        %v3374 = vmul.f32 %v3368, %v2132
        %v3375 = vmul.f32 %v3368, %v2133
        %v3376 = vmul.f32 %v3368, %v2134
        %3385 = vrot.lane.b32.xlu0 %v3369, 126
        %v3386 = vpop.permute.xlu0 %3385
        %3387 = vrot.lane.b32.xlu0 %v3370, 126
        %v3388 = vpop.permute.xlu0 %3387
        %3389 = vrot.lane.b32.xlu0 %v3371, 126
        %v3390 = vpop.permute.xlu0 %3389
        %3391 = vrot.lane.b32.xlu0 %v3372, 126
        %v3392 = vpop.permute.xlu0 %3391
        %3393 = vrot.lane.b32.xlu0 %v3373, 126
        %v3394 = vpop.permute.xlu0 %3393
        %3395 = vrot.lane.b32.xlu0 %v3374, 126
        %v3396 = vpop.permute.xlu0 %3395
        %3397 = vrot.lane.b32.xlu0 %v3375, 126
        %v3398 = vpop.permute.xlu0 %3397
        %3399 = vrot.lane.b32.xlu0 %v3376, 126
        %v3400 = vpop.permute.xlu0 %3399
        %v3409 = vadd.f32 %v3209, %v3386
        %v3410 = vadd.f32 %v3210, %v3388
        %v3411 = vadd.f32 %v3211, %v3390
        %v3412 = vadd.f32 %v3212, %v3392
        %v3413 = vadd.f32 %v3213, %v3394
        %v3414 = vadd.f32 %v3214, %v3396
        %v3415 = vadd.f32 %v3215, %v3398
        %v3416 = vadd.f32 %v3216, %v3400
        %s3417 = sld [smem:[#allocation2 + $0x55]]
        %v3418 = vstv %s3417
        %v3419 = vmul.f32 %v3418, %v2127
        %v3420 = vmul.f32 %v3418, %v2128
        %v3421 = vmul.f32 %v3418, %v2129
        %v3422 = vmul.f32 %v3418, %v2130
        %v3423 = vmul.f32 %v3418, %v2131
        %v3424 = vmul.f32 %v3418, %v2132
        %v3425 = vmul.f32 %v3418, %v2133
        %v3426 = vmul.f32 %v3418, %v2134
        %3435 = vrot.lane.b32.xlu0 %v3419, 126
        %v3436 = vpop.permute.xlu0 %3435
        %3437 = vrot.lane.b32.xlu0 %v3420, 126
        %v3438 = vpop.permute.xlu0 %3437
        %3439 = vrot.lane.b32.xlu0 %v3421, 126
        %v3440 = vpop.permute.xlu0 %3439
        %3441 = vrot.lane.b32.xlu0 %v3422, 126
        %v3442 = vpop.permute.xlu0 %3441
        %3443 = vrot.lane.b32.xlu0 %v3423, 126
        %v3444 = vpop.permute.xlu0 %3443
        %3445 = vrot.lane.b32.xlu0 %v3424, 126
        %v3446 = vpop.permute.xlu0 %3445
        %3447 = vrot.lane.b32.xlu0 %v3425, 126
        %v3448 = vpop.permute.xlu0 %3447
        %3449 = vrot.lane.b32.xlu0 %v3426, 126
        %v3450 = vpop.permute.xlu0 %3449
        %v3459 = vadd.f32 %v3259, %v3436
        %v3460 = vadd.f32 %v3260, %v3438
        %v3461 = vadd.f32 %v3261, %v3440
        %v3462 = vadd.f32 %v3262, %v3442
        %v3463 = vadd.f32 %v3263, %v3444
        %v3464 = vadd.f32 %v3264, %v3446
        %v3465 = vadd.f32 %v3265, %v3448
        %v3466 = vadd.f32 %v3266, %v3450
        %s3467 = sld [smem:[#allocation2 + $0x59]]
        %v3468 = vstv %s3467
        %v3469 = vmul.f32 %v3468, %v2127
        %v3470 = vmul.f32 %v3468, %v2128
        %v3471 = vmul.f32 %v3468, %v2129
        %v3472 = vmul.f32 %v3468, %v2130
        %v3473 = vmul.f32 %v3468, %v2131
        %v3474 = vmul.f32 %v3468, %v2132
        %v3475 = vmul.f32 %v3468, %v2133
        %v3476 = vmul.f32 %v3468, %v2134
        %3485 = vrot.lane.b32.xlu0 %v3469, 126
        %v3486 = vpop.permute.xlu0 %3485
        %3487 = vrot.lane.b32.xlu0 %v3470, 126
        %v3488 = vpop.permute.xlu0 %3487
        %3489 = vrot.lane.b32.xlu0 %v3471, 126
        %v3490 = vpop.permute.xlu0 %3489
        %3491 = vrot.lane.b32.xlu0 %v3472, 126
        %v3492 = vpop.permute.xlu0 %3491
        %3493 = vrot.lane.b32.xlu0 %v3473, 126
        %v3494 = vpop.permute.xlu0 %3493
        %3495 = vrot.lane.b32.xlu0 %v3474, 126
        %v3496 = vpop.permute.xlu0 %3495
        %3497 = vrot.lane.b32.xlu0 %v3475, 126
        %v3498 = vpop.permute.xlu0 %3497
        %3499 = vrot.lane.b32.xlu0 %v3476, 126
        %v3500 = vpop.permute.xlu0 %3499
        %v3509 = vadd.f32 %v3309, %v3486
        %v3510 = vadd.f32 %v3310, %v3488
        %v3511 = vadd.f32 %v3311, %v3490
        %v3512 = vadd.f32 %v3312, %v3492
        %v3513 = vadd.f32 %v3313, %v3494
        %v3514 = vadd.f32 %v3314, %v3496
        %v3515 = vadd.f32 %v3315, %v3498
        %v3516 = vadd.f32 %v3316, %v3500
        %s3517 = sld [smem:[#allocation2 + $0x5d]]
        %v3518 = vstv %s3517
        %v3519 = vmul.f32 %v3518, %v2127
        %v3520 = vmul.f32 %v3518, %v2128
        %v3521 = vmul.f32 %v3518, %v2129
        %v3522 = vmul.f32 %v3518, %v2130
        %v3523 = vmul.f32 %v3518, %v2131
        %v3524 = vmul.f32 %v3518, %v2132
        %v3525 = vmul.f32 %v3518, %v2133
        %v3526 = vmul.f32 %v3518, %v2134
        %3535 = vrot.lane.b32.xlu0 %v3519, 126
        %v3536 = vpop.permute.xlu0 %3535
        %3537 = vrot.lane.b32.xlu0 %v3520, 126
        %v3538 = vpop.permute.xlu0 %3537
        %3539 = vrot.lane.b32.xlu0 %v3521, 126
        %v3540 = vpop.permute.xlu0 %3539
        %3541 = vrot.lane.b32.xlu0 %v3522, 126
        %v3542 = vpop.permute.xlu0 %3541
        %3543 = vrot.lane.b32.xlu0 %v3523, 126
        %v3544 = vpop.permute.xlu0 %3543
        %3545 = vrot.lane.b32.xlu0 %v3524, 126
        %v3546 = vpop.permute.xlu0 %3545
        %3547 = vrot.lane.b32.xlu0 %v3525, 126
        %v3548 = vpop.permute.xlu0 %3547
        %3549 = vrot.lane.b32.xlu0 %v3526, 126
        %v3550 = vpop.permute.xlu0 %3549
        %v3559 = vadd.f32 %v3359, %v3536
        %v3560 = vadd.f32 %v3360, %v3538
        %v3561 = vadd.f32 %v3361, %v3540
        %v3562 = vadd.f32 %v3362, %v3542
        %v3563 = vadd.f32 %v3363, %v3544
        %v3564 = vadd.f32 %v3364, %v3546
        %v3565 = vadd.f32 %v3365, %v3548
        %v3566 = vadd.f32 %v3366, %v3550
        %s3567 = sld [smem:[#allocation2 + $0x52]]
        %v3568 = vstv %s3567
        %v3569 = vmul.f32 %v3568, %v2207
        %v3570 = vmul.f32 %v3568, %v2208
        %v3571 = vmul.f32 %v3568, %v2209
        %v3572 = vmul.f32 %v3568, %v2210
        %v3573 = vmul.f32 %v3568, %v2211
        %v3574 = vmul.f32 %v3568, %v2212
        %v3575 = vmul.f32 %v3568, %v2213
        %v3576 = vmul.f32 %v3568, %v2214
        %3585 = vrot.lane.b32.xlu0 %v3569, 126
        %v3586 = vpop.permute.xlu0 %3585
        %3587 = vrot.lane.b32.xlu0 %v3570, 126
        %v3588 = vpop.permute.xlu0 %3587
        %3589 = vrot.lane.b32.xlu0 %v3571, 126
        %v3590 = vpop.permute.xlu0 %3589
        %3591 = vrot.lane.b32.xlu0 %v3572, 126
        %v3592 = vpop.permute.xlu0 %3591
        %3593 = vrot.lane.b32.xlu0 %v3573, 126
        %v3594 = vpop.permute.xlu0 %3593
        %3595 = vrot.lane.b32.xlu0 %v3574, 126
        %v3596 = vpop.permute.xlu0 %3595
        %3597 = vrot.lane.b32.xlu0 %v3575, 126
        %v3598 = vpop.permute.xlu0 %3597
        %3599 = vrot.lane.b32.xlu0 %v3576, 126
        %v3600 = vpop.permute.xlu0 %3599
        %v3609 = vadd.f32 %v3409, %v3586
        %v3610 = vadd.f32 %v3410, %v3588
        %v3611 = vadd.f32 %v3411, %v3590
        %v3612 = vadd.f32 %v3412, %v3592
        %v3613 = vadd.f32 %v3413, %v3594
        %v3614 = vadd.f32 %v3414, %v3596
        %v3615 = vadd.f32 %v3415, %v3598
        %v3616 = vadd.f32 %v3416, %v3600
        %s3617 = sld [smem:[#allocation2 + $0x56]]
        %v3618 = vstv %s3617
        %v3619 = vmul.f32 %v3618, %v2207
        %v3620 = vmul.f32 %v3618, %v2208
        %v3621 = vmul.f32 %v3618, %v2209
        %v3622 = vmul.f32 %v3618, %v2210
        %v3623 = vmul.f32 %v3618, %v2211
        %v3624 = vmul.f32 %v3618, %v2212
        %v3625 = vmul.f32 %v3618, %v2213
        %v3626 = vmul.f32 %v3618, %v2214
        %3635 = vrot.lane.b32.xlu0 %v3619, 126
        %v3636 = vpop.permute.xlu0 %3635
        %3637 = vrot.lane.b32.xlu0 %v3620, 126
        %v3638 = vpop.permute.xlu0 %3637
        %3639 = vrot.lane.b32.xlu0 %v3621, 126
        %v3640 = vpop.permute.xlu0 %3639
        %3641 = vrot.lane.b32.xlu0 %v3622, 126
        %v3642 = vpop.permute.xlu0 %3641
        %3643 = vrot.lane.b32.xlu0 %v3623, 126
        %v3644 = vpop.permute.xlu0 %3643
        %3645 = vrot.lane.b32.xlu0 %v3624, 126
        %v3646 = vpop.permute.xlu0 %3645
        %3647 = vrot.lane.b32.xlu0 %v3625, 126
        %v3648 = vpop.permute.xlu0 %3647
        %3649 = vrot.lane.b32.xlu0 %v3626, 126
        %v3650 = vpop.permute.xlu0 %3649
        %v3659 = vadd.f32 %v3459, %v3636
        %v3660 = vadd.f32 %v3460, %v3638
        %v3661 = vadd.f32 %v3461, %v3640
        %v3662 = vadd.f32 %v3462, %v3642
        %v3663 = vadd.f32 %v3463, %v3644
        %v3664 = vadd.f32 %v3464, %v3646
        %v3665 = vadd.f32 %v3465, %v3648
        %v3666 = vadd.f32 %v3466, %v3650
        %s3667 = sld [smem:[#allocation2 + $0x5a]]
        %v3668 = vstv %s3667
        %v3669 = vmul.f32 %v3668, %v2207
        %v3670 = vmul.f32 %v3668, %v2208
        %v3671 = vmul.f32 %v3668, %v2209
        %v3672 = vmul.f32 %v3668, %v2210
        %v3673 = vmul.f32 %v3668, %v2211
        %v3674 = vmul.f32 %v3668, %v2212
        %v3675 = vmul.f32 %v3668, %v2213
        %v3676 = vmul.f32 %v3668, %v2214
        %3685 = vrot.lane.b32.xlu0 %v3669, 126
        %v3686 = vpop.permute.xlu0 %3685
        %3687 = vrot.lane.b32.xlu0 %v3670, 126
        %v3688 = vpop.permute.xlu0 %3687
        %3689 = vrot.lane.b32.xlu0 %v3671, 126
        %v3690 = vpop.permute.xlu0 %3689
        %3691 = vrot.lane.b32.xlu0 %v3672, 126
        %v3692 = vpop.permute.xlu0 %3691
        %3693 = vrot.lane.b32.xlu0 %v3673, 126
        %v3694 = vpop.permute.xlu0 %3693
        %3695 = vrot.lane.b32.xlu0 %v3674, 126
        %v3696 = vpop.permute.xlu0 %3695
        %3697 = vrot.lane.b32.xlu0 %v3675, 126
        %v3698 = vpop.permute.xlu0 %3697
        %3699 = vrot.lane.b32.xlu0 %v3676, 126
        %v3700 = vpop.permute.xlu0 %3699
        %v3709 = vadd.f32 %v3509, %v3686
        %v3710 = vadd.f32 %v3510, %v3688
        %v3711 = vadd.f32 %v3511, %v3690
        %v3712 = vadd.f32 %v3512, %v3692
        %v3713 = vadd.f32 %v3513, %v3694
        %v3714 = vadd.f32 %v3514, %v3696
        %v3715 = vadd.f32 %v3515, %v3698
        %v3716 = vadd.f32 %v3516, %v3700
        %s3717 = sld [smem:[#allocation2 + $0x5e]]
        %v3718 = vstv %s3717
        %v3719 = vmul.f32 %v3718, %v2207
        %v3720 = vmul.f32 %v3718, %v2208
        %v3721 = vmul.f32 %v3718, %v2209
        %v3722 = vmul.f32 %v3718, %v2210
        %v3723 = vmul.f32 %v3718, %v2211
        %v3724 = vmul.f32 %v3718, %v2212
        %v3725 = vmul.f32 %v3718, %v2213
        %v3726 = vmul.f32 %v3718, %v2214
        %3735 = vrot.lane.b32.xlu0 %v3719, 126
        %v3736 = vpop.permute.xlu0 %3735
        %3737 = vrot.lane.b32.xlu0 %v3720, 126
        %v3738 = vpop.permute.xlu0 %3737
        %3739 = vrot.lane.b32.xlu0 %v3721, 126
        %v3740 = vpop.permute.xlu0 %3739
        %3741 = vrot.lane.b32.xlu0 %v3722, 126
        %v3742 = vpop.permute.xlu0 %3741
        %3743 = vrot.lane.b32.xlu0 %v3723, 126
        %v3744 = vpop.permute.xlu0 %3743
        %3745 = vrot.lane.b32.xlu0 %v3724, 126
        %v3746 = vpop.permute.xlu0 %3745
        %3747 = vrot.lane.b32.xlu0 %v3725, 126
        %v3748 = vpop.permute.xlu0 %3747
        %3749 = vrot.lane.b32.xlu0 %v3726, 126
        %v3750 = vpop.permute.xlu0 %3749
        %v3759 = vadd.f32 %v3559, %v3736
        %v3760 = vadd.f32 %v3560, %v3738
        %v3761 = vadd.f32 %v3561, %v3740
        %v3762 = vadd.f32 %v3562, %v3742
        %v3763 = vadd.f32 %v3563, %v3744
        %v3764 = vadd.f32 %v3564, %v3746
        %v3765 = vadd.f32 %v3565, %v3748
        %v3766 = vadd.f32 %v3566, %v3750
        %s3767 = sld [smem:[#allocation2 + $0x53]]
        %v3768 = vstv %s3767
        %v3769 = vmul.f32 %v3768, %v2287
        %v3770 = vmul.f32 %v3768, %v2288
        %v3771 = vmul.f32 %v3768, %v2289
        %v3772 = vmul.f32 %v3768, %v2290
        %v3773 = vmul.f32 %v3768, %v2291
        %v3774 = vmul.f32 %v3768, %v2292
        %v3775 = vmul.f32 %v3768, %v2293
        %v3776 = vmul.f32 %v3768, %v2294
        %3785 = vrot.lane.b32.xlu0 %v3769, 126
        %v3786 = vpop.permute.xlu0 %3785
        %3787 = vrot.lane.b32.xlu0 %v3770, 126
        %v3788 = vpop.permute.xlu0 %3787
        %3789 = vrot.lane.b32.xlu0 %v3771, 126
        %v3790 = vpop.permute.xlu0 %3789
        %3791 = vrot.lane.b32.xlu0 %v3772, 126
        %v3792 = vpop.permute.xlu0 %3791
        %3793 = vrot.lane.b32.xlu0 %v3773, 126
        %v3794 = vpop.permute.xlu0 %3793
        %3795 = vrot.lane.b32.xlu0 %v3774, 126
        %v3796 = vpop.permute.xlu0 %3795
        %3797 = vrot.lane.b32.xlu0 %v3775, 126
        %v3798 = vpop.permute.xlu0 %3797
        %3799 = vrot.lane.b32.xlu0 %v3776, 126
        %v3800 = vpop.permute.xlu0 %3799
        %v3809 = vadd.f32 %v3609, %v3786
        %v3810 = vadd.f32 %v3610, %v3788
        %v3811 = vadd.f32 %v3611, %v3790
        %v3812 = vadd.f32 %v3612, %v3792
        %v3813 = vadd.f32 %v3613, %v3794
        %v3814 = vadd.f32 %v3614, %v3796
        %v3815 = vadd.f32 %v3615, %v3798
        %v3816 = vadd.f32 %v3616, %v3800
        %s3817 = sld [smem:[#allocation2 + $0x57]]
        %v3818 = vstv %s3817
        %v3819 = vmul.f32 %v3818, %v2287
        %v3820 = vmul.f32 %v3818, %v2288
        %v3821 = vmul.f32 %v3818, %v2289
        %v3822 = vmul.f32 %v3818, %v2290
        %v3823 = vmul.f32 %v3818, %v2291
        %v3824 = vmul.f32 %v3818, %v2292
        %v3825 = vmul.f32 %v3818, %v2293
        %v3826 = vmul.f32 %v3818, %v2294
        %3835 = vrot.lane.b32.xlu0 %v3819, 126
        %v3836 = vpop.permute.xlu0 %3835
        %3837 = vrot.lane.b32.xlu0 %v3820, 126
        %v3838 = vpop.permute.xlu0 %3837
        %3839 = vrot.lane.b32.xlu0 %v3821, 126
        %v3840 = vpop.permute.xlu0 %3839
        %3841 = vrot.lane.b32.xlu0 %v3822, 126
        %v3842 = vpop.permute.xlu0 %3841
        %3843 = vrot.lane.b32.xlu0 %v3823, 126
        %v3844 = vpop.permute.xlu0 %3843
        %3845 = vrot.lane.b32.xlu0 %v3824, 126
        %v3846 = vpop.permute.xlu0 %3845
        %3847 = vrot.lane.b32.xlu0 %v3825, 126
        %v3848 = vpop.permute.xlu0 %3847
        %3849 = vrot.lane.b32.xlu0 %v3826, 126
        %v3850 = vpop.permute.xlu0 %3849
        %v3859 = vadd.f32 %v3659, %v3836
        %v3860 = vadd.f32 %v3660, %v3838
        %v3861 = vadd.f32 %v3661, %v3840
        %v3862 = vadd.f32 %v3662, %v3842
        %v3863 = vadd.f32 %v3663, %v3844
        %v3864 = vadd.f32 %v3664, %v3846
        %v3865 = vadd.f32 %v3665, %v3848
        %v3866 = vadd.f32 %v3666, %v3850
        %s3867 = sld [smem:[#allocation2 + $0x5b]]
        %v3868 = vstv %s3867
        %v3869 = vmul.f32 %v3868, %v2287
        %v3870 = vmul.f32 %v3868, %v2288
        %v3871 = vmul.f32 %v3868, %v2289
        %v3872 = vmul.f32 %v3868, %v2290
        %v3873 = vmul.f32 %v3868, %v2291
        %v3874 = vmul.f32 %v3868, %v2292
        %v3875 = vmul.f32 %v3868, %v2293
        %v3876 = vmul.f32 %v3868, %v2294
        %3885 = vrot.lane.b32.xlu0 %v3869, 126
        %v3886 = vpop.permute.xlu0 %3885
        %3887 = vrot.lane.b32.xlu0 %v3870, 126
        %v3888 = vpop.permute.xlu0 %3887
        %3889 = vrot.lane.b32.xlu0 %v3871, 126
        %v3890 = vpop.permute.xlu0 %3889
        %3891 = vrot.lane.b32.xlu0 %v3872, 126
        %v3892 = vpop.permute.xlu0 %3891
        %3893 = vrot.lane.b32.xlu0 %v3873, 126
        %v3894 = vpop.permute.xlu0 %3893
        %3895 = vrot.lane.b32.xlu0 %v3874, 126
        %v3896 = vpop.permute.xlu0 %3895
        %3897 = vrot.lane.b32.xlu0 %v3875, 126
        %v3898 = vpop.permute.xlu0 %3897
        %3899 = vrot.lane.b32.xlu0 %v3876, 126
        %v3900 = vpop.permute.xlu0 %3899
        %v3909 = vadd.f32 %v3709, %v3886
        %v3910 = vadd.f32 %v3710, %v3888
        %v3911 = vadd.f32 %v3711, %v3890
        %v3912 = vadd.f32 %v3712, %v3892
        %v3913 = vadd.f32 %v3713, %v3894
        %v3914 = vadd.f32 %v3714, %v3896
        %v3915 = vadd.f32 %v3715, %v3898
        %v3916 = vadd.f32 %v3716, %v3900
        %s3917 = sld [smem:[#allocation2 + $0x5f]]
        %v3918 = vstv %s3917
        %v3919 = vmul.f32 %v3918, %v2287
        %v3920 = vmul.f32 %v3918, %v2288
        %v3921 = vmul.f32 %v3918, %v2289
        %v3922 = vmul.f32 %v3918, %v2290
        %v3923 = vmul.f32 %v3918, %v2291
        %v3924 = vmul.f32 %v3918, %v2292
        %v3925 = vmul.f32 %v3918, %v2293
        %v3926 = vmul.f32 %v3918, %v2294
        %3935 = vrot.lane.b32.xlu0 %v3919, 126
        %v3936 = vpop.permute.xlu0 %3935
        %3937 = vrot.lane.b32.xlu0 %v3920, 126
        %v3938 = vpop.permute.xlu0 %3937
        %3939 = vrot.lane.b32.xlu0 %v3921, 126
        %v3940 = vpop.permute.xlu0 %3939
        %3941 = vrot.lane.b32.xlu0 %v3922, 126
        %v3942 = vpop.permute.xlu0 %3941
        %3943 = vrot.lane.b32.xlu0 %v3923, 126
        %v3944 = vpop.permute.xlu0 %3943
        %3945 = vrot.lane.b32.xlu0 %v3924, 126
        %v3946 = vpop.permute.xlu0 %3945
        %3947 = vrot.lane.b32.xlu0 %v3925, 126
        %v3948 = vpop.permute.xlu0 %3947
        %3949 = vrot.lane.b32.xlu0 %v3926, 126
        %v3950 = vpop.permute.xlu0 %3949
        %v3959 = vadd.f32 %v3759, %v3936
        %v3960 = vadd.f32 %v3760, %v3938
        %v3961 = vadd.f32 %v3761, %v3940
        %v3962 = vadd.f32 %v3762, %v3942
        %v3963 = vadd.f32 %v3763, %v3944
        %v3964 = vadd.f32 %v3764, %v3946
        %v3965 = vadd.f32 %v3765, %v3948
        %v3966 = vadd.f32 %v3766, %v3950
        %v3967 = vld [vmem:[%s155 + $0x2] sm:$0xff]
        %v3968 = vld [vmem:[%s155 + $0xa] sm:$0xff]
        %v3969 = vld [vmem:[%s155 + $0x12] sm:$0xff]
        %v3970 = vld [vmem:[%s155 + $0x1a] sm:$0xff]
        %v3971 = vld [vmem:[%s155 + $0x22] sm:$0xff]
        %v3972 = vld [vmem:[%s155 + $0x2a] sm:$0xff]
        %v3973 = vld [vmem:[%s155 + $0x32] sm:$0xff]
        %v3974 = vld [vmem:[%s155 + $0x3a] sm:$0xff]
        %s3975 = sld [smem:[#allocation2 + $0x60]]
        %v3976 = vstv %s3975
        %v3977 = vmul.f32 %v3976, %v3967
        %v3978 = vmul.f32 %v3976, %v3968
        %v3979 = vmul.f32 %v3976, %v3969
        %v3980 = vmul.f32 %v3976, %v3970
        %v3981 = vmul.f32 %v3976, %v3971
        %v3982 = vmul.f32 %v3976, %v3972
        %v3983 = vmul.f32 %v3976, %v3973
        %v3984 = vmul.f32 %v3976, %v3974
        %v3985 = vadd.f32 %v3809, %v3977
        %v3986 = vadd.f32 %v3810, %v3978
        %v3987 = vadd.f32 %v3811, %v3979
        %v3988 = vadd.f32 %v3812, %v3980
        %v3989 = vadd.f32 %v3813, %v3981
        %v3990 = vadd.f32 %v3814, %v3982
        %v3991 = vadd.f32 %v3815, %v3983
        %v3992 = vadd.f32 %v3816, %v3984
        %s3993 = sld [smem:[#allocation2 + $0x64]]
        %v3994 = vstv %s3993
        %v3995 = vmul.f32 %v3994, %v3967
        %v3996 = vmul.f32 %v3994, %v3968
        %v3997 = vmul.f32 %v3994, %v3969
        %v3998 = vmul.f32 %v3994, %v3970
        %v3999 = vmul.f32 %v3994, %v3971
        %v4000 = vmul.f32 %v3994, %v3972
        %v4001 = vmul.f32 %v3994, %v3973
        %v4002 = vmul.f32 %v3994, %v3974
        %v4003 = vadd.f32 %v3859, %v3995
        %v4004 = vadd.f32 %v3860, %v3996
        %v4005 = vadd.f32 %v3861, %v3997
        %v4006 = vadd.f32 %v3862, %v3998
        %v4007 = vadd.f32 %v3863, %v3999
        %v4008 = vadd.f32 %v3864, %v4000
        %v4009 = vadd.f32 %v3865, %v4001
        %v4010 = vadd.f32 %v3866, %v4002
        %s4011 = sld [smem:[#allocation2 + $0x68]]
        %v4012 = vstv %s4011
        %v4013 = vmul.f32 %v4012, %v3967
        %v4014 = vmul.f32 %v4012, %v3968
        %v4015 = vmul.f32 %v4012, %v3969
        %v4016 = vmul.f32 %v4012, %v3970
        %v4017 = vmul.f32 %v4012, %v3971
        %v4018 = vmul.f32 %v4012, %v3972
        %v4019 = vmul.f32 %v4012, %v3973
        %v4020 = vmul.f32 %v4012, %v3974
        %v4021 = vadd.f32 %v3909, %v4013
        %v4022 = vadd.f32 %v3910, %v4014
        %v4023 = vadd.f32 %v3911, %v4015
        %v4024 = vadd.f32 %v3912, %v4016
        %v4025 = vadd.f32 %v3913, %v4017
        %v4026 = vadd.f32 %v3914, %v4018
        %v4027 = vadd.f32 %v3915, %v4019
        %v4028 = vadd.f32 %v3916, %v4020
        %s4029 = sld [smem:[#allocation2 + $0x6c]]
        %v4030 = vstv %s4029
        %v4031 = vmul.f32 %v4030, %v3967
        %v4032 = vmul.f32 %v4030, %v3968
        %v4033 = vmul.f32 %v4030, %v3969
        %v4034 = vmul.f32 %v4030, %v3970
        %v4035 = vmul.f32 %v4030, %v3971
        %v4036 = vmul.f32 %v4030, %v3972
        %v4037 = vmul.f32 %v4030, %v3973
        %v4038 = vmul.f32 %v4030, %v3974
        %v4039 = vadd.f32 %v3959, %v4031
        %v4040 = vadd.f32 %v3960, %v4032
        %v4041 = vadd.f32 %v3961, %v4033
        %v4042 = vadd.f32 %v3962, %v4034
        %v4043 = vadd.f32 %v3963, %v4035
        %v4044 = vadd.f32 %v3964, %v4036
        %v4045 = vadd.f32 %v3965, %v4037
        %v4046 = vadd.f32 %v3966, %v4038
        %v4047 = vld [vmem:[%s204 + $0x2] sm:$0xff]
        %v4048 = vld [vmem:[%s204 + $0xa] sm:$0xff]
        %v4049 = vld [vmem:[%s204 + $0x12] sm:$0xff]
        %v4050 = vld [vmem:[%s204 + $0x1a] sm:$0xff]
        %v4051 = vld [vmem:[%s204 + $0x22] sm:$0xff]
        %v4052 = vld [vmem:[%s204 + $0x2a] sm:$0xff]
        %v4053 = vld [vmem:[%s204 + $0x32] sm:$0xff]
        %v4054 = vld [vmem:[%s204 + $0x3a] sm:$0xff]
        %s4055 = sld [smem:[#allocation2 + $0x61]]
        %v4056 = vstv %s4055
        %v4057 = vmul.f32 %v4056, %v4047
        %v4058 = vmul.f32 %v4056, %v4048
        %v4059 = vmul.f32 %v4056, %v4049
        %v4060 = vmul.f32 %v4056, %v4050
        %v4061 = vmul.f32 %v4056, %v4051
        %v4062 = vmul.f32 %v4056, %v4052
        %v4063 = vmul.f32 %v4056, %v4053
        %v4064 = vmul.f32 %v4056, %v4054
        %v4065 = vadd.f32 %v3985, %v4057
        %v4066 = vadd.f32 %v3986, %v4058
        %v4067 = vadd.f32 %v3987, %v4059
        %v4068 = vadd.f32 %v3988, %v4060
        %v4069 = vadd.f32 %v3989, %v4061
        %v4070 = vadd.f32 %v3990, %v4062
        %v4071 = vadd.f32 %v3991, %v4063
        %v4072 = vadd.f32 %v3992, %v4064
        %s4073 = sld [smem:[#allocation2 + $0x65]]
        %v4074 = vstv %s4073
        %v4075 = vmul.f32 %v4074, %v4047
        %v4076 = vmul.f32 %v4074, %v4048
        %v4077 = vmul.f32 %v4074, %v4049
        %v4078 = vmul.f32 %v4074, %v4050
        %v4079 = vmul.f32 %v4074, %v4051
        %v4080 = vmul.f32 %v4074, %v4052
        %v4081 = vmul.f32 %v4074, %v4053
        %v4082 = vmul.f32 %v4074, %v4054
        %v4083 = vadd.f32 %v4003, %v4075
        %v4084 = vadd.f32 %v4004, %v4076
        %v4085 = vadd.f32 %v4005, %v4077
        %v4086 = vadd.f32 %v4006, %v4078
        %v4087 = vadd.f32 %v4007, %v4079
        %v4088 = vadd.f32 %v4008, %v4080
        %v4089 = vadd.f32 %v4009, %v4081
        %v4090 = vadd.f32 %v4010, %v4082
        %s4091 = sld [smem:[#allocation2 + $0x69]]
        %v4092 = vstv %s4091
        %v4093 = vmul.f32 %v4092, %v4047
        %v4094 = vmul.f32 %v4092, %v4048
        %v4095 = vmul.f32 %v4092, %v4049
        %v4096 = vmul.f32 %v4092, %v4050
        %v4097 = vmul.f32 %v4092, %v4051
        %v4098 = vmul.f32 %v4092, %v4052
        %v4099 = vmul.f32 %v4092, %v4053
        %v4100 = vmul.f32 %v4092, %v4054
        %v4101 = vadd.f32 %v4021, %v4093
        %v4102 = vadd.f32 %v4022, %v4094
        %v4103 = vadd.f32 %v4023, %v4095
        %v4104 = vadd.f32 %v4024, %v4096
        %v4105 = vadd.f32 %v4025, %v4097
        %v4106 = vadd.f32 %v4026, %v4098
        %v4107 = vadd.f32 %v4027, %v4099
        %v4108 = vadd.f32 %v4028, %v4100
        %s4109 = sld [smem:[#allocation2 + $0x6d]]
        %v4110 = vstv %s4109
        %v4111 = vmul.f32 %v4110, %v4047
        %v4112 = vmul.f32 %v4110, %v4048
        %v4113 = vmul.f32 %v4110, %v4049
        %v4114 = vmul.f32 %v4110, %v4050
        %v4115 = vmul.f32 %v4110, %v4051
        %v4116 = vmul.f32 %v4110, %v4052
        %v4117 = vmul.f32 %v4110, %v4053
        %v4118 = vmul.f32 %v4110, %v4054
        %v4119 = vadd.f32 %v4039, %v4111
        %v4120 = vadd.f32 %v4040, %v4112
        %v4121 = vadd.f32 %v4041, %v4113
        %v4122 = vadd.f32 %v4042, %v4114
        %v4123 = vadd.f32 %v4043, %v4115
        %v4124 = vadd.f32 %v4044, %v4116
        %v4125 = vadd.f32 %v4045, %v4117
        %v4126 = vadd.f32 %v4046, %v4118
        %v4127 = vld [vmem:[%s285 + $0x2] sm:$0xff]
        %v4128 = vld [vmem:[%s285 + $0xa] sm:$0xff]
        %v4129 = vld [vmem:[%s285 + $0x12] sm:$0xff]
        %v4130 = vld [vmem:[%s285 + $0x1a] sm:$0xff]
        %v4131 = vld [vmem:[%s285 + $0x22] sm:$0xff]
        %v4132 = vld [vmem:[%s285 + $0x2a] sm:$0xff]
        %v4133 = vld [vmem:[%s285 + $0x32] sm:$0xff]
        %v4134 = vld [vmem:[%s285 + $0x3a] sm:$0xff]
        %s4135 = sld [smem:[#allocation2 + $0x62]]
        %v4136 = vstv %s4135
        %v4137 = vmul.f32 %v4136, %v4127
        %v4138 = vmul.f32 %v4136, %v4128
        %v4139 = vmul.f32 %v4136, %v4129
        %v4140 = vmul.f32 %v4136, %v4130
        %v4141 = vmul.f32 %v4136, %v4131
        %v4142 = vmul.f32 %v4136, %v4132
        %v4143 = vmul.f32 %v4136, %v4133
        %v4144 = vmul.f32 %v4136, %v4134
        %v4145 = vadd.f32 %v4065, %v4137
        %v4146 = vadd.f32 %v4066, %v4138
        %v4147 = vadd.f32 %v4067, %v4139
        %v4148 = vadd.f32 %v4068, %v4140
        %v4149 = vadd.f32 %v4069, %v4141
        %v4150 = vadd.f32 %v4070, %v4142
        %v4151 = vadd.f32 %v4071, %v4143
        %v4152 = vadd.f32 %v4072, %v4144
        %s4153 = sld [smem:[#allocation2 + $0x66]]
        %v4154 = vstv %s4153
        %v4155 = vmul.f32 %v4154, %v4127
        %v4156 = vmul.f32 %v4154, %v4128
        %v4157 = vmul.f32 %v4154, %v4129
        %v4158 = vmul.f32 %v4154, %v4130
        %v4159 = vmul.f32 %v4154, %v4131
        %v4160 = vmul.f32 %v4154, %v4132
        %v4161 = vmul.f32 %v4154, %v4133
        %v4162 = vmul.f32 %v4154, %v4134
        %v4163 = vadd.f32 %v4083, %v4155
        %v4164 = vadd.f32 %v4084, %v4156
        %v4165 = vadd.f32 %v4085, %v4157
        %v4166 = vadd.f32 %v4086, %v4158
        %v4167 = vadd.f32 %v4087, %v4159
        %v4168 = vadd.f32 %v4088, %v4160
        %v4169 = vadd.f32 %v4089, %v4161
        %v4170 = vadd.f32 %v4090, %v4162
        %s4171 = sld [smem:[#allocation2 + $0x6a]]
        %v4172 = vstv %s4171
        %v4173 = vmul.f32 %v4172, %v4127
        %v4174 = vmul.f32 %v4172, %v4128
        %v4175 = vmul.f32 %v4172, %v4129
        %v4176 = vmul.f32 %v4172, %v4130
        %v4177 = vmul.f32 %v4172, %v4131
        %v4178 = vmul.f32 %v4172, %v4132
        %v4179 = vmul.f32 %v4172, %v4133
        %v4180 = vmul.f32 %v4172, %v4134
        %v4181 = vadd.f32 %v4101, %v4173
        %v4182 = vadd.f32 %v4102, %v4174
        %v4183 = vadd.f32 %v4103, %v4175
        %v4184 = vadd.f32 %v4104, %v4176
        %v4185 = vadd.f32 %v4105, %v4177
        %v4186 = vadd.f32 %v4106, %v4178
        %v4187 = vadd.f32 %v4107, %v4179
        %v4188 = vadd.f32 %v4108, %v4180
        %s4189 = sld [smem:[#allocation2 + $0x6e]]
        %v4190 = vstv %s4189
        %v4191 = vmul.f32 %v4190, %v4127
        %v4192 = vmul.f32 %v4190, %v4128
        %v4193 = vmul.f32 %v4190, %v4129
        %v4194 = vmul.f32 %v4190, %v4130
        %v4195 = vmul.f32 %v4190, %v4131
        %v4196 = vmul.f32 %v4190, %v4132
        %v4197 = vmul.f32 %v4190, %v4133
        %v4198 = vmul.f32 %v4190, %v4134
        %v4199 = vadd.f32 %v4119, %v4191
        %v4200 = vadd.f32 %v4120, %v4192
        %v4201 = vadd.f32 %v4121, %v4193
        %v4202 = vadd.f32 %v4122, %v4194
        %v4203 = vadd.f32 %v4123, %v4195
        %v4204 = vadd.f32 %v4124, %v4196
        %v4205 = vadd.f32 %v4125, %v4197
        %v4206 = vadd.f32 %v4126, %v4198
        %v4207 = vld [vmem:[%s366 + $0x2] sm:$0xff]
        %v4208 = vld [vmem:[%s366 + $0xa] sm:$0xff]
        %v4209 = vld [vmem:[%s366 + $0x12] sm:$0xff]
        %v4210 = vld [vmem:[%s366 + $0x1a] sm:$0xff]
        %v4211 = vld [vmem:[%s366 + $0x22] sm:$0xff]
        %v4212 = vld [vmem:[%s366 + $0x2a] sm:$0xff]
        %v4213 = vld [vmem:[%s366 + $0x32] sm:$0xff]
        %v4214 = vld [vmem:[%s366 + $0x3a] sm:$0xff]
        %s4215 = sld [smem:[#allocation2 + $0x63]]
        %v4216 = vstv %s4215
        %v4217 = vmul.f32 %v4216, %v4207
        %v4218 = vmul.f32 %v4216, %v4208
        %v4219 = vmul.f32 %v4216, %v4209
        %v4220 = vmul.f32 %v4216, %v4210
        %v4221 = vmul.f32 %v4216, %v4211
        %v4222 = vmul.f32 %v4216, %v4212
        %v4223 = vmul.f32 %v4216, %v4213
        %v4224 = vmul.f32 %v4216, %v4214
        %v4225 = vadd.f32 %v4145, %v4217
        %v4226 = vadd.f32 %v4146, %v4218
        %v4227 = vadd.f32 %v4147, %v4219
        %v4228 = vadd.f32 %v4148, %v4220
        %v4229 = vadd.f32 %v4149, %v4221
        %v4230 = vadd.f32 %v4150, %v4222
        %v4231 = vadd.f32 %v4151, %v4223
        %v4232 = vadd.f32 %v4152, %v4224
        %s4233 = sld [smem:[#allocation2 + $0x67]]
        %v4234 = vstv %s4233
        %v4235 = vmul.f32 %v4234, %v4207
        %v4236 = vmul.f32 %v4234, %v4208
        %v4237 = vmul.f32 %v4234, %v4209
        %v4238 = vmul.f32 %v4234, %v4210
        %v4239 = vmul.f32 %v4234, %v4211
        %v4240 = vmul.f32 %v4234, %v4212
        %v4241 = vmul.f32 %v4234, %v4213
        %v4242 = vmul.f32 %v4234, %v4214
        %v4243 = vadd.f32 %v4163, %v4235
        %v4244 = vadd.f32 %v4164, %v4236
        %v4245 = vadd.f32 %v4165, %v4237
        %v4246 = vadd.f32 %v4166, %v4238
        %v4247 = vadd.f32 %v4167, %v4239
        %v4248 = vadd.f32 %v4168, %v4240
        %v4249 = vadd.f32 %v4169, %v4241
        %v4250 = vadd.f32 %v4170, %v4242
        %s4251 = sld [smem:[#allocation2 + $0x6b]]
        %v4252 = vstv %s4251
        %v4253 = vmul.f32 %v4252, %v4207
        %v4254 = vmul.f32 %v4252, %v4208
        %v4255 = vmul.f32 %v4252, %v4209
        %v4256 = vmul.f32 %v4252, %v4210
        %v4257 = vmul.f32 %v4252, %v4211
        %v4258 = vmul.f32 %v4252, %v4212
        %v4259 = vmul.f32 %v4252, %v4213
        %v4260 = vmul.f32 %v4252, %v4214
        %v4261 = vadd.f32 %v4181, %v4253
        %v4262 = vadd.f32 %v4182, %v4254
        %v4263 = vadd.f32 %v4183, %v4255
        %v4264 = vadd.f32 %v4184, %v4256
        %v4265 = vadd.f32 %v4185, %v4257
        %v4266 = vadd.f32 %v4186, %v4258
        %v4267 = vadd.f32 %v4187, %v4259
        %v4268 = vadd.f32 %v4188, %v4260
        %s4269 = sld [smem:[#allocation2 + $0x6f]]
        %v4270 = vstv %s4269
        %v4271 = vmul.f32 %v4270, %v4207
        %v4272 = vmul.f32 %v4270, %v4208
        %v4273 = vmul.f32 %v4270, %v4209
        %v4274 = vmul.f32 %v4270, %v4210
        %v4275 = vmul.f32 %v4270, %v4211
        %v4276 = vmul.f32 %v4270, %v4212
        %v4277 = vmul.f32 %v4270, %v4213
        %v4278 = vmul.f32 %v4270, %v4214
        %v4279 = vadd.f32 %v4199, %v4271
        %v4280 = vadd.f32 %v4200, %v4272
        %v4281 = vadd.f32 %v4201, %v4273
        %v4282 = vadd.f32 %v4202, %v4274
        %v4283 = vadd.f32 %v4203, %v4275
        %v4284 = vadd.f32 %v4204, %v4276
        %v4285 = vadd.f32 %v4205, %v4277
        %v4286 = vadd.f32 %v4206, %v4278
        %s4287 = sld [smem:[#allocation2 + $0x70]]
        %v4288 = vstv %s4287
        %v4289 = vmul.f32 %v4288, %v3967
        %v4290 = vmul.f32 %v4288, %v3968
        %v4291 = vmul.f32 %v4288, %v3969
        %v4292 = vmul.f32 %v4288, %v3970
        %v4293 = vmul.f32 %v4288, %v3971
        %v4294 = vmul.f32 %v4288, %v3972
        %v4295 = vmul.f32 %v4288, %v3973
        %v4296 = vmul.f32 %v4288, %v3974
        %4305 = vrot.lane.b32.xlu0 %v4289, 127
        %v4306 = vpop.permute.xlu0 %4305
        %4307 = vrot.lane.b32.xlu0 %v4290, 127
        %v4308 = vpop.permute.xlu0 %4307
        %4309 = vrot.lane.b32.xlu0 %v4291, 127
        %v4310 = vpop.permute.xlu0 %4309
        %4311 = vrot.lane.b32.xlu0 %v4292, 127
        %v4312 = vpop.permute.xlu0 %4311
        %4313 = vrot.lane.b32.xlu0 %v4293, 127
        %v4314 = vpop.permute.xlu0 %4313
        %4315 = vrot.lane.b32.xlu0 %v4294, 127
        %v4316 = vpop.permute.xlu0 %4315
        %4317 = vrot.lane.b32.xlu0 %v4295, 127
        %v4318 = vpop.permute.xlu0 %4317
        %4319 = vrot.lane.b32.xlu0 %v4296, 127
        %v4320 = vpop.permute.xlu0 %4319
        %v4329 = vadd.f32 %v4225, %v4306
        %v4330 = vadd.f32 %v4226, %v4308
        %v4331 = vadd.f32 %v4227, %v4310
        %v4332 = vadd.f32 %v4228, %v4312
        %v4333 = vadd.f32 %v4229, %v4314
        %v4334 = vadd.f32 %v4230, %v4316
        %v4335 = vadd.f32 %v4231, %v4318
        %v4336 = vadd.f32 %v4232, %v4320
        %s4337 = sld [smem:[#allocation2 + $0x74]]
        %v4338 = vstv %s4337
        %v4339 = vmul.f32 %v4338, %v3967
        %v4340 = vmul.f32 %v4338, %v3968
        %v4341 = vmul.f32 %v4338, %v3969
        %v4342 = vmul.f32 %v4338, %v3970
        %v4343 = vmul.f32 %v4338, %v3971
        %v4344 = vmul.f32 %v4338, %v3972
        %v4345 = vmul.f32 %v4338, %v3973
        %v4346 = vmul.f32 %v4338, %v3974
        %4355 = vrot.lane.b32.xlu0 %v4339, 127
        %v4356 = vpop.permute.xlu0 %4355
        %4357 = vrot.lane.b32.xlu0 %v4340, 127
        %v4358 = vpop.permute.xlu0 %4357
        %4359 = vrot.lane.b32.xlu0 %v4341, 127
        %v4360 = vpop.permute.xlu0 %4359
        %4361 = vrot.lane.b32.xlu0 %v4342, 127
        %v4362 = vpop.permute.xlu0 %4361
        %4363 = vrot.lane.b32.xlu0 %v4343, 127
        %v4364 = vpop.permute.xlu0 %4363
        %4365 = vrot.lane.b32.xlu0 %v4344, 127
        %v4366 = vpop.permute.xlu0 %4365
        %4367 = vrot.lane.b32.xlu0 %v4345, 127
        %v4368 = vpop.permute.xlu0 %4367
        %4369 = vrot.lane.b32.xlu0 %v4346, 127
        %v4370 = vpop.permute.xlu0 %4369
        %v4379 = vadd.f32 %v4243, %v4356
        %v4380 = vadd.f32 %v4244, %v4358
        %v4381 = vadd.f32 %v4245, %v4360
        %v4382 = vadd.f32 %v4246, %v4362
        %v4383 = vadd.f32 %v4247, %v4364
        %v4384 = vadd.f32 %v4248, %v4366
        %v4385 = vadd.f32 %v4249, %v4368
        %v4386 = vadd.f32 %v4250, %v4370
        %s4387 = sld [smem:[#allocation2 + $0x78]]
        %v4388 = vstv %s4387
        %v4389 = vmul.f32 %v4388, %v3967
        %v4390 = vmul.f32 %v4388, %v3968
        %v4391 = vmul.f32 %v4388, %v3969
        %v4392 = vmul.f32 %v4388, %v3970
        %v4393 = vmul.f32 %v4388, %v3971
        %v4394 = vmul.f32 %v4388, %v3972
        %v4395 = vmul.f32 %v4388, %v3973
        %v4396 = vmul.f32 %v4388, %v3974
        %4405 = vrot.lane.b32.xlu0 %v4389, 127
        %v4406 = vpop.permute.xlu0 %4405
        %4407 = vrot.lane.b32.xlu0 %v4390, 127
        %v4408 = vpop.permute.xlu0 %4407
        %4409 = vrot.lane.b32.xlu0 %v4391, 127
        %v4410 = vpop.permute.xlu0 %4409
        %4411 = vrot.lane.b32.xlu0 %v4392, 127
        %v4412 = vpop.permute.xlu0 %4411
        %4413 = vrot.lane.b32.xlu0 %v4393, 127
        %v4414 = vpop.permute.xlu0 %4413
        %4415 = vrot.lane.b32.xlu0 %v4394, 127
        %v4416 = vpop.permute.xlu0 %4415
        %4417 = vrot.lane.b32.xlu0 %v4395, 127
        %v4418 = vpop.permute.xlu0 %4417
        %4419 = vrot.lane.b32.xlu0 %v4396, 127
        %v4420 = vpop.permute.xlu0 %4419
        %v4429 = vadd.f32 %v4261, %v4406
        %v4430 = vadd.f32 %v4262, %v4408
        %v4431 = vadd.f32 %v4263, %v4410
        %v4432 = vadd.f32 %v4264, %v4412
        %v4433 = vadd.f32 %v4265, %v4414
        %v4434 = vadd.f32 %v4266, %v4416
        %v4435 = vadd.f32 %v4267, %v4418
        %v4436 = vadd.f32 %v4268, %v4420
        %s4437 = sld [smem:[#allocation2 + $0x7c]]
        %v4438 = vstv %s4437
        %v4439 = vmul.f32 %v4438, %v3967
        %v4440 = vmul.f32 %v4438, %v3968
        %v4441 = vmul.f32 %v4438, %v3969
        %v4442 = vmul.f32 %v4438, %v3970
        %v4443 = vmul.f32 %v4438, %v3971
        %v4444 = vmul.f32 %v4438, %v3972
        %v4445 = vmul.f32 %v4438, %v3973
        %v4446 = vmul.f32 %v4438, %v3974
        %4455 = vrot.lane.b32.xlu0 %v4439, 127
        %v4456 = vpop.permute.xlu0 %4455
        %4457 = vrot.lane.b32.xlu0 %v4440, 127
        %v4458 = vpop.permute.xlu0 %4457
        %4459 = vrot.lane.b32.xlu0 %v4441, 127
        %v4460 = vpop.permute.xlu0 %4459
        %4461 = vrot.lane.b32.xlu0 %v4442, 127
        %v4462 = vpop.permute.xlu0 %4461
        %4463 = vrot.lane.b32.xlu0 %v4443, 127
        %v4464 = vpop.permute.xlu0 %4463
        %4465 = vrot.lane.b32.xlu0 %v4444, 127
        %v4466 = vpop.permute.xlu0 %4465
        %4467 = vrot.lane.b32.xlu0 %v4445, 127
        %v4468 = vpop.permute.xlu0 %4467
        %4469 = vrot.lane.b32.xlu0 %v4446, 127
        %v4470 = vpop.permute.xlu0 %4469
        %v4479 = vadd.f32 %v4279, %v4456
        %v4480 = vadd.f32 %v4280, %v4458
        %v4481 = vadd.f32 %v4281, %v4460
        %v4482 = vadd.f32 %v4282, %v4462
        %v4483 = vadd.f32 %v4283, %v4464
        %v4484 = vadd.f32 %v4284, %v4466
        %v4485 = vadd.f32 %v4285, %v4468
        %v4486 = vadd.f32 %v4286, %v4470
        %s4487 = sld [smem:[#allocation2 + $0x71]]
        %v4488 = vstv %s4487
        %v4489 = vmul.f32 %v4488, %v4047
        %v4490 = vmul.f32 %v4488, %v4048
        %v4491 = vmul.f32 %v4488, %v4049
        %v4492 = vmul.f32 %v4488, %v4050
        %v4493 = vmul.f32 %v4488, %v4051
        %v4494 = vmul.f32 %v4488, %v4052
        %v4495 = vmul.f32 %v4488, %v4053
        %v4496 = vmul.f32 %v4488, %v4054
        %4505 = vrot.lane.b32.xlu0 %v4489, 127
        %v4506 = vpop.permute.xlu0 %4505
        %4507 = vrot.lane.b32.xlu0 %v4490, 127
        %v4508 = vpop.permute.xlu0 %4507
        %4509 = vrot.lane.b32.xlu0 %v4491, 127
        %v4510 = vpop.permute.xlu0 %4509
        %4511 = vrot.lane.b32.xlu0 %v4492, 127
        %v4512 = vpop.permute.xlu0 %4511
        %4513 = vrot.lane.b32.xlu0 %v4493, 127
        %v4514 = vpop.permute.xlu0 %4513
        %4515 = vrot.lane.b32.xlu0 %v4494, 127
        %v4516 = vpop.permute.xlu0 %4515
        %4517 = vrot.lane.b32.xlu0 %v4495, 127
        %v4518 = vpop.permute.xlu0 %4517
        %4519 = vrot.lane.b32.xlu0 %v4496, 127
        %v4520 = vpop.permute.xlu0 %4519
        %v4529 = vadd.f32 %v4329, %v4506
        %v4530 = vadd.f32 %v4330, %v4508
        %v4531 = vadd.f32 %v4331, %v4510
        %v4532 = vadd.f32 %v4332, %v4512
        %v4533 = vadd.f32 %v4333, %v4514
        %v4534 = vadd.f32 %v4334, %v4516
        %v4535 = vadd.f32 %v4335, %v4518
        %v4536 = vadd.f32 %v4336, %v4520
        %s4537 = sld [smem:[#allocation2 + $0x75]]
        %v4538 = vstv %s4537
        %v4539 = vmul.f32 %v4538, %v4047
        %v4540 = vmul.f32 %v4538, %v4048
        %v4541 = vmul.f32 %v4538, %v4049
        %v4542 = vmul.f32 %v4538, %v4050
        %v4543 = vmul.f32 %v4538, %v4051
        %v4544 = vmul.f32 %v4538, %v4052
        %v4545 = vmul.f32 %v4538, %v4053
        %v4546 = vmul.f32 %v4538, %v4054
        %4555 = vrot.lane.b32.xlu0 %v4539, 127
        %v4556 = vpop.permute.xlu0 %4555
        %4557 = vrot.lane.b32.xlu0 %v4540, 127
        %v4558 = vpop.permute.xlu0 %4557
        %4559 = vrot.lane.b32.xlu0 %v4541, 127
        %v4560 = vpop.permute.xlu0 %4559
        %4561 = vrot.lane.b32.xlu0 %v4542, 127
        %v4562 = vpop.permute.xlu0 %4561
        %4563 = vrot.lane.b32.xlu0 %v4543, 127
        %v4564 = vpop.permute.xlu0 %4563
        %4565 = vrot.lane.b32.xlu0 %v4544, 127
        %v4566 = vpop.permute.xlu0 %4565
        %4567 = vrot.lane.b32.xlu0 %v4545, 127
        %v4568 = vpop.permute.xlu0 %4567
        %4569 = vrot.lane.b32.xlu0 %v4546, 127
        %v4570 = vpop.permute.xlu0 %4569
        %v4579 = vadd.f32 %v4379, %v4556
        %v4580 = vadd.f32 %v4380, %v4558
        %v4581 = vadd.f32 %v4381, %v4560
        %v4582 = vadd.f32 %v4382, %v4562
        %v4583 = vadd.f32 %v4383, %v4564
        %v4584 = vadd.f32 %v4384, %v4566
        %v4585 = vadd.f32 %v4385, %v4568
        %v4586 = vadd.f32 %v4386, %v4570
        %s4587 = sld [smem:[#allocation2 + $0x79]]
        %v4588 = vstv %s4587
        %v4589 = vmul.f32 %v4588, %v4047
        %v4590 = vmul.f32 %v4588, %v4048
        %v4591 = vmul.f32 %v4588, %v4049
        %v4592 = vmul.f32 %v4588, %v4050
        %v4593 = vmul.f32 %v4588, %v4051
        %v4594 = vmul.f32 %v4588, %v4052
        %v4595 = vmul.f32 %v4588, %v4053
        %v4596 = vmul.f32 %v4588, %v4054
        %4605 = vrot.lane.b32.xlu0 %v4589, 127
        %v4606 = vpop.permute.xlu0 %4605
        %4607 = vrot.lane.b32.xlu0 %v4590, 127
        %v4608 = vpop.permute.xlu0 %4607
        %4609 = vrot.lane.b32.xlu0 %v4591, 127
        %v4610 = vpop.permute.xlu0 %4609
        %4611 = vrot.lane.b32.xlu0 %v4592, 127
        %v4612 = vpop.permute.xlu0 %4611
        %4613 = vrot.lane.b32.xlu0 %v4593, 127
        %v4614 = vpop.permute.xlu0 %4613
        %4615 = vrot.lane.b32.xlu0 %v4594, 127
        %v4616 = vpop.permute.xlu0 %4615
        %4617 = vrot.lane.b32.xlu0 %v4595, 127
        %v4618 = vpop.permute.xlu0 %4617
        %4619 = vrot.lane.b32.xlu0 %v4596, 127
        %v4620 = vpop.permute.xlu0 %4619
        %v4629 = vadd.f32 %v4429, %v4606
        %v4630 = vadd.f32 %v4430, %v4608
        %v4631 = vadd.f32 %v4431, %v4610
        %v4632 = vadd.f32 %v4432, %v4612
        %v4633 = vadd.f32 %v4433, %v4614
        %v4634 = vadd.f32 %v4434, %v4616
        %v4635 = vadd.f32 %v4435, %v4618
        %v4636 = vadd.f32 %v4436, %v4620
        %s4637 = sld [smem:[#allocation2 + $0x7d]]
        %v4638 = vstv %s4637
        %v4639 = vmul.f32 %v4638, %v4047
        %v4640 = vmul.f32 %v4638, %v4048
        %v4641 = vmul.f32 %v4638, %v4049
        %v4642 = vmul.f32 %v4638, %v4050
        %v4643 = vmul.f32 %v4638, %v4051
        %v4644 = vmul.f32 %v4638, %v4052
        %v4645 = vmul.f32 %v4638, %v4053
        %v4646 = vmul.f32 %v4638, %v4054
        %4655 = vrot.lane.b32.xlu0 %v4639, 127
        %v4656 = vpop.permute.xlu0 %4655
        %4657 = vrot.lane.b32.xlu0 %v4640, 127
        %v4658 = vpop.permute.xlu0 %4657
        %4659 = vrot.lane.b32.xlu0 %v4641, 127
        %v4660 = vpop.permute.xlu0 %4659
        %4661 = vrot.lane.b32.xlu0 %v4642, 127
        %v4662 = vpop.permute.xlu0 %4661
        %4663 = vrot.lane.b32.xlu0 %v4643, 127
        %v4664 = vpop.permute.xlu0 %4663
        %4665 = vrot.lane.b32.xlu0 %v4644, 127
        %v4666 = vpop.permute.xlu0 %4665
        %4667 = vrot.lane.b32.xlu0 %v4645, 127
        %v4668 = vpop.permute.xlu0 %4667
        %4669 = vrot.lane.b32.xlu0 %v4646, 127
        %v4670 = vpop.permute.xlu0 %4669
        %v4679 = vadd.f32 %v4479, %v4656
        %v4680 = vadd.f32 %v4480, %v4658
        %v4681 = vadd.f32 %v4481, %v4660
        %v4682 = vadd.f32 %v4482, %v4662
        %v4683 = vadd.f32 %v4483, %v4664
        %v4684 = vadd.f32 %v4484, %v4666
        %v4685 = vadd.f32 %v4485, %v4668
        %v4686 = vadd.f32 %v4486, %v4670
        %s4687 = sld [smem:[#allocation2 + $0x72]]
        %v4688 = vstv %s4687
        %v4689 = vmul.f32 %v4688, %v4127
        %v4690 = vmul.f32 %v4688, %v4128
        %v4691 = vmul.f32 %v4688, %v4129
        %v4692 = vmul.f32 %v4688, %v4130
        %v4693 = vmul.f32 %v4688, %v4131
        %v4694 = vmul.f32 %v4688, %v4132
        %v4695 = vmul.f32 %v4688, %v4133
        %v4696 = vmul.f32 %v4688, %v4134
        %4705 = vrot.lane.b32.xlu0 %v4689, 127
        %v4706 = vpop.permute.xlu0 %4705
        %4707 = vrot.lane.b32.xlu0 %v4690, 127
        %v4708 = vpop.permute.xlu0 %4707
        %4709 = vrot.lane.b32.xlu0 %v4691, 127
        %v4710 = vpop.permute.xlu0 %4709
        %4711 = vrot.lane.b32.xlu0 %v4692, 127
        %v4712 = vpop.permute.xlu0 %4711
        %4713 = vrot.lane.b32.xlu0 %v4693, 127
        %v4714 = vpop.permute.xlu0 %4713
        %4715 = vrot.lane.b32.xlu0 %v4694, 127
        %v4716 = vpop.permute.xlu0 %4715
        %4717 = vrot.lane.b32.xlu0 %v4695, 127
        %v4718 = vpop.permute.xlu0 %4717
        %4719 = vrot.lane.b32.xlu0 %v4696, 127
        %v4720 = vpop.permute.xlu0 %4719
        %v4729 = vadd.f32 %v4529, %v4706
        %v4730 = vadd.f32 %v4530, %v4708
        %v4731 = vadd.f32 %v4531, %v4710
        %v4732 = vadd.f32 %v4532, %v4712
        %v4733 = vadd.f32 %v4533, %v4714
        %v4734 = vadd.f32 %v4534, %v4716
        %v4735 = vadd.f32 %v4535, %v4718
        %v4736 = vadd.f32 %v4536, %v4720
        %s4737 = sld [smem:[#allocation2 + $0x76]]
        %v4738 = vstv %s4737
        %v4739 = vmul.f32 %v4738, %v4127
        %v4740 = vmul.f32 %v4738, %v4128
        %v4741 = vmul.f32 %v4738, %v4129
        %v4742 = vmul.f32 %v4738, %v4130
        %v4743 = vmul.f32 %v4738, %v4131
        %v4744 = vmul.f32 %v4738, %v4132
        %v4745 = vmul.f32 %v4738, %v4133
        %v4746 = vmul.f32 %v4738, %v4134
        %4755 = vrot.lane.b32.xlu0 %v4739, 127
        %v4756 = vpop.permute.xlu0 %4755
        %4757 = vrot.lane.b32.xlu0 %v4740, 127
        %v4758 = vpop.permute.xlu0 %4757
        %4759 = vrot.lane.b32.xlu0 %v4741, 127
        %v4760 = vpop.permute.xlu0 %4759
        %4761 = vrot.lane.b32.xlu0 %v4742, 127
        %v4762 = vpop.permute.xlu0 %4761
        %4763 = vrot.lane.b32.xlu0 %v4743, 127
        %v4764 = vpop.permute.xlu0 %4763
        %4765 = vrot.lane.b32.xlu0 %v4744, 127
        %v4766 = vpop.permute.xlu0 %4765
        %4767 = vrot.lane.b32.xlu0 %v4745, 127
        %v4768 = vpop.permute.xlu0 %4767
        %4769 = vrot.lane.b32.xlu0 %v4746, 127
        %v4770 = vpop.permute.xlu0 %4769
        %v4779 = vadd.f32 %v4579, %v4756
        %v4780 = vadd.f32 %v4580, %v4758
        %v4781 = vadd.f32 %v4581, %v4760
        %v4782 = vadd.f32 %v4582, %v4762
        %v4783 = vadd.f32 %v4583, %v4764
        %v4784 = vadd.f32 %v4584, %v4766
        %v4785 = vadd.f32 %v4585, %v4768
        %v4786 = vadd.f32 %v4586, %v4770
        %s4787 = sld [smem:[#allocation2 + $0x7a]]
        %v4788 = vstv %s4787
        %v4789 = vmul.f32 %v4788, %v4127
        %v4790 = vmul.f32 %v4788, %v4128
        %v4791 = vmul.f32 %v4788, %v4129
        %v4792 = vmul.f32 %v4788, %v4130
        %v4793 = vmul.f32 %v4788, %v4131
        %v4794 = vmul.f32 %v4788, %v4132
        %v4795 = vmul.f32 %v4788, %v4133
        %v4796 = vmul.f32 %v4788, %v4134
        %4805 = vrot.lane.b32.xlu0 %v4789, 127
        %v4806 = vpop.permute.xlu0 %4805
        %4807 = vrot.lane.b32.xlu0 %v4790, 127
        %v4808 = vpop.permute.xlu0 %4807
        %4809 = vrot.lane.b32.xlu0 %v4791, 127
        %v4810 = vpop.permute.xlu0 %4809
        %4811 = vrot.lane.b32.xlu0 %v4792, 127
        %v4812 = vpop.permute.xlu0 %4811
        %4813 = vrot.lane.b32.xlu0 %v4793, 127
        %v4814 = vpop.permute.xlu0 %4813
        %4815 = vrot.lane.b32.xlu0 %v4794, 127
        %v4816 = vpop.permute.xlu0 %4815
        %4817 = vrot.lane.b32.xlu0 %v4795, 127
        %v4818 = vpop.permute.xlu0 %4817
        %4819 = vrot.lane.b32.xlu0 %v4796, 127
        %v4820 = vpop.permute.xlu0 %4819
        %v4829 = vadd.f32 %v4629, %v4806
        %v4830 = vadd.f32 %v4630, %v4808
        %v4831 = vadd.f32 %v4631, %v4810
        %v4832 = vadd.f32 %v4632, %v4812
        %v4833 = vadd.f32 %v4633, %v4814
        %v4834 = vadd.f32 %v4634, %v4816
        %v4835 = vadd.f32 %v4635, %v4818
        %v4836 = vadd.f32 %v4636, %v4820
        %s4837 = sld [smem:[#allocation2 + $0x7e]]
        %v4838 = vstv %s4837
        %v4839 = vmul.f32 %v4838, %v4127
        %v4840 = vmul.f32 %v4838, %v4128
        %v4841 = vmul.f32 %v4838, %v4129
        %v4842 = vmul.f32 %v4838, %v4130
        %v4843 = vmul.f32 %v4838, %v4131
        %v4844 = vmul.f32 %v4838, %v4132
        %v4845 = vmul.f32 %v4838, %v4133
        %v4846 = vmul.f32 %v4838, %v4134
        %4855 = vrot.lane.b32.xlu0 %v4839, 127
        %v4856 = vpop.permute.xlu0 %4855
        %4857 = vrot.lane.b32.xlu0 %v4840, 127
        %v4858 = vpop.permute.xlu0 %4857
        %4859 = vrot.lane.b32.xlu0 %v4841, 127
        %v4860 = vpop.permute.xlu0 %4859
        %4861 = vrot.lane.b32.xlu0 %v4842, 127
        %v4862 = vpop.permute.xlu0 %4861
        %4863 = vrot.lane.b32.xlu0 %v4843, 127
        %v4864 = vpop.permute.xlu0 %4863
        %4865 = vrot.lane.b32.xlu0 %v4844, 127
        %v4866 = vpop.permute.xlu0 %4865
        %4867 = vrot.lane.b32.xlu0 %v4845, 127
        %v4868 = vpop.permute.xlu0 %4867
        %4869 = vrot.lane.b32.xlu0 %v4846, 127
        %v4870 = vpop.permute.xlu0 %4869
        %v4879 = vadd.f32 %v4679, %v4856
        %v4880 = vadd.f32 %v4680, %v4858
        %v4881 = vadd.f32 %v4681, %v4860
        %v4882 = vadd.f32 %v4682, %v4862
        %v4883 = vadd.f32 %v4683, %v4864
        %v4884 = vadd.f32 %v4684, %v4866
        %v4885 = vadd.f32 %v4685, %v4868
        %v4886 = vadd.f32 %v4686, %v4870
        %s4887 = sld [smem:[#allocation2 + $0x73]]
        %v4888 = vstv %s4887
        %v4889 = vmul.f32 %v4888, %v4207
        %v4890 = vmul.f32 %v4888, %v4208
        %v4891 = vmul.f32 %v4888, %v4209
        %v4892 = vmul.f32 %v4888, %v4210
        %v4893 = vmul.f32 %v4888, %v4211
        %v4894 = vmul.f32 %v4888, %v4212
        %v4895 = vmul.f32 %v4888, %v4213
        %v4896 = vmul.f32 %v4888, %v4214
        %4905 = vrot.lane.b32.xlu0 %v4889, 127
        %v4906 = vpop.permute.xlu0 %4905
        %4907 = vrot.lane.b32.xlu0 %v4890, 127
        %v4908 = vpop.permute.xlu0 %4907
        %4909 = vrot.lane.b32.xlu0 %v4891, 127
        %v4910 = vpop.permute.xlu0 %4909
        %4911 = vrot.lane.b32.xlu0 %v4892, 127
        %v4912 = vpop.permute.xlu0 %4911
        %4913 = vrot.lane.b32.xlu0 %v4893, 127
        %v4914 = vpop.permute.xlu0 %4913
        %4915 = vrot.lane.b32.xlu0 %v4894, 127
        %v4916 = vpop.permute.xlu0 %4915
        %4917 = vrot.lane.b32.xlu0 %v4895, 127
        %v4918 = vpop.permute.xlu0 %4917
        %4919 = vrot.lane.b32.xlu0 %v4896, 127
        %v4920 = vpop.permute.xlu0 %4919
        %v4929 = vadd.f32 %v4729, %v4906
        %v4930 = vadd.f32 %v4730, %v4908
        %v4931 = vadd.f32 %v4731, %v4910
        %v4932 = vadd.f32 %v4732, %v4912
        %v4933 = vadd.f32 %v4733, %v4914
        %v4934 = vadd.f32 %v4734, %v4916
        %v4935 = vadd.f32 %v4735, %v4918
        %v4936 = vadd.f32 %v4736, %v4920
        %s4937 = sld [smem:[#allocation2 + $0x77]]
        %v4938 = vstv %s4937
        %v4939 = vmul.f32 %v4938, %v4207
        %v4940 = vmul.f32 %v4938, %v4208
        %v4941 = vmul.f32 %v4938, %v4209
        %v4942 = vmul.f32 %v4938, %v4210
        %v4943 = vmul.f32 %v4938, %v4211
        %v4944 = vmul.f32 %v4938, %v4212
        %v4945 = vmul.f32 %v4938, %v4213
        %v4946 = vmul.f32 %v4938, %v4214
        %4955 = vrot.lane.b32.xlu0 %v4939, 127
        %v4956 = vpop.permute.xlu0 %4955
        %4957 = vrot.lane.b32.xlu0 %v4940, 127
        %v4958 = vpop.permute.xlu0 %4957
        %4959 = vrot.lane.b32.xlu0 %v4941, 127
        %v4960 = vpop.permute.xlu0 %4959
        %4961 = vrot.lane.b32.xlu0 %v4942, 127
        %v4962 = vpop.permute.xlu0 %4961
        %4963 = vrot.lane.b32.xlu0 %v4943, 127
        %v4964 = vpop.permute.xlu0 %4963
        %4965 = vrot.lane.b32.xlu0 %v4944, 127
        %v4966 = vpop.permute.xlu0 %4965
        %4967 = vrot.lane.b32.xlu0 %v4945, 127
        %v4968 = vpop.permute.xlu0 %4967
        %4969 = vrot.lane.b32.xlu0 %v4946, 127
        %v4970 = vpop.permute.xlu0 %4969
        %v4979 = vadd.f32 %v4779, %v4956
        %v4980 = vadd.f32 %v4780, %v4958
        %v4981 = vadd.f32 %v4781, %v4960
        %v4982 = vadd.f32 %v4782, %v4962
        %v4983 = vadd.f32 %v4783, %v4964
        %v4984 = vadd.f32 %v4784, %v4966
        %v4985 = vadd.f32 %v4785, %v4968
        %v4986 = vadd.f32 %v4786, %v4970
        %s4987 = sld [smem:[#allocation2 + $0x7b]]
        %v4988 = vstv %s4987
        %v4989 = vmul.f32 %v4988, %v4207
        %v4990 = vmul.f32 %v4988, %v4208
        %v4991 = vmul.f32 %v4988, %v4209
        %v4992 = vmul.f32 %v4988, %v4210
        %v4993 = vmul.f32 %v4988, %v4211
        %v4994 = vmul.f32 %v4988, %v4212
        %v4995 = vmul.f32 %v4988, %v4213
        %v4996 = vmul.f32 %v4988, %v4214
        %5005 = vrot.lane.b32.xlu0 %v4989, 127
        %v5006 = vpop.permute.xlu0 %5005
        %5007 = vrot.lane.b32.xlu0 %v4990, 127
        %v5008 = vpop.permute.xlu0 %5007
        %5009 = vrot.lane.b32.xlu0 %v4991, 127
        %v5010 = vpop.permute.xlu0 %5009
        %5011 = vrot.lane.b32.xlu0 %v4992, 127
        %v5012 = vpop.permute.xlu0 %5011
        %5013 = vrot.lane.b32.xlu0 %v4993, 127
        %v5014 = vpop.permute.xlu0 %5013
        %5015 = vrot.lane.b32.xlu0 %v4994, 127
        %v5016 = vpop.permute.xlu0 %5015
        %5017 = vrot.lane.b32.xlu0 %v4995, 127
        %v5018 = vpop.permute.xlu0 %5017
        %5019 = vrot.lane.b32.xlu0 %v4996, 127
        %v5020 = vpop.permute.xlu0 %5019
        %v5029 = vadd.f32 %v4829, %v5006
        %v5030 = vadd.f32 %v4830, %v5008
        %v5031 = vadd.f32 %v4831, %v5010
        %v5032 = vadd.f32 %v4832, %v5012
        %v5033 = vadd.f32 %v4833, %v5014
        %v5034 = vadd.f32 %v4834, %v5016
        %v5035 = vadd.f32 %v4835, %v5018
        %v5036 = vadd.f32 %v4836, %v5020
        %s5037 = sld [smem:[#allocation2 + $0x7f]]
        %v5038 = vstv %s5037
        %v5039 = vmul.f32 %v5038, %v4207
        %v5040 = vmul.f32 %v5038, %v4208
        %v5041 = vmul.f32 %v5038, %v4209
        %v5042 = vmul.f32 %v5038, %v4210
        %v5043 = vmul.f32 %v5038, %v4211
        %v5044 = vmul.f32 %v5038, %v4212
        %v5045 = vmul.f32 %v5038, %v4213
        %v5046 = vmul.f32 %v5038, %v4214
        %5055 = vrot.lane.b32.xlu0 %v5039, 127
        %v5056 = vpop.permute.xlu0 %5055
        %5057 = vrot.lane.b32.xlu0 %v5040, 127
        %v5058 = vpop.permute.xlu0 %5057
        %5059 = vrot.lane.b32.xlu0 %v5041, 127
        %v5060 = vpop.permute.xlu0 %5059
        %5061 = vrot.lane.b32.xlu0 %v5042, 127
        %v5062 = vpop.permute.xlu0 %5061
        %5063 = vrot.lane.b32.xlu0 %v5043, 127
        %v5064 = vpop.permute.xlu0 %5063
        %5065 = vrot.lane.b32.xlu0 %v5044, 127
        %v5066 = vpop.permute.xlu0 %5065
        %5067 = vrot.lane.b32.xlu0 %v5045, 127
        %v5068 = vpop.permute.xlu0 %5067
        %5069 = vrot.lane.b32.xlu0 %v5046, 127
        %v5070 = vpop.permute.xlu0 %5069
        %v5079 = vadd.f32 %v4879, %v5056
        %v5080 = vadd.f32 %v4880, %v5058
        %v5081 = vadd.f32 %v4881, %v5060
        %v5082 = vadd.f32 %v4882, %v5062
        %v5083 = vadd.f32 %v4883, %v5064
        %v5084 = vadd.f32 %v4884, %v5066
        %v5085 = vadd.f32 %v4885, %v5068
        %v5086 = vadd.f32 %v4886, %v5070
        %s5087 = sld [smem:[#allocation2 + $0x80]]
        %v5088 = vstv %s5087
        %v5089 = vmul.f32 %v5088, %v3967
        %v5090 = vmul.f32 %v5088, %v3968
        %v5091 = vmul.f32 %v5088, %v3969
        %v5092 = vmul.f32 %v5088, %v3970
        %v5093 = vmul.f32 %v5088, %v3971
        %v5094 = vmul.f32 %v5088, %v3972
        %v5095 = vmul.f32 %v5088, %v3973
        %v5096 = vmul.f32 %v5088, %v3974
        %5105 = vrot.lane.b32.xlu0 %v5089, 126
        %v5106 = vpop.permute.xlu0 %5105
        %5107 = vrot.lane.b32.xlu0 %v5090, 126
        %v5108 = vpop.permute.xlu0 %5107
        %5109 = vrot.lane.b32.xlu0 %v5091, 126
        %v5110 = vpop.permute.xlu0 %5109
        %5111 = vrot.lane.b32.xlu0 %v5092, 126
        %v5112 = vpop.permute.xlu0 %5111
        %5113 = vrot.lane.b32.xlu0 %v5093, 126
        %v5114 = vpop.permute.xlu0 %5113
        %5115 = vrot.lane.b32.xlu0 %v5094, 126
        %v5116 = vpop.permute.xlu0 %5115
        %5117 = vrot.lane.b32.xlu0 %v5095, 126
        %v5118 = vpop.permute.xlu0 %5117
        %5119 = vrot.lane.b32.xlu0 %v5096, 126
        %v5120 = vpop.permute.xlu0 %5119
        %v5129 = vadd.f32 %v4929, %v5106
        %v5130 = vadd.f32 %v4930, %v5108
        %v5131 = vadd.f32 %v4931, %v5110
        %v5132 = vadd.f32 %v4932, %v5112
        %v5133 = vadd.f32 %v4933, %v5114
        %v5134 = vadd.f32 %v4934, %v5116
        %v5135 = vadd.f32 %v4935, %v5118
        %v5136 = vadd.f32 %v4936, %v5120
        %s5137 = sld [smem:[#allocation2 + $0x84]]
        %v5138 = vstv %s5137
        %v5139 = vmul.f32 %v5138, %v3967
        %v5140 = vmul.f32 %v5138, %v3968
        %v5141 = vmul.f32 %v5138, %v3969
        %v5142 = vmul.f32 %v5138, %v3970
        %v5143 = vmul.f32 %v5138, %v3971
        %v5144 = vmul.f32 %v5138, %v3972
        %v5145 = vmul.f32 %v5138, %v3973
        %v5146 = vmul.f32 %v5138, %v3974
        %5155 = vrot.lane.b32.xlu0 %v5139, 126
        %v5156 = vpop.permute.xlu0 %5155
        %5157 = vrot.lane.b32.xlu0 %v5140, 126
        %v5158 = vpop.permute.xlu0 %5157
        %5159 = vrot.lane.b32.xlu0 %v5141, 126
        %v5160 = vpop.permute.xlu0 %5159
        %5161 = vrot.lane.b32.xlu0 %v5142, 126
        %v5162 = vpop.permute.xlu0 %5161
        %5163 = vrot.lane.b32.xlu0 %v5143, 126
        %v5164 = vpop.permute.xlu0 %5163
        %5165 = vrot.lane.b32.xlu0 %v5144, 126
        %v5166 = vpop.permute.xlu0 %5165
        %5167 = vrot.lane.b32.xlu0 %v5145, 126
        %v5168 = vpop.permute.xlu0 %5167
        %5169 = vrot.lane.b32.xlu0 %v5146, 126
        %v5170 = vpop.permute.xlu0 %5169
        %v5179 = vadd.f32 %v4979, %v5156
        %v5180 = vadd.f32 %v4980, %v5158
        %v5181 = vadd.f32 %v4981, %v5160
        %v5182 = vadd.f32 %v4982, %v5162
        %v5183 = vadd.f32 %v4983, %v5164
        %v5184 = vadd.f32 %v4984, %v5166
        %v5185 = vadd.f32 %v4985, %v5168
        %v5186 = vadd.f32 %v4986, %v5170
        %s5187 = sld [smem:[#allocation2 + $0x88]]
        %v5188 = vstv %s5187
        %v5189 = vmul.f32 %v5188, %v3967
        %v5190 = vmul.f32 %v5188, %v3968
        %v5191 = vmul.f32 %v5188, %v3969
        %v5192 = vmul.f32 %v5188, %v3970
        %v5193 = vmul.f32 %v5188, %v3971
        %v5194 = vmul.f32 %v5188, %v3972
        %v5195 = vmul.f32 %v5188, %v3973
        %v5196 = vmul.f32 %v5188, %v3974
        %5205 = vrot.lane.b32.xlu0 %v5189, 126
        %v5206 = vpop.permute.xlu0 %5205
        %5207 = vrot.lane.b32.xlu0 %v5190, 126
        %v5208 = vpop.permute.xlu0 %5207
        %5209 = vrot.lane.b32.xlu0 %v5191, 126
        %v5210 = vpop.permute.xlu0 %5209
        %5211 = vrot.lane.b32.xlu0 %v5192, 126
        %v5212 = vpop.permute.xlu0 %5211
        %5213 = vrot.lane.b32.xlu0 %v5193, 126
        %v5214 = vpop.permute.xlu0 %5213
        %5215 = vrot.lane.b32.xlu0 %v5194, 126
        %v5216 = vpop.permute.xlu0 %5215
        %5217 = vrot.lane.b32.xlu0 %v5195, 126
        %v5218 = vpop.permute.xlu0 %5217
        %5219 = vrot.lane.b32.xlu0 %v5196, 126
        %v5220 = vpop.permute.xlu0 %5219
        %v5229 = vadd.f32 %v5029, %v5206
        %v5230 = vadd.f32 %v5030, %v5208
        %v5231 = vadd.f32 %v5031, %v5210
        %v5232 = vadd.f32 %v5032, %v5212
        %v5233 = vadd.f32 %v5033, %v5214
        %v5234 = vadd.f32 %v5034, %v5216
        %v5235 = vadd.f32 %v5035, %v5218
        %v5236 = vadd.f32 %v5036, %v5220
        %s5237 = sld [smem:[#allocation2 + $0x8c]]
        %v5238 = vstv %s5237
        %v5239 = vmul.f32 %v5238, %v3967
        %v5240 = vmul.f32 %v5238, %v3968
        %v5241 = vmul.f32 %v5238, %v3969
        %v5242 = vmul.f32 %v5238, %v3970
        %v5243 = vmul.f32 %v5238, %v3971
        %v5244 = vmul.f32 %v5238, %v3972
        %v5245 = vmul.f32 %v5238, %v3973
        %v5246 = vmul.f32 %v5238, %v3974
        %5255 = vrot.lane.b32.xlu0 %v5239, 126
        %v5256 = vpop.permute.xlu0 %5255
        %5257 = vrot.lane.b32.xlu0 %v5240, 126
        %v5258 = vpop.permute.xlu0 %5257
        %5259 = vrot.lane.b32.xlu0 %v5241, 126
        %v5260 = vpop.permute.xlu0 %5259
        %5261 = vrot.lane.b32.xlu0 %v5242, 126
        %v5262 = vpop.permute.xlu0 %5261
        %5263 = vrot.lane.b32.xlu0 %v5243, 126
        %v5264 = vpop.permute.xlu0 %5263
        %5265 = vrot.lane.b32.xlu0 %v5244, 126
        %v5266 = vpop.permute.xlu0 %5265
        %5267 = vrot.lane.b32.xlu0 %v5245, 126
        %v5268 = vpop.permute.xlu0 %5267
        %5269 = vrot.lane.b32.xlu0 %v5246, 126
        %v5270 = vpop.permute.xlu0 %5269
        %v5279 = vadd.f32 %v5079, %v5256
        %v5280 = vadd.f32 %v5080, %v5258
        %v5281 = vadd.f32 %v5081, %v5260
        %v5282 = vadd.f32 %v5082, %v5262
        %v5283 = vadd.f32 %v5083, %v5264
        %v5284 = vadd.f32 %v5084, %v5266
        %v5285 = vadd.f32 %v5085, %v5268
        %v5286 = vadd.f32 %v5086, %v5270
        %s5287 = sld [smem:[#allocation2 + $0x81]]
        %v5288 = vstv %s5287
        %v5289 = vmul.f32 %v5288, %v4047
        %v5290 = vmul.f32 %v5288, %v4048
        %v5291 = vmul.f32 %v5288, %v4049
        %v5292 = vmul.f32 %v5288, %v4050
        %v5293 = vmul.f32 %v5288, %v4051
        %v5294 = vmul.f32 %v5288, %v4052
        %v5295 = vmul.f32 %v5288, %v4053
        %v5296 = vmul.f32 %v5288, %v4054
        %5305 = vrot.lane.b32.xlu0 %v5289, 126
        %v5306 = vpop.permute.xlu0 %5305
        %5307 = vrot.lane.b32.xlu0 %v5290, 126
        %v5308 = vpop.permute.xlu0 %5307
        %5309 = vrot.lane.b32.xlu0 %v5291, 126
        %v5310 = vpop.permute.xlu0 %5309
        %5311 = vrot.lane.b32.xlu0 %v5292, 126
        %v5312 = vpop.permute.xlu0 %5311
        %5313 = vrot.lane.b32.xlu0 %v5293, 126
        %v5314 = vpop.permute.xlu0 %5313
        %5315 = vrot.lane.b32.xlu0 %v5294, 126
        %v5316 = vpop.permute.xlu0 %5315
        %5317 = vrot.lane.b32.xlu0 %v5295, 126
        %v5318 = vpop.permute.xlu0 %5317
        %5319 = vrot.lane.b32.xlu0 %v5296, 126
        %v5320 = vpop.permute.xlu0 %5319
        %v5329 = vadd.f32 %v5129, %v5306
        %v5330 = vadd.f32 %v5130, %v5308
        %v5331 = vadd.f32 %v5131, %v5310
        %v5332 = vadd.f32 %v5132, %v5312
        %v5333 = vadd.f32 %v5133, %v5314
        %v5334 = vadd.f32 %v5134, %v5316
        %v5335 = vadd.f32 %v5135, %v5318
        %v5336 = vadd.f32 %v5136, %v5320
        %s5337 = sld [smem:[#allocation2 + $0x85]]
        %v5338 = vstv %s5337
        %v5339 = vmul.f32 %v5338, %v4047
        %v5340 = vmul.f32 %v5338, %v4048
        %v5341 = vmul.f32 %v5338, %v4049
        %v5342 = vmul.f32 %v5338, %v4050
        %v5343 = vmul.f32 %v5338, %v4051
        %v5344 = vmul.f32 %v5338, %v4052
        %v5345 = vmul.f32 %v5338, %v4053
        %v5346 = vmul.f32 %v5338, %v4054
        %5355 = vrot.lane.b32.xlu0 %v5339, 126
        %v5356 = vpop.permute.xlu0 %5355
        %5357 = vrot.lane.b32.xlu0 %v5340, 126
        %v5358 = vpop.permute.xlu0 %5357
        %5359 = vrot.lane.b32.xlu0 %v5341, 126
        %v5360 = vpop.permute.xlu0 %5359
        %5361 = vrot.lane.b32.xlu0 %v5342, 126
        %v5362 = vpop.permute.xlu0 %5361
        %5363 = vrot.lane.b32.xlu0 %v5343, 126
        %v5364 = vpop.permute.xlu0 %5363
        %5365 = vrot.lane.b32.xlu0 %v5344, 126
        %v5366 = vpop.permute.xlu0 %5365
        %5367 = vrot.lane.b32.xlu0 %v5345, 126
        %v5368 = vpop.permute.xlu0 %5367
        %5369 = vrot.lane.b32.xlu0 %v5346, 126
        %v5370 = vpop.permute.xlu0 %5369
        %v5379 = vadd.f32 %v5179, %v5356
        %v5380 = vadd.f32 %v5180, %v5358
        %v5381 = vadd.f32 %v5181, %v5360
        %v5382 = vadd.f32 %v5182, %v5362
        %v5383 = vadd.f32 %v5183, %v5364
        %v5384 = vadd.f32 %v5184, %v5366
        %v5385 = vadd.f32 %v5185, %v5368
        %v5386 = vadd.f32 %v5186, %v5370
        %s5387 = sld [smem:[#allocation2 + $0x89]]
        %v5388 = vstv %s5387
        %v5389 = vmul.f32 %v5388, %v4047
        %v5390 = vmul.f32 %v5388, %v4048
        %v5391 = vmul.f32 %v5388, %v4049
        %v5392 = vmul.f32 %v5388, %v4050
        %v5393 = vmul.f32 %v5388, %v4051
        %v5394 = vmul.f32 %v5388, %v4052
        %v5395 = vmul.f32 %v5388, %v4053
        %v5396 = vmul.f32 %v5388, %v4054
        %5405 = vrot.lane.b32.xlu0 %v5389, 126
        %v5406 = vpop.permute.xlu0 %5405
        %5407 = vrot.lane.b32.xlu0 %v5390, 126
        %v5408 = vpop.permute.xlu0 %5407
        %5409 = vrot.lane.b32.xlu0 %v5391, 126
        %v5410 = vpop.permute.xlu0 %5409
        %5411 = vrot.lane.b32.xlu0 %v5392, 126
        %v5412 = vpop.permute.xlu0 %5411
        %5413 = vrot.lane.b32.xlu0 %v5393, 126
        %v5414 = vpop.permute.xlu0 %5413
        %5415 = vrot.lane.b32.xlu0 %v5394, 126
        %v5416 = vpop.permute.xlu0 %5415
        %5417 = vrot.lane.b32.xlu0 %v5395, 126
        %v5418 = vpop.permute.xlu0 %5417
        %5419 = vrot.lane.b32.xlu0 %v5396, 126
        %v5420 = vpop.permute.xlu0 %5419
        %v5429 = vadd.f32 %v5229, %v5406
        %v5430 = vadd.f32 %v5230, %v5408
        %v5431 = vadd.f32 %v5231, %v5410
        %v5432 = vadd.f32 %v5232, %v5412
        %v5433 = vadd.f32 %v5233, %v5414
        %v5434 = vadd.f32 %v5234, %v5416
        %v5435 = vadd.f32 %v5235, %v5418
        %v5436 = vadd.f32 %v5236, %v5420
        %s5437 = sld [smem:[#allocation2 + $0x8d]]
        %v5438 = vstv %s5437
        %v5439 = vmul.f32 %v5438, %v4047
        %v5440 = vmul.f32 %v5438, %v4048
        %v5441 = vmul.f32 %v5438, %v4049
        %v5442 = vmul.f32 %v5438, %v4050
        %v5443 = vmul.f32 %v5438, %v4051
        %v5444 = vmul.f32 %v5438, %v4052
        %v5445 = vmul.f32 %v5438, %v4053
        %v5446 = vmul.f32 %v5438, %v4054
        %5455 = vrot.lane.b32.xlu0 %v5439, 126
        %v5456 = vpop.permute.xlu0 %5455
        %5457 = vrot.lane.b32.xlu0 %v5440, 126
        %v5458 = vpop.permute.xlu0 %5457
        %5459 = vrot.lane.b32.xlu0 %v5441, 126
        %v5460 = vpop.permute.xlu0 %5459
        %5461 = vrot.lane.b32.xlu0 %v5442, 126
        %v5462 = vpop.permute.xlu0 %5461
        %5463 = vrot.lane.b32.xlu0 %v5443, 126
        %v5464 = vpop.permute.xlu0 %5463
        %5465 = vrot.lane.b32.xlu0 %v5444, 126
        %v5466 = vpop.permute.xlu0 %5465
        %5467 = vrot.lane.b32.xlu0 %v5445, 126
        %v5468 = vpop.permute.xlu0 %5467
        %5469 = vrot.lane.b32.xlu0 %v5446, 126
        %v5470 = vpop.permute.xlu0 %5469
        %v5479 = vadd.f32 %v5279, %v5456
        %v5480 = vadd.f32 %v5280, %v5458
        %v5481 = vadd.f32 %v5281, %v5460
        %v5482 = vadd.f32 %v5282, %v5462
        %v5483 = vadd.f32 %v5283, %v5464
        %v5484 = vadd.f32 %v5284, %v5466
        %v5485 = vadd.f32 %v5285, %v5468
        %v5486 = vadd.f32 %v5286, %v5470
        %s5487 = sld [smem:[#allocation2 + $0x82]]
        %v5488 = vstv %s5487
        %v5489 = vmul.f32 %v5488, %v4127
        %v5490 = vmul.f32 %v5488, %v4128
        %v5491 = vmul.f32 %v5488, %v4129
        %v5492 = vmul.f32 %v5488, %v4130
        %v5493 = vmul.f32 %v5488, %v4131
        %v5494 = vmul.f32 %v5488, %v4132
        %v5495 = vmul.f32 %v5488, %v4133
        %v5496 = vmul.f32 %v5488, %v4134
        %5505 = vrot.lane.b32.xlu0 %v5489, 126
        %v5506 = vpop.permute.xlu0 %5505
        %5507 = vrot.lane.b32.xlu0 %v5490, 126
        %v5508 = vpop.permute.xlu0 %5507
        %5509 = vrot.lane.b32.xlu0 %v5491, 126
        %v5510 = vpop.permute.xlu0 %5509
        %5511 = vrot.lane.b32.xlu0 %v5492, 126
        %v5512 = vpop.permute.xlu0 %5511
        %5513 = vrot.lane.b32.xlu0 %v5493, 126
        %v5514 = vpop.permute.xlu0 %5513
        %5515 = vrot.lane.b32.xlu0 %v5494, 126
        %v5516 = vpop.permute.xlu0 %5515
        %5517 = vrot.lane.b32.xlu0 %v5495, 126
        %v5518 = vpop.permute.xlu0 %5517
        %5519 = vrot.lane.b32.xlu0 %v5496, 126
        %v5520 = vpop.permute.xlu0 %5519
        %v5529 = vadd.f32 %v5329, %v5506
        %v5530 = vadd.f32 %v5330, %v5508
        %v5531 = vadd.f32 %v5331, %v5510
        %v5532 = vadd.f32 %v5332, %v5512
        %v5533 = vadd.f32 %v5333, %v5514
        %v5534 = vadd.f32 %v5334, %v5516
        %v5535 = vadd.f32 %v5335, %v5518
        %v5536 = vadd.f32 %v5336, %v5520
        %s5537 = sld [smem:[#allocation2 + $0x86]]
        %v5538 = vstv %s5537
        %v5539 = vmul.f32 %v5538, %v4127
        %v5540 = vmul.f32 %v5538, %v4128
        %v5541 = vmul.f32 %v5538, %v4129
        %v5542 = vmul.f32 %v5538, %v4130
        %v5543 = vmul.f32 %v5538, %v4131
        %v5544 = vmul.f32 %v5538, %v4132
        %v5545 = vmul.f32 %v5538, %v4133
        %v5546 = vmul.f32 %v5538, %v4134
        %5555 = vrot.lane.b32.xlu0 %v5539, 126
        %v5556 = vpop.permute.xlu0 %5555
        %5557 = vrot.lane.b32.xlu0 %v5540, 126
        %v5558 = vpop.permute.xlu0 %5557
        %5559 = vrot.lane.b32.xlu0 %v5541, 126
        %v5560 = vpop.permute.xlu0 %5559
        %5561 = vrot.lane.b32.xlu0 %v5542, 126
        %v5562 = vpop.permute.xlu0 %5561
        %5563 = vrot.lane.b32.xlu0 %v5543, 126
        %v5564 = vpop.permute.xlu0 %5563
        %5565 = vrot.lane.b32.xlu0 %v5544, 126
        %v5566 = vpop.permute.xlu0 %5565
        %5567 = vrot.lane.b32.xlu0 %v5545, 126
        %v5568 = vpop.permute.xlu0 %5567
        %5569 = vrot.lane.b32.xlu0 %v5546, 126
        %v5570 = vpop.permute.xlu0 %5569
        %v5579 = vadd.f32 %v5379, %v5556
        %v5580 = vadd.f32 %v5380, %v5558
        %v5581 = vadd.f32 %v5381, %v5560
        %v5582 = vadd.f32 %v5382, %v5562
        %v5583 = vadd.f32 %v5383, %v5564
        %v5584 = vadd.f32 %v5384, %v5566
        %v5585 = vadd.f32 %v5385, %v5568
        %v5586 = vadd.f32 %v5386, %v5570
        %s5587 = sld [smem:[#allocation2 + $0x8a]]
        %v5588 = vstv %s5587
        %v5589 = vmul.f32 %v5588, %v4127
        %v5590 = vmul.f32 %v5588, %v4128
        %v5591 = vmul.f32 %v5588, %v4129
        %v5592 = vmul.f32 %v5588, %v4130
        %v5593 = vmul.f32 %v5588, %v4131
        %v5594 = vmul.f32 %v5588, %v4132
        %v5595 = vmul.f32 %v5588, %v4133
        %v5596 = vmul.f32 %v5588, %v4134
        %5605 = vrot.lane.b32.xlu0 %v5589, 126
        %v5606 = vpop.permute.xlu0 %5605
        %5607 = vrot.lane.b32.xlu0 %v5590, 126
        %v5608 = vpop.permute.xlu0 %5607
        %5609 = vrot.lane.b32.xlu0 %v5591, 126
        %v5610 = vpop.permute.xlu0 %5609
        %5611 = vrot.lane.b32.xlu0 %v5592, 126
        %v5612 = vpop.permute.xlu0 %5611
        %5613 = vrot.lane.b32.xlu0 %v5593, 126
        %v5614 = vpop.permute.xlu0 %5613
        %5615 = vrot.lane.b32.xlu0 %v5594, 126
        %v5616 = vpop.permute.xlu0 %5615
        %5617 = vrot.lane.b32.xlu0 %v5595, 126
        %v5618 = vpop.permute.xlu0 %5617
        %5619 = vrot.lane.b32.xlu0 %v5596, 126
        %v5620 = vpop.permute.xlu0 %5619
        %v5629 = vadd.f32 %v5429, %v5606
        %v5630 = vadd.f32 %v5430, %v5608
        %v5631 = vadd.f32 %v5431, %v5610
        %v5632 = vadd.f32 %v5432, %v5612
        %v5633 = vadd.f32 %v5433, %v5614
        %v5634 = vadd.f32 %v5434, %v5616
        %v5635 = vadd.f32 %v5435, %v5618
        %v5636 = vadd.f32 %v5436, %v5620
        %s5637 = sld [smem:[#allocation2 + $0x8e]]
        %v5638 = vstv %s5637
        %v5639 = vmul.f32 %v5638, %v4127
        %v5640 = vmul.f32 %v5638, %v4128
        %v5641 = vmul.f32 %v5638, %v4129
        %v5642 = vmul.f32 %v5638, %v4130
        %v5643 = vmul.f32 %v5638, %v4131
        %v5644 = vmul.f32 %v5638, %v4132
        %v5645 = vmul.f32 %v5638, %v4133
        %v5646 = vmul.f32 %v5638, %v4134
        %5655 = vrot.lane.b32.xlu0 %v5639, 126
        %v5656 = vpop.permute.xlu0 %5655
        %5657 = vrot.lane.b32.xlu0 %v5640, 126
        %v5658 = vpop.permute.xlu0 %5657
        %5659 = vrot.lane.b32.xlu0 %v5641, 126
        %v5660 = vpop.permute.xlu0 %5659
        %5661 = vrot.lane.b32.xlu0 %v5642, 126
        %v5662 = vpop.permute.xlu0 %5661
        %5663 = vrot.lane.b32.xlu0 %v5643, 126
        %v5664 = vpop.permute.xlu0 %5663
        %5665 = vrot.lane.b32.xlu0 %v5644, 126
        %v5666 = vpop.permute.xlu0 %5665
        %5667 = vrot.lane.b32.xlu0 %v5645, 126
        %v5668 = vpop.permute.xlu0 %5667
        %5669 = vrot.lane.b32.xlu0 %v5646, 126
        %v5670 = vpop.permute.xlu0 %5669
        %v5679 = vadd.f32 %v5479, %v5656
        %v5680 = vadd.f32 %v5480, %v5658
        %v5681 = vadd.f32 %v5481, %v5660
        %v5682 = vadd.f32 %v5482, %v5662
        %v5683 = vadd.f32 %v5483, %v5664
        %v5684 = vadd.f32 %v5484, %v5666
        %v5685 = vadd.f32 %v5485, %v5668
        %v5686 = vadd.f32 %v5486, %v5670
        %s5687 = sld [smem:[#allocation2 + $0x83]]
        %v5688 = vstv %s5687
        %v5689 = vmul.f32 %v5688, %v4207
        %v5690 = vmul.f32 %v5688, %v4208
        %v5691 = vmul.f32 %v5688, %v4209
        %v5692 = vmul.f32 %v5688, %v4210
        %v5693 = vmul.f32 %v5688, %v4211
        %v5694 = vmul.f32 %v5688, %v4212
        %v5695 = vmul.f32 %v5688, %v4213
        %v5696 = vmul.f32 %v5688, %v4214
        %5705 = vrot.lane.b32.xlu0 %v5689, 126
        %v5706 = vpop.permute.xlu0 %5705
        %5707 = vrot.lane.b32.xlu0 %v5690, 126
        %v5708 = vpop.permute.xlu0 %5707
        %5709 = vrot.lane.b32.xlu0 %v5691, 126
        %v5710 = vpop.permute.xlu0 %5709
        %5711 = vrot.lane.b32.xlu0 %v5692, 126
        %v5712 = vpop.permute.xlu0 %5711
        %5713 = vrot.lane.b32.xlu0 %v5693, 126
        %v5714 = vpop.permute.xlu0 %5713
        %5715 = vrot.lane.b32.xlu0 %v5694, 126
        %v5716 = vpop.permute.xlu0 %5715
        %5717 = vrot.lane.b32.xlu0 %v5695, 126
        %v5718 = vpop.permute.xlu0 %5717
        %5719 = vrot.lane.b32.xlu0 %v5696, 126
        %v5720 = vpop.permute.xlu0 %5719
        %v5729 = vadd.f32 %v5529, %v5706
        %v5730 = vadd.f32 %v5530, %v5708
        %v5731 = vadd.f32 %v5531, %v5710
        %v5732 = vadd.f32 %v5532, %v5712
        %v5733 = vadd.f32 %v5533, %v5714
        %v5734 = vadd.f32 %v5534, %v5716
        %v5735 = vadd.f32 %v5535, %v5718
        %v5736 = vadd.f32 %v5536, %v5720
        %s5737 = sld [smem:[#allocation2 + $0x87]]
        %v5738 = vstv %s5737
        %v5739 = vmul.f32 %v5738, %v4207
        %v5740 = vmul.f32 %v5738, %v4208
        %v5741 = vmul.f32 %v5738, %v4209
        %v5742 = vmul.f32 %v5738, %v4210
        %v5743 = vmul.f32 %v5738, %v4211
        %v5744 = vmul.f32 %v5738, %v4212
        %v5745 = vmul.f32 %v5738, %v4213
        %v5746 = vmul.f32 %v5738, %v4214
        %5755 = vrot.lane.b32.xlu0 %v5739, 126
        %v5756 = vpop.permute.xlu0 %5755
        %5757 = vrot.lane.b32.xlu0 %v5740, 126
        %v5758 = vpop.permute.xlu0 %5757
        %5759 = vrot.lane.b32.xlu0 %v5741, 126
        %v5760 = vpop.permute.xlu0 %5759
        %5761 = vrot.lane.b32.xlu0 %v5742, 126
        %v5762 = vpop.permute.xlu0 %5761
        %5763 = vrot.lane.b32.xlu0 %v5743, 126
        %v5764 = vpop.permute.xlu0 %5763
        %5765 = vrot.lane.b32.xlu0 %v5744, 126
        %v5766 = vpop.permute.xlu0 %5765
        %5767 = vrot.lane.b32.xlu0 %v5745, 126
        %v5768 = vpop.permute.xlu0 %5767
        %5769 = vrot.lane.b32.xlu0 %v5746, 126
        %v5770 = vpop.permute.xlu0 %5769
        %v5779 = vadd.f32 %v5579, %v5756
        %v5780 = vadd.f32 %v5580, %v5758
        %v5781 = vadd.f32 %v5581, %v5760
        %v5782 = vadd.f32 %v5582, %v5762
        %v5783 = vadd.f32 %v5583, %v5764
        %v5784 = vadd.f32 %v5584, %v5766
        %v5785 = vadd.f32 %v5585, %v5768
        %v5786 = vadd.f32 %v5586, %v5770
        %s5787 = sld [smem:[#allocation2 + $0x8b]]
        %v5788 = vstv %s5787
        %v5789 = vmul.f32 %v5788, %v4207
        %v5790 = vmul.f32 %v5788, %v4208
        %v5791 = vmul.f32 %v5788, %v4209
        %v5792 = vmul.f32 %v5788, %v4210
        %v5793 = vmul.f32 %v5788, %v4211
        %v5794 = vmul.f32 %v5788, %v4212
        %v5795 = vmul.f32 %v5788, %v4213
        %v5796 = vmul.f32 %v5788, %v4214
        %5805 = vrot.lane.b32.xlu0 %v5789, 126
        %v5806 = vpop.permute.xlu0 %5805
        %5807 = vrot.lane.b32.xlu0 %v5790, 126
        %v5808 = vpop.permute.xlu0 %5807
        %5809 = vrot.lane.b32.xlu0 %v5791, 126
        %v5810 = vpop.permute.xlu0 %5809
        %5811 = vrot.lane.b32.xlu0 %v5792, 126
        %v5812 = vpop.permute.xlu0 %5811
        %5813 = vrot.lane.b32.xlu0 %v5793, 126
        %v5814 = vpop.permute.xlu0 %5813
        %5815 = vrot.lane.b32.xlu0 %v5794, 126
        %v5816 = vpop.permute.xlu0 %5815
        %5817 = vrot.lane.b32.xlu0 %v5795, 126
        %v5818 = vpop.permute.xlu0 %5817
        %5819 = vrot.lane.b32.xlu0 %v5796, 126
        %v5820 = vpop.permute.xlu0 %5819
        %v5829 = vadd.f32 %v5629, %v5806
        %v5830 = vadd.f32 %v5630, %v5808
        %v5831 = vadd.f32 %v5631, %v5810
        %v5832 = vadd.f32 %v5632, %v5812
        %v5833 = vadd.f32 %v5633, %v5814
        %v5834 = vadd.f32 %v5634, %v5816
        %v5835 = vadd.f32 %v5635, %v5818
        %v5836 = vadd.f32 %v5636, %v5820
        %s5837 = sld [smem:[#allocation2 + $0x8f]]
        %v5838 = vstv %s5837
        %v5839 = vmul.f32 %v5838, %v4207
        %v5840 = vmul.f32 %v5838, %v4208
        %v5841 = vmul.f32 %v5838, %v4209
        %v5842 = vmul.f32 %v5838, %v4210
        %v5843 = vmul.f32 %v5838, %v4211
        %v5844 = vmul.f32 %v5838, %v4212
        %v5845 = vmul.f32 %v5838, %v4213
        %v5846 = vmul.f32 %v5838, %v4214
        %5855 = vrot.lane.b32.xlu0 %v5839, 126
        %v5856 = vpop.permute.xlu0 %5855
        %5857 = vrot.lane.b32.xlu0 %v5840, 126
        %v5858 = vpop.permute.xlu0 %5857
        %5859 = vrot.lane.b32.xlu0 %v5841, 126
        %v5860 = vpop.permute.xlu0 %5859
        %5861 = vrot.lane.b32.xlu0 %v5842, 126
        %v5862 = vpop.permute.xlu0 %5861
        %5863 = vrot.lane.b32.xlu0 %v5843, 126
        %v5864 = vpop.permute.xlu0 %5863
        %5865 = vrot.lane.b32.xlu0 %v5844, 126
        %v5866 = vpop.permute.xlu0 %5865
        %5867 = vrot.lane.b32.xlu0 %v5845, 126
        %v5868 = vpop.permute.xlu0 %5867
        %5869 = vrot.lane.b32.xlu0 %v5846, 126
        %v5870 = vpop.permute.xlu0 %5869
        %v5879 = vadd.f32 %v5679, %v5856
        %v5880 = vadd.f32 %v5680, %v5858
        %v5881 = vadd.f32 %v5681, %v5860
        %v5882 = vadd.f32 %v5682, %v5862
        %v5883 = vadd.f32 %v5683, %v5864
        %v5884 = vadd.f32 %v5684, %v5866
        %v5885 = vadd.f32 %v5685, %v5868
        %v5886 = vadd.f32 %v5686, %v5870
        %vm5887 = vcmask 523264
        %5888 = vst.msk [vmem:[%s150] sm:$0xff] %vm5887, %v5729
        %5889 = vst.msk [vmem:[%s150 + $0x8] sm:$0xff] %vm5887, %v5730
        %5890 = vst.msk [vmem:[%s150 + $0x10] sm:$0xff] %vm5887, %v5731
        %5891 = vst.msk [vmem:[%s150 + $0x18] sm:$0xff] %vm5887, %v5732
        %5892 = vst.msk [vmem:[%s150 + $0x20] sm:$0xff] %vm5887, %v5733
        %5893 = vst.msk [vmem:[%s150 + $0x28] sm:$0xff] %vm5887, %v5734
        %5894 = vst.msk [vmem:[%s150 + $0x30] sm:$0xff] %vm5887, %v5735
        %5895 = vst.msk [vmem:[%s150 + $0x38] sm:$0xff] %vm5887, %v5736
        %s5896 = scalar_lea.vmem %s150, 64 [#allocation5]
        %5897 = vst.msk [vmem:[%s5896] sm:$0xff] %vm5887, %v5779
        %5898 = vst.msk [vmem:[%s5896 + $0x8] sm:$0xff] %vm5887, %v5780
        %5899 = vst.msk [vmem:[%s5896 + $0x10] sm:$0xff] %vm5887, %v5781
        %5900 = vst.msk [vmem:[%s5896 + $0x18] sm:$0xff] %vm5887, %v5782
        %5901 = vst.msk [vmem:[%s5896 + $0x20] sm:$0xff] %vm5887, %v5783
        %5902 = vst.msk [vmem:[%s5896 + $0x28] sm:$0xff] %vm5887, %v5784
        %5903 = vst.msk [vmem:[%s5896 + $0x30] sm:$0xff] %vm5887, %v5785
        %5904 = vst.msk [vmem:[%s5896 + $0x38] sm:$0xff] %vm5887, %v5786
        %s5905 = scalar_lea.vmem %s150, 128 [#allocation5]
        %5906 = vst.msk [vmem:[%s5905] sm:$0xff] %vm5887, %v5829
        %5907 = vst.msk [vmem:[%s5905 + $0x8] sm:$0xff] %vm5887, %v5830
        %5908 = vst.msk [vmem:[%s5905 + $0x10] sm:$0xff] %vm5887, %v5831
        %5909 = vst.msk [vmem:[%s5905 + $0x18] sm:$0xff] %vm5887, %v5832
        %5910 = vst.msk [vmem:[%s5905 + $0x20] sm:$0xff] %vm5887, %v5833
        %5911 = vst.msk [vmem:[%s5905 + $0x28] sm:$0xff] %vm5887, %v5834
        %5912 = vst.msk [vmem:[%s5905 + $0x30] sm:$0xff] %vm5887, %v5835
        %5913 = vst.msk [vmem:[%s5905 + $0x38] sm:$0xff] %vm5887, %v5836
        %s5914 = scalar_lea.vmem %s150, 192 [#allocation5]
        %5915 = vst.msk [vmem:[%s5914] sm:$0xff] %vm5887, %v5879
        %5916 = vst.msk [vmem:[%s5914 + $0x8] sm:$0xff] %vm5887, %v5880
        %5917 = vst.msk [vmem:[%s5914 + $0x10] sm:$0xff] %vm5887, %v5881
        %5918 = vst.msk [vmem:[%s5914 + $0x18] sm:$0xff] %vm5887, %v5882
        %5919 = vst.msk [vmem:[%s5914 + $0x20] sm:$0xff] %vm5887, %v5883
        %5920 = vst.msk [vmem:[%s5914 + $0x28] sm:$0xff] %vm5887, %v5884
        %5921 = vst.msk [vmem:[%s5914 + $0x30] sm:$0xff] %vm5887, %v5885
        %5922 = vst.msk [vmem:[%s5914 + $0x38] sm:$0xff] %vm5887, %v5886
        %s5923 = sand.u32 %s72, 1
        %s5924 = scalar_lea.sflag [#allocation3], %s5923
        %s5925 = sand.u32 %s72, 1
        %s5926 = smul.addr %s5925, 256
        %s5927 = scalar_lea.vmem [#allocation5], %s5926
        // Predicated region
        $region33: #{_lambda_.1} parent=27 // pred_check
          %p5928 = pneg %p82
        $region34: #{_lambda_.1} parent=27 // pred_check_branch
          %5930 = sbr.rel (%p5928) target = $region36
        $region35: #{_lambda_.1} parent=27 // pred_region
          %s5932 = ssub.s32 4096, 4096
          %5933 = vsyncadd %s5924, %s5932
          %s5934 = smul.addr %s17, 32
          %s5935 = smul.addr %s5934, 128
          %s5936 = scalar_lea.hbm %s2, %s5935
          %s5937 = sshll.u32 %s5927, 4
          %s5938 = int_to_ptr.vmem [resolvable:$true] %s5937
          %5943 = dma.vmem_to_hbm [thread:$0]  %s5938, 4096, %s5936, %s5924, 128, 128, 8
        $region36: #{_lambda_.1} parent=27 // pred_fallthru
          _
      $region28: #{_lambda_.1} parent=5 // pred_fallthru
        _
      %p5944 = scmp.le.s32.totalorder 2, %s12
      // Predicated region
      $region37: #{_lambda_.1} parent=5 // pred_check
        %p5945 = pneg %p5944
      $region38: #{_lambda_.1} parent=5 // pred_check_branch
        %5947 = sbr.rel (%p5945) target = $region40
      $region39: #{_lambda_.1} parent=5 // pred_region
        %s5948 = ssub.s32 %s12, 2
        // Predicated region
        $region41: #{_lambda_.1} parent=39 // pred_check
          %p5949 = pneg %p88
        $region42: #{_lambda_.1} parent=39 // pred_check_branch
          %5951 = sbr.rel (%p5949) target = $region44
        $region43: #{_lambda_.1} parent=39 // pred_region
          %s5952 = sand.u32 %s73, 1
          %s5953 = scalar_lea.sflag [#allocation3], %s5952
          %s5954 = sand.u32 %s73, 1
          %s5955 = smul.addr %s5954, 256
          %s5956 = scalar_lea.vmem [#allocation5], %s5955
          %5957 = dma.done %s5953, 4096
        $region44: #{_lambda_.1} parent=39 // pred_fallthru
          _
      $region40: #{_lambda_.1} parent=5 // pred_fallthru
        _
    $region6: #{_lambda_.1} parent=1 // loop_footer
      %s16 = sadd.s32 1, %s12
    $region7: #{_lambda_.1} parent=1 // loop_footer_branch
      %11 = sbr.rel target = $region3
    $region8: #{_lambda_.1} parent=1 // loop_exit
      _
    %5958 = vsyncpa [#allocation3], 1
    %s5959 = scalar_lea.sflag [#allocation3], 1
    %5960 = vsyncpa %s5959, 1
    %5961 = vsyncpa [#allocation4], 1
    %s5962 = scalar_lea.sflag [#allocation4], 1
    %5963 = vsyncpa %s5962, 1

</llo_original>
